<compile_context>
chip_gen: v7x
topology: tpu7x:2x2x1
jax: 0.10.0
libtpu: 0.0.40
codegen_flags: <defaults>
</compile_context>

<pallas_src>
import functools

import jax
import jax.numpy as jnp
from jax.experimental import pallas as pl
from jax.experimental.pallas import tpu as pltpu


def lstm_new_kernel(x_ref,
                    wih1_ref,                       # (1, 4H)  f32
                    whh1_ref, wih2_ref, whh2_ref,   # (H, 4H)  bf16
                    wauto_ref,                      # (H, 4H)  bf16 (future fold)
                    b1_ref, b2_ref, b1f_ref,        # (1, 4H)  f32
                    whead_ref, bhead_ref,           # (S*H, S*O), (1, S*O) f32
                    out_ref,                        # (B, S*O) f32
                    *, future):
    B, T = x_ref.shape
    H = whh1_ref.shape[0]

    wih1 = wih1_ref[...]        # f32, used only for the VPU input multiply
    whh1 = whh1_ref[...]        # bf16
    wih2 = wih2_ref[...]        # bf16
    whh2 = whh2_ref[...]        # bf16

    # Hoisted bias broadcasts (emitted once, not per unrolled iteration).
    b1 = jnp.broadcast_to(b1_ref[...], (B, 4 * H))
    b2 = jnp.broadcast_to(b2_ref[...], (B, 4 * H))
    if future > 0:
        wauto = wauto_ref[...]                                   # bf16
        b1f = jnp.broadcast_to(b1f_ref[...], (B, 4 * H))         # b1 + b_head@wih1

    h1 = jnp.zeros((B, H), jnp.float32)
    c1 = jnp.zeros((B, H), jnp.float32)
    h2 = jnp.zeros((B, H), jnp.float32)
    c2 = jnp.zeros((B, H), jnp.float32)

    # All main-loop input contributions depend only on x -> off the recurrence
    # chain; computed as plain VPU broadcast multiplies (no MXU, K == 1).
    x_contribs = []
    if T > 0:
        x_all = x_ref[...]                                       # (B, T), one load
        x_contribs = [x_all[:, t:t + 1] * wih1 for t in range(T)]

    def mm(a, w_bf16):
        # On-chain gate matmul: bf16 operands -> single-pass MXU, f32 accumulate.
        return jnp.dot(a.astype(jnp.bfloat16), w_bf16,
                       preferred_element_type=jnp.float32)

    def gates_to_hc(gates, c):
        sig = jax.nn.sigmoid(gates)                 # one full-width EUP pass
        g = jnp.tanh(gates[:, 2 * H:3 * H])         # narrow tanh: only the g slice
        i = sig[:, 0 * H:1 * H]
        f = sig[:, 1 * H:2 * H]
        o = sig[:, 3 * H:4 * H]
        c_new = f * c + i * g
        h_new = o * jnp.tanh(c_new)
        return h_new, c_new

    h2_list = []

    # ------ main sequence loop (unrolled; T is small & static) ------
    for t in range(T):
        g1 = x_contribs[t] + mm(h1, whh1) + b1
        h1, c1 = gates_to_hc(g1, c1)
        # cell 2 un-fused: h2@whh2 depends only on the previous step and can
        # issue while cell 1 is still in EUP/VPU; no per-step lane concat.
        g2 = mm(h1, wih2) + mm(h2, whh2) + b2
        h2, c2 = gates_to_hc(g2, c2)
        h2_list.append(h2)                          # head deferred

    # ------ autoregressive future loop (head folded into cell-1 gates) ------
    for _ in range(future):
        # x_next = h2 @ w_head + b_head  =>  x_next @ wih1 = h2 @ W_auto + b_auto
        g1 = mm(h2, wauto) + mm(h1, whh1) + b1f
        h1, c1 = gates_to_hc(g1, c1)
        g2 = mm(h1, wih2) + mm(h2, whh2) + b2
        h2, c2 = gates_to_hc(g2, c2)
        h2_list.append(h2)                          # head deferred

    # ------ deferred, batched output head (off the recurrence, one matmul) ------
    h2_all = jnp.concatenate(h2_list, axis=1)       # (B, S*H)
    out = jnp.dot(h2_all, whead_ref[...],
                  preferred_element_type=jnp.float32) + bhead_ref[...]
    out_ref[...] = out                              # single coalesced store


def lstm_new_forward(x, params, future=0):
    """Pallas forward of LSTMNew. x: (B, T) float32 (input_size == 1)."""
    B, T = x.shape
    H = params["whh1_t"].shape[0]
    O = params["wl2_t"].shape[1]
    S = T + future
    assert S > 0, "T + future must be positive"

    wih1 = params["wih1_t"]                                            # (1, 4H)
    assert wih1.shape[0] == 1, "kernel assumes input_size == 1 (scalar timesteps)"

    # Pre-fold weights/biases (exact algebraic rewrites, done once outside kernel).
    b1 = params["bih1"] + params["bhh1"]                               # (1, 4H)
    b2 = params["bih2"] + params["bhh2"]                               # (1, 4H)
    w_head = params["wl1_t"] @ params["wl2_t"]                         # (H, O)
    b_head = params["bl1"] @ params["wl2_t"] + params["bl2"]           # (1, O)

    # Future-loop fold: requires output_size == input_size (as the module does,
    # since the output is fed back as the next input).
    if future > 0:
        if w_head.shape[1] != wih1.shape[0]:
            raise ValueError("future > 0 requires output_size == input_size")
        w_auto = w_head @ wih1                                         # (H, 4H)
        b1f = b1 + b_head @ wih1                                       # (1, 4H)
    else:
        w_auto = jnp.zeros((H, 4 * H), jnp.float32)
        b1f = b1

    # Deferred/batched head: block-diagonal weight over all S collected h2 states.
    w_big = jnp.kron(jnp.eye(S, dtype=jnp.float32), w_head)            # (S*H, S*O)
    b_big = jnp.tile(b_head, (1, S))                                   # (1, S*O)

    bf = lambda a: a.astype(jnp.bfloat16)
    args = (x, wih1,
            bf(params["whh1_t"]), bf(params["wih2_t"]), bf(params["whh2_t"]),
            bf(w_auto),
            b1, b2, b1f,
            w_big, b_big)

    # Everything is tiny -> single gridless kernel invocation, fully VMEM-resident.
    vmem_spec = pl.BlockSpec(memory_space=pltpu.MemorySpace.VMEM)
    return pl.pallas_call(
        functools.partial(lstm_new_kernel, future=future),
        out_shape=jax.ShapeDtypeStruct((B, S * O), jnp.float32),
        in_specs=[vmem_spec] * len(args),
        out_specs=vmem_spec,
    )(*args)


def init_params(key, input_size, hidden_size, output_size):
    """Deterministic init, PyTorch-style uniform(-1/sqrt(H), 1/sqrt(H)).

    Weights are stored pre-transposed (in_features, out_features) so the kernel
    computes x @ W directly. Biases are (1, out) for clean broadcasting.
    """
    H = hidden_size
    k = 1.0 / jnp.sqrt(jnp.float32(H))
    keys = jax.random.split(key, 12)

    def u(kk, shape):
        return jax.random.uniform(kk, shape, jnp.float32, -k, k)

    return {
        # LSTMCell 1: W_ih (4H, input) -> transposed (input, 4H)
        "wih1_t": u(keys[0], (input_size, 4 * H)),
        "bih1": u(keys[1], (1, 4 * H)),
        "whh1_t": u(keys[2], (H, 4 * H)),
        "bhh1": u(keys[3], (1, 4 * H)),
        # LSTMCell 2
        "wih2_t": u(keys[4], (H, 4 * H)),
        "bih2": u(keys[5], (1, 4 * H)),
        "whh2_t": u(keys[6], (H, 4 * H)),
        "bhh2": u(keys[7], (1, 4 * H)),
        # linear1: (H, H), linear2: (O, H) -> transposed
        "wl1_t": u(keys[8], (H, H)),
        "bl1": u(keys[9], (1, H)),
        "wl2_t": u(keys[10], (H, output_size)),
        "bl2": u(keys[11], (1, output_size)),
    }


def reference_forward(x, p, future=0):
    """Pure-JAX f32 reference mirroring the PyTorch semantics (unfused weights)."""
    B, T = x.shape
    H = p["whh1_t"].shape[0]

    def cell(xt, h, c, wih_t, bih, whh_t, bhh):
        g = xt @ wih_t + bih + h @ whh_t + bhh
        i, f, gg, o = (jax.nn.sigmoid(g[:, :H]), jax.nn.sigmoid(g[:, H:2 * H]),
                       jnp.tanh(g[:, 2 * H:3 * H]), jax.nn.sigmoid(g[:, 3 * H:]))
        c2 = f * c + i * gg
        return o * jnp.tanh(c2), c2

    h1 = c1 = h2 = c2 = jnp.zeros((B, H), jnp.float32)
    outs = []
    out = None
    for t in range(T):
        xt = x[:, t:t + 1]
        h1, c1 = cell(xt, h1, c1, p["wih1_t"], p["bih1"], p["whh1_t"], p["bhh1"])
        h2, c2 = cell(h1, h2, c2, p["wih2_t"], p["bih2"], p["whh2_t"], p["bhh2"])
        out = (h2 @ p["wl1_t"] + p["bl1"]) @ p["wl2_t"] + p["bl2"]
        outs.append(out)
    for _ in range(future):
        h1, c1 = cell(out, h1, c1, p["wih1_t"], p["bih1"], p["whh1_t"], p["bhh1"])
        h2, c2 = cell(h1, h2, c2, p["wih2_t"], p["bih2"], p["whh2_t"], p["bhh2"])
        out = (h2 @ p["wl1_t"] + p["bl1"]) @ p["wl2_t"] + p["bl2"]
        outs.append(out)
    return jnp.concatenate(outs, axis=1)


if __name__ == "__main__":
    input_size, hidden_size, output_size = 1, 32, 1
    B, T, future = 2, 8, 4

    key = jax.random.PRNGKey(0)
    kx, kp = jax.random.split(key)
    x = jax.random.normal(kx, (B, T), jnp.float32)
    params = init_params(kp, input_size, hidden_size, output_size)

    out = jax.block_until_ready(lstm_new_forward(x, params, future=future))
    assert out.shape == (B, (T + future) * output_size), out.shape

    ref = jax.block_until_ready(reference_forward(x, params, future=future))
    max_err = float(jnp.max(jnp.abs(out - ref)))
    # Tolerance loosened vs. the pure-f32 version: gate matmuls now run with
    # bf16 operands (single-pass MXU), giving ~1e-3-level drift vs. the f32
    # reference that accumulates over the 4 autoregressive steps.
    assert jnp.allclose(out, ref, atol=1e-2, rtol=1e-2), f"max abs err {max_err}"

    print("KERNEL_OK")
</pallas_src>

<mosaic_0001>
module attributes {stable_mosaic.version = 11 : i64} {
  func.func @lstm_new_kernel(%arg0: memref<2x8xf32, #tpu.memory_space<vmem>>, %arg1: memref<1x128xf32, #tpu.memory_space<vmem>>, %arg2: memref<32x128xbf16, #tpu.memory_space<vmem>>, %arg3: memref<32x128xbf16, #tpu.memory_space<vmem>>, %arg4: memref<32x128xbf16, #tpu.memory_space<vmem>>, %arg5: memref<32x128xbf16, #tpu.memory_space<vmem>>, %arg6: memref<1x128xf32, #tpu.memory_space<vmem>>, %arg7: memref<1x128xf32, #tpu.memory_space<vmem>>, %arg8: memref<1x128xf32, #tpu.memory_space<vmem>>, %arg9: memref<384x12xf32, #tpu.memory_space<vmem>>, %arg10: memref<1x12xf32, #tpu.memory_space<vmem>>, %arg11: memref<2x12xf32, #tpu.memory_space<vmem>>) attributes {dimension_semantics = [], scalar_prefetch = 0 : i64, scratch_operands = 0 : i64, tpu.core_type = #tpu.core_type<tc>} {
    %c0 = arith.constant 0 : index
    %c0_0 = arith.constant 0 : index
    %0 = vector.load %arg1[%c0, %c0_0] : memref<1x128xf32, #tpu.memory_space<vmem>>, vector<1x128xf32>
    %c0_1 = arith.constant 0 : index
    %c0_2 = arith.constant 0 : index
    %1 = vector.load %arg2[%c0_1, %c0_2] : memref<32x128xbf16, #tpu.memory_space<vmem>>, vector<32x128xbf16>
    %c0_3 = arith.constant 0 : index
    %c0_4 = arith.constant 0 : index
    %2 = vector.load %arg3[%c0_3, %c0_4] : memref<32x128xbf16, #tpu.memory_space<vmem>>, vector<32x128xbf16>
    %c0_5 = arith.constant 0 : index
    %c0_6 = arith.constant 0 : index
    %3 = vector.load %arg4[%c0_5, %c0_6] : memref<32x128xbf16, #tpu.memory_space<vmem>>, vector<32x128xbf16>
    %c0_7 = arith.constant 0 : index
    %c0_8 = arith.constant 0 : index
    %4 = vector.load %arg6[%c0_7, %c0_8] : memref<1x128xf32, #tpu.memory_space<vmem>>, vector<1x128xf32>
    %5 = vector.shape_cast %4 : vector<1x128xf32> to vector<1x128xf32>
    %6 = vector.broadcast %5 : vector<1x128xf32> to vector<2x128xf32>
    %c0_9 = arith.constant 0 : index
    %c0_10 = arith.constant 0 : index
    %7 = vector.load %arg7[%c0_9, %c0_10] : memref<1x128xf32, #tpu.memory_space<vmem>>, vector<1x128xf32>
    %8 = vector.shape_cast %7 : vector<1x128xf32> to vector<1x128xf32>
    %9 = vector.broadcast %8 : vector<1x128xf32> to vector<2x128xf32>
    %c0_11 = arith.constant 0 : index
    %c0_12 = arith.constant 0 : index
    %10 = vector.load %arg5[%c0_11, %c0_12] : memref<32x128xbf16, #tpu.memory_space<vmem>>, vector<32x128xbf16>
    %c0_13 = arith.constant 0 : index
    %c0_14 = arith.constant 0 : index
    %11 = vector.load %arg8[%c0_13, %c0_14] : memref<1x128xf32, #tpu.memory_space<vmem>>, vector<1x128xf32>
    %12 = vector.shape_cast %11 : vector<1x128xf32> to vector<1x128xf32>
    %13 = vector.broadcast %12 : vector<1x128xf32> to vector<2x128xf32>
    %cst = arith.constant 0.000000e+00 : f32
    %14 = vector.broadcast %cst : f32 to vector<2x32xf32>
    %cst_15 = arith.constant 0.000000e+00 : f32
    %15 = vector.broadcast %cst_15 : f32 to vector<2x32xf32>
    %cst_16 = arith.constant 0.000000e+00 : f32
    %16 = vector.broadcast %cst_16 : f32 to vector<2x32xf32>
    %cst_17 = arith.constant 0.000000e+00 : f32
    %17 = vector.broadcast %cst_17 : f32 to vector<2x32xf32>
    %c0_18 = arith.constant 0 : index
    %c0_19 = arith.constant 0 : index
    %18 = vector.load %arg0[%c0_18, %c0_19] : memref<2x8xf32, #tpu.memory_space<vmem>>, vector<2x8xf32>
    %19 = vector.extract_strided_slice %18 {offsets = [0, 0], sizes = [2, 1], strides = [1, 1]} : vector<2x8xf32> to vector<2x1xf32>
    %20 = vector.broadcast %19 : vector<2x1xf32> to vector<2x128xf32>
    %21 = vector.broadcast %0 : vector<1x128xf32> to vector<2x128xf32>
    %22 = arith.mulf %20, %21 : vector<2x128xf32>
    %23 = vector.extract_strided_slice %18 {offsets = [0, 1], sizes = [2, 1], strides = [1, 1]} : vector<2x8xf32> to vector<2x1xf32>
    %24 = vector.broadcast %23 : vector<2x1xf32> to vector<2x128xf32>
    %25 = vector.broadcast %0 : vector<1x128xf32> to vector<2x128xf32>
    %26 = arith.mulf %24, %25 : vector<2x128xf32>
    %27 = vector.extract_strided_slice %18 {offsets = [0, 2], sizes = [2, 1], strides = [1, 1]} : vector<2x8xf32> to vector<2x1xf32>
    %28 = vector.broadcast %27 : vector<2x1xf32> to vector<2x128xf32>
    %29 = vector.broadcast %0 : vector<1x128xf32> to vector<2x128xf32>
    %30 = arith.mulf %28, %29 : vector<2x128xf32>
    %31 = vector.extract_strided_slice %18 {offsets = [0, 3], sizes = [2, 1], strides = [1, 1]} : vector<2x8xf32> to vector<2x1xf32>
    %32 = vector.broadcast %31 : vector<2x1xf32> to vector<2x128xf32>
    %33 = vector.broadcast %0 : vector<1x128xf32> to vector<2x128xf32>
    %34 = arith.mulf %32, %33 : vector<2x128xf32>
    %35 = vector.extract_strided_slice %18 {offsets = [0, 4], sizes = [2, 1], strides = [1, 1]} : vector<2x8xf32> to vector<2x1xf32>
    %36 = vector.broadcast %35 : vector<2x1xf32> to vector<2x128xf32>
    %37 = vector.broadcast %0 : vector<1x128xf32> to vector<2x128xf32>
    %38 = arith.mulf %36, %37 : vector<2x128xf32>
    %39 = vector.extract_strided_slice %18 {offsets = [0, 5], sizes = [2, 1], strides = [1, 1]} : vector<2x8xf32> to vector<2x1xf32>
    %40 = vector.broadcast %39 : vector<2x1xf32> to vector<2x128xf32>
    %41 = vector.broadcast %0 : vector<1x128xf32> to vector<2x128xf32>
    %42 = arith.mulf %40, %41 : vector<2x128xf32>
    %43 = vector.extract_strided_slice %18 {offsets = [0, 6], sizes = [2, 1], strides = [1, 1]} : vector<2x8xf32> to vector<2x1xf32>
    %44 = vector.broadcast %43 : vector<2x1xf32> to vector<2x128xf32>
    %45 = vector.broadcast %0 : vector<1x128xf32> to vector<2x128xf32>
    %46 = arith.mulf %44, %45 : vector<2x128xf32>
    %47 = vector.extract_strided_slice %18 {offsets = [0, 7], sizes = [2, 1], strides = [1, 1]} : vector<2x8xf32> to vector<2x1xf32>
    %48 = vector.broadcast %47 : vector<2x1xf32> to vector<2x128xf32>
    %49 = vector.broadcast %0 : vector<1x128xf32> to vector<2x128xf32>
    %50 = arith.mulf %48, %49 : vector<2x128xf32>
    %51 = arith.truncf %14 : vector<2x32xf32> to vector<2x32xbf16>
    %cst_20 = arith.constant dense<0.000000e+00> : vector<2x128xf32>
    %52 = tpu.matmul %51, %1, %cst_20 {dimension_numbers = #tpu.dot_dimension_numbers<[1], [0], [0], [1], [0, 0, 1, 1], [], []>} : vector<2x32xbf16>, vector<32x128xbf16>, vector<2x128xf32> -> vector<2x128xf32>
    %53 = arith.addf %22, %52 : vector<2x128xf32>
    %54 = arith.addf %53, %6 : vector<2x128xf32>
    %55 = arith.negf %54 : vector<2x128xf32>
    %56 = math.exp %55 : vector<2x128xf32>
    %cst_21 = arith.constant 1.000000e+00 : f32
    %57 = vector.broadcast %cst_21 : f32 to vector<2x128xf32>
    %58 = arith.addf %57, %56 : vector<2x128xf32>
    %59 = arith.divf %57, %58 : vector<2x128xf32>
    %60 = vector.extract_strided_slice %54 {offsets = [0, 64], sizes = [2, 32], strides = [1, 1]} : vector<2x128xf32> to vector<2x32xf32>
    %61 = math.tanh %60 : vector<2x32xf32>
    %62 = vector.extract_strided_slice %59 {offsets = [0, 0], sizes = [2, 32], strides = [1, 1]} : vector<2x128xf32> to vector<2x32xf32>
    %63 = vector.extract_strided_slice %59 {offsets = [0, 32], sizes = [2, 32], strides = [1, 1]} : vector<2x128xf32> to vector<2x32xf32>
    %64 = vector.extract_strided_slice %59 {offsets = [0, 96], sizes = [2, 32], strides = [1, 1]} : vector<2x128xf32> to vector<2x32xf32>
    %65 = arith.mulf %63, %15 : vector<2x32xf32>
    %66 = arith.mulf %62, %61 : vector<2x32xf32>
    %67 = arith.addf %65, %66 : vector<2x32xf32>
    %68 = math.tanh %67 : vector<2x32xf32>
    %69 = arith.mulf %64, %68 : vector<2x32xf32>
    %70 = arith.truncf %69 : vector<2x32xf32> to vector<2x32xbf16>
    %cst_22 = arith.constant dense<0.000000e+00> : vector<2x128xf32>
    %71 = tpu.matmul %70, %2, %cst_22 {dimension_numbers = #tpu.dot_dimension_numbers<[1], [0], [0], [1], [0, 0, 1, 1], [], []>} : vector<2x32xbf16>, vector<32x128xbf16>, vector<2x128xf32> -> vector<2x128xf32>
    %72 = arith.truncf %16 : vector<2x32xf32> to vector<2x32xbf16>
    %cst_23 = arith.constant dense<0.000000e+00> : vector<2x128xf32>
    %73 = tpu.matmul %72, %3, %cst_23 {dimension_numbers = #tpu.dot_dimension_numbers<[1], [0], [0], [1], [0, 0, 1, 1], [], []>} : vector<2x32xbf16>, vector<32x128xbf16>, vector<2x128xf32> -> vector<2x128xf32>
    %74 = arith.addf %71, %73 : vector<2x128xf32>
    %75 = arith.addf %74, %9 : vector<2x128xf32>
    %76 = arith.negf %75 : vector<2x128xf32>
    %77 = math.exp %76 : vector<2x128xf32>
    %cst_24 = arith.constant 1.000000e+00 : f32
    %78 = vector.broadcast %cst_24 : f32 to vector<2x128xf32>
    %79 = arith.addf %78, %77 : vector<2x128xf32>
    %80 = arith.divf %78, %79 : vector<2x128xf32>
    %81 = vector.extract_strided_slice %75 {offsets = [0, 64], sizes = [2, 32], strides = [1, 1]} : vector<2x128xf32> to vector<2x32xf32>
    %82 = math.tanh %81 : vector<2x32xf32>
    %83 = vector.extract_strided_slice %80 {offsets = [0, 0], sizes = [2, 32], strides = [1, 1]} : vector<2x128xf32> to vector<2x32xf32>
    %84 = vector.extract_strided_slice %80 {offsets = [0, 32], sizes = [2, 32], strides = [1, 1]} : vector<2x128xf32> to vector<2x32xf32>
    %85 = vector.extract_strided_slice %80 {offsets = [0, 96], sizes = [2, 32], strides = [1, 1]} : vector<2x128xf32> to vector<2x32xf32>
    %86 = arith.mulf %84, %17 : vector<2x32xf32>
    %87 = arith.mulf %83, %82 : vector<2x32xf32>
    %88 = arith.addf %86, %87 : vector<2x32xf32>
    %89 = math.tanh %88 : vector<2x32xf32>
    %90 = arith.mulf %85, %89 : vector<2x32xf32>
    %91 = arith.truncf %69 : vector<2x32xf32> to vector<2x32xbf16>
    %cst_25 = arith.constant dense<0.000000e+00> : vector<2x128xf32>
    %92 = tpu.matmul %91, %1, %cst_25 {dimension_numbers = #tpu.dot_dimension_numbers<[1], [0], [0], [1], [0, 0, 1, 1], [], []>} : vector<2x32xbf16>, vector<32x128xbf16>, vector<2x128xf32> -> vector<2x128xf32>
    %93 = arith.addf %26, %92 : vector<2x128xf32>
    %94 = arith.addf %93, %6 : vector<2x128xf32>
    %95 = arith.negf %94 : vector<2x128xf32>
    %96 = math.exp %95 : vector<2x128xf32>
    %cst_26 = arith.constant 1.000000e+00 : f32
    %97 = vector.broadcast %cst_26 : f32 to vector<2x128xf32>
    %98 = arith.addf %97, %96 : vector<2x128xf32>
    %99 = arith.divf %97, %98 : vector<2x128xf32>
    %100 = vector.extract_strided_slice %94 {offsets = [0, 64], sizes = [2, 32], strides = [1, 1]} : vector<2x128xf32> to vector<2x32xf32>
    %101 = math.tanh %100 : vector<2x32xf32>
    %102 = vector.extract_strided_slice %99 {offsets = [0, 0], sizes = [2, 32], strides = [1, 1]} : vector<2x128xf32> to vector<2x32xf32>
    %103 = vector.extract_strided_slice %99 {offsets = [0, 32], sizes = [2, 32], strides = [1, 1]} : vector<2x128xf32> to vector<2x32xf32>
    %104 = vector.extract_strided_slice %99 {offsets = [0, 96], sizes = [2, 32], strides = [1, 1]} : vector<2x128xf32> to vector<2x32xf32>
    %105 = arith.mulf %103, %67 : vector<2x32xf32>
    %106 = arith.mulf %102, %101 : vector<2x32xf32>
    %107 = arith.addf %105, %106 : vector<2x32xf32>
    %108 = math.tanh %107 : vector<2x32xf32>
    %109 = arith.mulf %104, %108 : vector<2x32xf32>
    %110 = arith.truncf %109 : vector<2x32xf32> to vector<2x32xbf16>
    %cst_27 = arith.constant dense<0.000000e+00> : vector<2x128xf32>
    %111 = tpu.matmul %110, %2, %cst_27 {dimension_numbers = #tpu.dot_dimension_numbers<[1], [0], [0], [1], [0, 0, 1, 1], [], []>} : vector<2x32xbf16>, vector<32x128xbf16>, vector<2x128xf32> -> vector<2x128xf32>
    %112 = arith.truncf %90 : vector<2x32xf32> to vector<2x32xbf16>
    %cst_28 = arith.constant dense<0.000000e+00> : vector<2x128xf32>
    %113 = tpu.matmul %112, %3, %cst_28 {dimension_numbers = #tpu.dot_dimension_numbers<[1], [0], [0], [1], [0, 0, 1, 1], [], []>} : vector<2x32xbf16>, vector<32x128xbf16>, vector<2x128xf32> -> vector<2x128xf32>
    %114 = arith.addf %111, %113 : vector<2x128xf32>
    %115 = arith.addf %114, %9 : vector<2x128xf32>
    %116 = arith.negf %115 : vector<2x128xf32>
    %117 = math.exp %116 : vector<2x128xf32>
    %cst_29 = arith.constant 1.000000e+00 : f32
    %118 = vector.broadcast %cst_29 : f32 to vector<2x128xf32>
    %119 = arith.addf %118, %117 : vector<2x128xf32>
    %120 = arith.divf %118, %119 : vector<2x128xf32>
    %121 = vector.extract_strided_slice %115 {offsets = [0, 64], sizes = [2, 32], strides = [1, 1]} : vector<2x128xf32> to vector<2x32xf32>
    %122 = math.tanh %121 : vector<2x32xf32>
    %123 = vector.extract_strided_slice %120 {offsets = [0, 0], sizes = [2, 32], strides = [1, 1]} : vector<2x128xf32> to vector<2x32xf32>
    %124 = vector.extract_strided_slice %120 {offsets = [0, 32], sizes = [2, 32], strides = [1, 1]} : vector<2x128xf32> to vector<2x32xf32>
    %125 = vector.extract_strided_slice %120 {offsets = [0, 96], sizes = [2, 32], strides = [1, 1]} : vector<2x128xf32> to vector<2x32xf32>
    %126 = arith.mulf %124, %88 : vector<2x32xf32>
    %127 = arith.mulf %123, %122 : vector<2x32xf32>
    %128 = arith.addf %126, %127 : vector<2x32xf32>
    %129 = math.tanh %128 : vector<2x32xf32>
    %130 = arith.mulf %125, %129 : vector<2x32xf32>
    %131 = arith.truncf %109 : vector<2x32xf32> to vector<2x32xbf16>
    %cst_30 = arith.constant dense<0.000000e+00> : vector<2x128xf32>
    %132 = tpu.matmul %131, %1, %cst_30 {dimension_numbers = #tpu.dot_dimension_numbers<[1], [0], [0], [1], [0, 0, 1, 1], [], []>} : vector<2x32xbf16>, vector<32x128xbf16>, vector<2x128xf32> -> vector<2x128xf32>
    %133 = arith.addf %30, %132 : vector<2x128xf32>
    %134 = arith.addf %133, %6 : vector<2x128xf32>
    %135 = arith.negf %134 : vector<2x128xf32>
    %136 = math.exp %135 : vector<2x128xf32>
    %cst_31 = arith.constant 1.000000e+00 : f32
    %137 = vector.broadcast %cst_31 : f32 to vector<2x128xf32>
    %138 = arith.addf %137, %136 : vector<2x128xf32>
    %139 = arith.divf %137, %138 : vector<2x128xf32>
    %140 = vector.extract_strided_slice %134 {offsets = [0, 64], sizes = [2, 32], strides = [1, 1]} : vector<2x128xf32> to vector<2x32xf32>
    %141 = math.tanh %140 : vector<2x32xf32>
    %142 = vector.extract_strided_slice %139 {offsets = [0, 0], sizes = [2, 32], strides = [1, 1]} : vector<2x128xf32> to vector<2x32xf32>
    %143 = vector.extract_strided_slice %139 {offsets = [0, 32], sizes = [2, 32], strides = [1, 1]} : vector<2x128xf32> to vector<2x32xf32>
    %144 = vector.extract_strided_slice %139 {offsets = [0, 96], sizes = [2, 32], strides = [1, 1]} : vector<2x128xf32> to vector<2x32xf32>
    %145 = arith.mulf %143, %107 : vector<2x32xf32>
    %146 = arith.mulf %142, %141 : vector<2x32xf32>
    %147 = arith.addf %145, %146 : vector<2x32xf32>
    %148 = math.tanh %147 : vector<2x32xf32>
    %149 = arith.mulf %144, %148 : vector<2x32xf32>
    %150 = arith.truncf %149 : vector<2x32xf32> to vector<2x32xbf16>
    %cst_32 = arith.constant dense<0.000000e+00> : vector<2x128xf32>
    %151 = tpu.matmul %150, %2, %cst_32 {dimension_numbers = #tpu.dot_dimension_numbers<[1], [0], [0], [1], [0, 0, 1, 1], [], []>} : vector<2x32xbf16>, vector<32x128xbf16>, vector<2x128xf32> -> vector<2x128xf32>
    %152 = arith.truncf %130 : vector<2x32xf32> to vector<2x32xbf16>
    %cst_33 = arith.constant dense<0.000000e+00> : vector<2x128xf32>
    %153 = tpu.matmul %152, %3, %cst_33 {dimension_numbers = #tpu.dot_dimension_numbers<[1], [0], [0], [1], [0, 0, 1, 1], [], []>} : vector<2x32xbf16>, vector<32x128xbf16>, vector<2x128xf32> -> vector<2x128xf32>
    %154 = arith.addf %151, %153 : vector<2x128xf32>
    %155 = arith.addf %154, %9 : vector<2x128xf32>
    %156 = arith.negf %155 : vector<2x128xf32>
    %157 = math.exp %156 : vector<2x128xf32>
    %cst_34 = arith.constant 1.000000e+00 : f32
    %158 = vector.broadcast %cst_34 : f32 to vector<2x128xf32>
    %159 = arith.addf %158, %157 : vector<2x128xf32>
    %160 = arith.divf %158, %159 : vector<2x128xf32>
    %161 = vector.extract_strided_slice %155 {offsets = [0, 64], sizes = [2, 32], strides = [1, 1]} : vector<2x128xf32> to vector<2x32xf32>
    %162 = math.tanh %161 : vector<2x32xf32>
    %163 = vector.extract_strided_slice %160 {offsets = [0, 0], sizes = [2, 32], strides = [1, 1]} : vector<2x128xf32> to vector<2x32xf32>
    %164 = vector.extract_strided_slice %160 {offsets = [0, 32], sizes = [2, 32], strides = [1, 1]} : vector<2x128xf32> to vector<2x32xf32>
    %165 = vector.extract_strided_slice %160 {offsets = [0, 96], sizes = [2, 32], strides = [1, 1]} : vector<2x128xf32> to vector<2x32xf32>
    %166 = arith.mulf %164, %128 : vector<2x32xf32>
    %167 = arith.mulf %163, %162 : vector<2x32xf32>
    %168 = arith.addf %166, %167 : vector<2x32xf32>
    %169 = math.tanh %168 : vector<2x32xf32>
    %170 = arith.mulf %165, %169 : vector<2x32xf32>
    %171 = arith.truncf %149 : vector<2x32xf32> to vector<2x32xbf16>
    %cst_35 = arith.constant dense<0.000000e+00> : vector<2x128xf32>
    %172 = tpu.matmul %171, %1, %cst_35 {dimension_numbers = #tpu.dot_dimension_numbers<[1], [0], [0], [1], [0, 0, 1, 1], [], []>} : vector<2x32xbf16>, vector<32x128xbf16>, vector<2x128xf32> -> vector<2x128xf32>
    %173 = arith.addf %34, %172 : vector<2x128xf32>
    %174 = arith.addf %173, %6 : vector<2x128xf32>
    %175 = arith.negf %174 : vector<2x128xf32>
    %176 = math.exp %175 : vector<2x128xf32>
    %cst_36 = arith.constant 1.000000e+00 : f32
    %177 = vector.broadcast %cst_36 : f32 to vector<2x128xf32>
    %178 = arith.addf %177, %176 : vector<2x128xf32>
    %179 = arith.divf %177, %178 : vector<2x128xf32>
    %180 = vector.extract_strided_slice %174 {offsets = [0, 64], sizes = [2, 32], strides = [1, 1]} : vector<2x128xf32> to vector<2x32xf32>
    %181 = math.tanh %180 : vector<2x32xf32>
    %182 = vector.extract_strided_slice %179 {offsets = [0, 0], sizes = [2, 32], strides = [1, 1]} : vector<2x128xf32> to vector<2x32xf32>
    %183 = vector.extract_strided_slice %179 {offsets = [0, 32], sizes = [2, 32], strides = [1, 1]} : vector<2x128xf32> to vector<2x32xf32>
    %184 = vector.extract_strided_slice %179 {offsets = [0, 96], sizes = [2, 32], strides = [1, 1]} : vector<2x128xf32> to vector<2x32xf32>
    %185 = arith.mulf %183, %147 : vector<2x32xf32>
    %186 = arith.mulf %182, %181 : vector<2x32xf32>
    %187 = arith.addf %185, %186 : vector<2x32xf32>
    %188 = math.tanh %187 : vector<2x32xf32>
    %189 = arith.mulf %184, %188 : vector<2x32xf32>
    %190 = arith.truncf %189 : vector<2x32xf32> to vector<2x32xbf16>
    %cst_37 = arith.constant dense<0.000000e+00> : vector<2x128xf32>
    %191 = tpu.matmul %190, %2, %cst_37 {dimension_numbers = #tpu.dot_dimension_numbers<[1], [0], [0], [1], [0, 0, 1, 1], [], []>} : vector<2x32xbf16>, vector<32x128xbf16>, vector<2x128xf32> -> vector<2x128xf32>
    %192 = arith.truncf %170 : vector<2x32xf32> to vector<2x32xbf16>
    %cst_38 = arith.constant dense<0.000000e+00> : vector<2x128xf32>
    %193 = tpu.matmul %192, %3, %cst_38 {dimension_numbers = #tpu.dot_dimension_numbers<[1], [0], [0], [1], [0, 0, 1, 1], [], []>} : vector<2x32xbf16>, vector<32x128xbf16>, vector<2x128xf32> -> vector<2x128xf32>
    %194 = arith.addf %191, %193 : vector<2x128xf32>
    %195 = arith.addf %194, %9 : vector<2x128xf32>
    %196 = arith.negf %195 : vector<2x128xf32>
    %197 = math.exp %196 : vector<2x128xf32>
    %cst_39 = arith.constant 1.000000e+00 : f32
    %198 = vector.broadcast %cst_39 : f32 to vector<2x128xf32>
    %199 = arith.addf %198, %197 : vector<2x128xf32>
    %200 = arith.divf %198, %199 : vector<2x128xf32>
    %201 = vector.extract_strided_slice %195 {offsets = [0, 64], sizes = [2, 32], strides = [1, 1]} : vector<2x128xf32> to vector<2x32xf32>
    %202 = math.tanh %201 : vector<2x32xf32>
    %203 = vector.extract_strided_slice %200 {offsets = [0, 0], sizes = [2, 32], strides = [1, 1]} : vector<2x128xf32> to vector<2x32xf32>
    %204 = vector.extract_strided_slice %200 {offsets = [0, 32], sizes = [2, 32], strides = [1, 1]} : vector<2x128xf32> to vector<2x32xf32>
    %205 = vector.extract_strided_slice %200 {offsets = [0, 96], sizes = [2, 32], strides = [1, 1]} : vector<2x128xf32> to vector<2x32xf32>
    %206 = arith.mulf %204, %168 : vector<2x32xf32>
    %207 = arith.mulf %203, %202 : vector<2x32xf32>
    %208 = arith.addf %206, %207 : vector<2x32xf32>
    %209 = math.tanh %208 : vector<2x32xf32>
    %210 = arith.mulf %205, %209 : vector<2x32xf32>
    %211 = arith.truncf %189 : vector<2x32xf32> to vector<2x32xbf16>
    %cst_40 = arith.constant dense<0.000000e+00> : vector<2x128xf32>
    %212 = tpu.matmul %211, %1, %cst_40 {dimension_numbers = #tpu.dot_dimension_numbers<[1], [0], [0], [1], [0, 0, 1, 1], [], []>} : vector<2x32xbf16>, vector<32x128xbf16>, vector<2x128xf32> -> vector<2x128xf32>
    %213 = arith.addf %38, %212 : vector<2x128xf32>
    %214 = arith.addf %213, %6 : vector<2x128xf32>
    %215 = arith.negf %214 : vector<2x128xf32>
    %216 = math.exp %215 : vector<2x128xf32>
    %cst_41 = arith.constant 1.000000e+00 : f32
    %217 = vector.broadcast %cst_41 : f32 to vector<2x128xf32>
    %218 = arith.addf %217, %216 : vector<2x128xf32>
    %219 = arith.divf %217, %218 : vector<2x128xf32>
    %220 = vector.extract_strided_slice %214 {offsets = [0, 64], sizes = [2, 32], strides = [1, 1]} : vector<2x128xf32> to vector<2x32xf32>
    %221 = math.tanh %220 : vector<2x32xf32>
    %222 = vector.extract_strided_slice %219 {offsets = [0, 0], sizes = [2, 32], strides = [1, 1]} : vector<2x128xf32> to vector<2x32xf32>
    %223 = vector.extract_strided_slice %219 {offsets = [0, 32], sizes = [2, 32], strides = [1, 1]} : vector<2x128xf32> to vector<2x32xf32>
    %224 = vector.extract_strided_slice %219 {offsets = [0, 96], sizes = [2, 32], strides = [1, 1]} : vector<2x128xf32> to vector<2x32xf32>
    %225 = arith.mulf %223, %187 : vector<2x32xf32>
    %226 = arith.mulf %222, %221 : vector<2x32xf32>
    %227 = arith.addf %225, %226 : vector<2x32xf32>
    %228 = math.tanh %227 : vector<2x32xf32>
    %229 = arith.mulf %224, %228 : vector<2x32xf32>
    %230 = arith.truncf %229 : vector<2x32xf32> to vector<2x32xbf16>
    %cst_42 = arith.constant dense<0.000000e+00> : vector<2x128xf32>
    %231 = tpu.matmul %230, %2, %cst_42 {dimension_numbers = #tpu.dot_dimension_numbers<[1], [0], [0], [1], [0, 0, 1, 1], [], []>} : vector<2x32xbf16>, vector<32x128xbf16>, vector<2x128xf32> -> vector<2x128xf32>
    %232 = arith.truncf %210 : vector<2x32xf32> to vector<2x32xbf16>
    %cst_43 = arith.constant dense<0.000000e+00> : vector<2x128xf32>
    %233 = tpu.matmul %232, %3, %cst_43 {dimension_numbers = #tpu.dot_dimension_numbers<[1], [0], [0], [1], [0, 0, 1, 1], [], []>} : vector<2x32xbf16>, vector<32x128xbf16>, vector<2x128xf32> -> vector<2x128xf32>
    %234 = arith.addf %231, %233 : vector<2x128xf32>
    %235 = arith.addf %234, %9 : vector<2x128xf32>
    %236 = arith.negf %235 : vector<2x128xf32>
    %237 = math.exp %236 : vector<2x128xf32>
    %cst_44 = arith.constant 1.000000e+00 : f32
    %238 = vector.broadcast %cst_44 : f32 to vector<2x128xf32>
    %239 = arith.addf %238, %237 : vector<2x128xf32>
    %240 = arith.divf %238, %239 : vector<2x128xf32>
    %241 = vector.extract_strided_slice %235 {offsets = [0, 64], sizes = [2, 32], strides = [1, 1]} : vector<2x128xf32> to vector<2x32xf32>
    %242 = math.tanh %241 : vector<2x32xf32>
    %243 = vector.extract_strided_slice %240 {offsets = [0, 0], sizes = [2, 32], strides = [1, 1]} : vector<2x128xf32> to vector<2x32xf32>
    %244 = vector.extract_strided_slice %240 {offsets = [0, 32], sizes = [2, 32], strides = [1, 1]} : vector<2x128xf32> to vector<2x32xf32>
    %245 = vector.extract_strided_slice %240 {offsets = [0, 96], sizes = [2, 32], strides = [1, 1]} : vector<2x128xf32> to vector<2x32xf32>
    %246 = arith.mulf %244, %208 : vector<2x32xf32>
    %247 = arith.mulf %243, %242 : vector<2x32xf32>
    %248 = arith.addf %246, %247 : vector<2x32xf32>
    %249 = math.tanh %248 : vector<2x32xf32>
    %250 = arith.mulf %245, %249 : vector<2x32xf32>
    %251 = arith.truncf %229 : vector<2x32xf32> to vector<2x32xbf16>
    %cst_45 = arith.constant dense<0.000000e+00> : vector<2x128xf32>
    %252 = tpu.matmul %251, %1, %cst_45 {dimension_numbers = #tpu.dot_dimension_numbers<[1], [0], [0], [1], [0, 0, 1, 1], [], []>} : vector<2x32xbf16>, vector<32x128xbf16>, vector<2x128xf32> -> vector<2x128xf32>
    %253 = arith.addf %42, %252 : vector<2x128xf32>
    %254 = arith.addf %253, %6 : vector<2x128xf32>
    %255 = arith.negf %254 : vector<2x128xf32>
    %256 = math.exp %255 : vector<2x128xf32>
    %cst_46 = arith.constant 1.000000e+00 : f32
    %257 = vector.broadcast %cst_46 : f32 to vector<2x128xf32>
    %258 = arith.addf %257, %256 : vector<2x128xf32>
    %259 = arith.divf %257, %258 : vector<2x128xf32>
    %260 = vector.extract_strided_slice %254 {offsets = [0, 64], sizes = [2, 32], strides = [1, 1]} : vector<2x128xf32> to vector<2x32xf32>
    %261 = math.tanh %260 : vector<2x32xf32>
    %262 = vector.extract_strided_slice %259 {offsets = [0, 0], sizes = [2, 32], strides = [1, 1]} : vector<2x128xf32> to vector<2x32xf32>
    %263 = vector.extract_strided_slice %259 {offsets = [0, 32], sizes = [2, 32], strides = [1, 1]} : vector<2x128xf32> to vector<2x32xf32>
    %264 = vector.extract_strided_slice %259 {offsets = [0, 96], sizes = [2, 32], strides = [1, 1]} : vector<2x128xf32> to vector<2x32xf32>
    %265 = arith.mulf %263, %227 : vector<2x32xf32>
    %266 = arith.mulf %262, %261 : vector<2x32xf32>
    %267 = arith.addf %265, %266 : vector<2x32xf32>
    %268 = math.tanh %267 : vector<2x32xf32>
    %269 = arith.mulf %264, %268 : vector<2x32xf32>
    %270 = arith.truncf %269 : vector<2x32xf32> to vector<2x32xbf16>
    %cst_47 = arith.constant dense<0.000000e+00> : vector<2x128xf32>
    %271 = tpu.matmul %270, %2, %cst_47 {dimension_numbers = #tpu.dot_dimension_numbers<[1], [0], [0], [1], [0, 0, 1, 1], [], []>} : vector<2x32xbf16>, vector<32x128xbf16>, vector<2x128xf32> -> vector<2x128xf32>
    %272 = arith.truncf %250 : vector<2x32xf32> to vector<2x32xbf16>
    %cst_48 = arith.constant dense<0.000000e+00> : vector<2x128xf32>
    %273 = tpu.matmul %272, %3, %cst_48 {dimension_numbers = #tpu.dot_dimension_numbers<[1], [0], [0], [1], [0, 0, 1, 1], [], []>} : vector<2x32xbf16>, vector<32x128xbf16>, vector<2x128xf32> -> vector<2x128xf32>
    %274 = arith.addf %271, %273 : vector<2x128xf32>
    %275 = arith.addf %274, %9 : vector<2x128xf32>
    %276 = arith.negf %275 : vector<2x128xf32>
    %277 = math.exp %276 : vector<2x128xf32>
    %cst_49 = arith.constant 1.000000e+00 : f32
    %278 = vector.broadcast %cst_49 : f32 to vector<2x128xf32>
    %279 = arith.addf %278, %277 : vector<2x128xf32>
    %280 = arith.divf %278, %279 : vector<2x128xf32>
    %281 = vector.extract_strided_slice %275 {offsets = [0, 64], sizes = [2, 32], strides = [1, 1]} : vector<2x128xf32> to vector<2x32xf32>
    %282 = math.tanh %281 : vector<2x32xf32>
    %283 = vector.extract_strided_slice %280 {offsets = [0, 0], sizes = [2, 32], strides = [1, 1]} : vector<2x128xf32> to vector<2x32xf32>
    %284 = vector.extract_strided_slice %280 {offsets = [0, 32], sizes = [2, 32], strides = [1, 1]} : vector<2x128xf32> to vector<2x32xf32>
    %285 = vector.extract_strided_slice %280 {offsets = [0, 96], sizes = [2, 32], strides = [1, 1]} : vector<2x128xf32> to vector<2x32xf32>
    %286 = arith.mulf %284, %248 : vector<2x32xf32>
    %287 = arith.mulf %283, %282 : vector<2x32xf32>
    %288 = arith.addf %286, %287 : vector<2x32xf32>
    %289 = math.tanh %288 : vector<2x32xf32>
    %290 = arith.mulf %285, %289 : vector<2x32xf32>
    %291 = arith.truncf %269 : vector<2x32xf32> to vector<2x32xbf16>
    %cst_50 = arith.constant dense<0.000000e+00> : vector<2x128xf32>
    %292 = tpu.matmul %291, %1, %cst_50 {dimension_numbers = #tpu.dot_dimension_numbers<[1], [0], [0], [1], [0, 0, 1, 1], [], []>} : vector<2x32xbf16>, vector<32x128xbf16>, vector<2x128xf32> -> vector<2x128xf32>
    %293 = arith.addf %46, %292 : vector<2x128xf32>
    %294 = arith.addf %293, %6 : vector<2x128xf32>
    %295 = arith.negf %294 : vector<2x128xf32>
    %296 = math.exp %295 : vector<2x128xf32>
    %cst_51 = arith.constant 1.000000e+00 : f32
    %297 = vector.broadcast %cst_51 : f32 to vector<2x128xf32>
    %298 = arith.addf %297, %296 : vector<2x128xf32>
    %299 = arith.divf %297, %298 : vector<2x128xf32>
    %300 = vector.extract_strided_slice %294 {offsets = [0, 64], sizes = [2, 32], strides = [1, 1]} : vector<2x128xf32> to vector<2x32xf32>
    %301 = math.tanh %300 : vector<2x32xf32>
    %302 = vector.extract_strided_slice %299 {offsets = [0, 0], sizes = [2, 32], strides = [1, 1]} : vector<2x128xf32> to vector<2x32xf32>
    %303 = vector.extract_strided_slice %299 {offsets = [0, 32], sizes = [2, 32], strides = [1, 1]} : vector<2x128xf32> to vector<2x32xf32>
    %304 = vector.extract_strided_slice %299 {offsets = [0, 96], sizes = [2, 32], strides = [1, 1]} : vector<2x128xf32> to vector<2x32xf32>
    %305 = arith.mulf %303, %267 : vector<2x32xf32>
    %306 = arith.mulf %302, %301 : vector<2x32xf32>
    %307 = arith.addf %305, %306 : vector<2x32xf32>
    %308 = math.tanh %307 : vector<2x32xf32>
    %309 = arith.mulf %304, %308 : vector<2x32xf32>
    %310 = arith.truncf %309 : vector<2x32xf32> to vector<2x32xbf16>
    %cst_52 = arith.constant dense<0.000000e+00> : vector<2x128xf32>
    %311 = tpu.matmul %310, %2, %cst_52 {dimension_numbers = #tpu.dot_dimension_numbers<[1], [0], [0], [1], [0, 0, 1, 1], [], []>} : vector<2x32xbf16>, vector<32x128xbf16>, vector<2x128xf32> -> vector<2x128xf32>
    %312 = arith.truncf %290 : vector<2x32xf32> to vector<2x32xbf16>
    %cst_53 = arith.constant dense<0.000000e+00> : vector<2x128xf32>
    %313 = tpu.matmul %312, %3, %cst_53 {dimension_numbers = #tpu.dot_dimension_numbers<[1], [0], [0], [1], [0, 0, 1, 1], [], []>} : vector<2x32xbf16>, vector<32x128xbf16>, vector<2x128xf32> -> vector<2x128xf32>
    %314 = arith.addf %311, %313 : vector<2x128xf32>
    %315 = arith.addf %314, %9 : vector<2x128xf32>
    %316 = arith.negf %315 : vector<2x128xf32>
    %317 = math.exp %316 : vector<2x128xf32>
    %cst_54 = arith.constant 1.000000e+00 : f32
    %318 = vector.broadcast %cst_54 : f32 to vector<2x128xf32>
    %319 = arith.addf %318, %317 : vector<2x128xf32>
    %320 = arith.divf %318, %319 : vector<2x128xf32>
    %321 = vector.extract_strided_slice %315 {offsets = [0, 64], sizes = [2, 32], strides = [1, 1]} : vector<2x128xf32> to vector<2x32xf32>
    %322 = math.tanh %321 : vector<2x32xf32>
    %323 = vector.extract_strided_slice %320 {offsets = [0, 0], sizes = [2, 32], strides = [1, 1]} : vector<2x128xf32> to vector<2x32xf32>
    %324 = vector.extract_strided_slice %320 {offsets = [0, 32], sizes = [2, 32], strides = [1, 1]} : vector<2x128xf32> to vector<2x32xf32>
    %325 = vector.extract_strided_slice %320 {offsets = [0, 96], sizes = [2, 32], strides = [1, 1]} : vector<2x128xf32> to vector<2x32xf32>
    %326 = arith.mulf %324, %288 : vector<2x32xf32>
    %327 = arith.mulf %323, %322 : vector<2x32xf32>
    %328 = arith.addf %326, %327 : vector<2x32xf32>
    %329 = math.tanh %328 : vector<2x32xf32>
    %330 = arith.mulf %325, %329 : vector<2x32xf32>
    %331 = arith.truncf %309 : vector<2x32xf32> to vector<2x32xbf16>
    %cst_55 = arith.constant dense<0.000000e+00> : vector<2x128xf32>
    %332 = tpu.matmul %331, %1, %cst_55 {dimension_numbers = #tpu.dot_dimension_numbers<[1], [0], [0], [1], [0, 0, 1, 1], [], []>} : vector<2x32xbf16>, vector<32x128xbf16>, vector<2x128xf32> -> vector<2x128xf32>
    %333 = arith.addf %50, %332 : vector<2x128xf32>
    %334 = arith.addf %333, %6 : vector<2x128xf32>
    %335 = arith.negf %334 : vector<2x128xf32>
    %336 = math.exp %335 : vector<2x128xf32>
    %cst_56 = arith.constant 1.000000e+00 : f32
    %337 = vector.broadcast %cst_56 : f32 to vector<2x128xf32>
    %338 = arith.addf %337, %336 : vector<2x128xf32>
    %339 = arith.divf %337, %338 : vector<2x128xf32>
    %340 = vector.extract_strided_slice %334 {offsets = [0, 64], sizes = [2, 32], strides = [1, 1]} : vector<2x128xf32> to vector<2x32xf32>
    %341 = math.tanh %340 : vector<2x32xf32>
    %342 = vector.extract_strided_slice %339 {offsets = [0, 0], sizes = [2, 32], strides = [1, 1]} : vector<2x128xf32> to vector<2x32xf32>
    %343 = vector.extract_strided_slice %339 {offsets = [0, 32], sizes = [2, 32], strides = [1, 1]} : vector<2x128xf32> to vector<2x32xf32>
    %344 = vector.extract_strided_slice %339 {offsets = [0, 96], sizes = [2, 32], strides = [1, 1]} : vector<2x128xf32> to vector<2x32xf32>
    %345 = arith.mulf %343, %307 : vector<2x32xf32>
    %346 = arith.mulf %342, %341 : vector<2x32xf32>
    %347 = arith.addf %345, %346 : vector<2x32xf32>
    %348 = math.tanh %347 : vector<2x32xf32>
    %349 = arith.mulf %344, %348 : vector<2x32xf32>
    %350 = arith.truncf %349 : vector<2x32xf32> to vector<2x32xbf16>
    %cst_57 = arith.constant dense<0.000000e+00> : vector<2x128xf32>
    %351 = tpu.matmul %350, %2, %cst_57 {dimension_numbers = #tpu.dot_dimension_numbers<[1], [0], [0], [1], [0, 0, 1, 1], [], []>} : vector<2x32xbf16>, vector<32x128xbf16>, vector<2x128xf32> -> vector<2x128xf32>
    %352 = arith.truncf %330 : vector<2x32xf32> to vector<2x32xbf16>
    %cst_58 = arith.constant dense<0.000000e+00> : vector<2x128xf32>
    %353 = tpu.matmul %352, %3, %cst_58 {dimension_numbers = #tpu.dot_dimension_numbers<[1], [0], [0], [1], [0, 0, 1, 1], [], []>} : vector<2x32xbf16>, vector<32x128xbf16>, vector<2x128xf32> -> vector<2x128xf32>
    %354 = arith.addf %351, %353 : vector<2x128xf32>
    %355 = arith.addf %354, %9 : vector<2x128xf32>
    %356 = arith.negf %355 : vector<2x128xf32>
    %357 = math.exp %356 : vector<2x128xf32>
    %cst_59 = arith.constant 1.000000e+00 : f32
    %358 = vector.broadcast %cst_59 : f32 to vector<2x128xf32>
    %359 = arith.addf %358, %357 : vector<2x128xf32>
    %360 = arith.divf %358, %359 : vector<2x128xf32>
    %361 = vector.extract_strided_slice %355 {offsets = [0, 64], sizes = [2, 32], strides = [1, 1]} : vector<2x128xf32> to vector<2x32xf32>
    %362 = math.tanh %361 : vector<2x32xf32>
    %363 = vector.extract_strided_slice %360 {offsets = [0, 0], sizes = [2, 32], strides = [1, 1]} : vector<2x128xf32> to vector<2x32xf32>
    %364 = vector.extract_strided_slice %360 {offsets = [0, 32], sizes = [2, 32], strides = [1, 1]} : vector<2x128xf32> to vector<2x32xf32>
    %365 = vector.extract_strided_slice %360 {offsets = [0, 96], sizes = [2, 32], strides = [1, 1]} : vector<2x128xf32> to vector<2x32xf32>
    %366 = arith.mulf %364, %328 : vector<2x32xf32>
    %367 = arith.mulf %363, %362 : vector<2x32xf32>
    %368 = arith.addf %366, %367 : vector<2x32xf32>
    %369 = math.tanh %368 : vector<2x32xf32>
    %370 = arith.mulf %365, %369 : vector<2x32xf32>
    %371 = arith.truncf %370 : vector<2x32xf32> to vector<2x32xbf16>
    %cst_60 = arith.constant dense<0.000000e+00> : vector<2x128xf32>
    %372 = tpu.matmul %371, %10, %cst_60 {dimension_numbers = #tpu.dot_dimension_numbers<[1], [0], [0], [1], [0, 0, 1, 1], [], []>} : vector<2x32xbf16>, vector<32x128xbf16>, vector<2x128xf32> -> vector<2x128xf32>
    %373 = arith.truncf %349 : vector<2x32xf32> to vector<2x32xbf16>
    %cst_61 = arith.constant dense<0.000000e+00> : vector<2x128xf32>
    %374 = tpu.matmul %373, %1, %cst_61 {dimension_numbers = #tpu.dot_dimension_numbers<[1], [0], [0], [1], [0, 0, 1, 1], [], []>} : vector<2x32xbf16>, vector<32x128xbf16>, vector<2x128xf32> -> vector<2x128xf32>
    %375 = arith.addf %372, %374 : vector<2x128xf32>
    %376 = arith.addf %375, %13 : vector<2x128xf32>
    %377 = arith.negf %376 : vector<2x128xf32>
    %378 = math.exp %377 : vector<2x128xf32>
    %cst_62 = arith.constant 1.000000e+00 : f32
    %379 = vector.broadcast %cst_62 : f32 to vector<2x128xf32>
    %380 = arith.addf %379, %378 : vector<2x128xf32>
    %381 = arith.divf %379, %380 : vector<2x128xf32>
    %382 = vector.extract_strided_slice %376 {offsets = [0, 64], sizes = [2, 32], strides = [1, 1]} : vector<2x128xf32> to vector<2x32xf32>
    %383 = math.tanh %382 : vector<2x32xf32>
    %384 = vector.extract_strided_slice %381 {offsets = [0, 0], sizes = [2, 32], strides = [1, 1]} : vector<2x128xf32> to vector<2x32xf32>
    %385 = vector.extract_strided_slice %381 {offsets = [0, 32], sizes = [2, 32], strides = [1, 1]} : vector<2x128xf32> to vector<2x32xf32>
    %386 = vector.extract_strided_slice %381 {offsets = [0, 96], sizes = [2, 32], strides = [1, 1]} : vector<2x128xf32> to vector<2x32xf32>
    %387 = arith.mulf %385, %347 : vector<2x32xf32>
    %388 = arith.mulf %384, %383 : vector<2x32xf32>
    %389 = arith.addf %387, %388 : vector<2x32xf32>
    %390 = math.tanh %389 : vector<2x32xf32>
    %391 = arith.mulf %386, %390 : vector<2x32xf32>
    %392 = arith.truncf %391 : vector<2x32xf32> to vector<2x32xbf16>
    %cst_63 = arith.constant dense<0.000000e+00> : vector<2x128xf32>
    %393 = tpu.matmul %392, %2, %cst_63 {dimension_numbers = #tpu.dot_dimension_numbers<[1], [0], [0], [1], [0, 0, 1, 1], [], []>} : vector<2x32xbf16>, vector<32x128xbf16>, vector<2x128xf32> -> vector<2x128xf32>
    %394 = arith.truncf %370 : vector<2x32xf32> to vector<2x32xbf16>
    %cst_64 = arith.constant dense<0.000000e+00> : vector<2x128xf32>
    %395 = tpu.matmul %394, %3, %cst_64 {dimension_numbers = #tpu.dot_dimension_numbers<[1], [0], [0], [1], [0, 0, 1, 1], [], []>} : vector<2x32xbf16>, vector<32x128xbf16>, vector<2x128xf32> -> vector<2x128xf32>
    %396 = arith.addf %393, %395 : vector<2x128xf32>
    %397 = arith.addf %396, %9 : vector<2x128xf32>
    %398 = arith.negf %397 : vector<2x128xf32>
    %399 = math.exp %398 : vector<2x128xf32>
    %cst_65 = arith.constant 1.000000e+00 : f32
    %400 = vector.broadcast %cst_65 : f32 to vector<2x128xf32>
    %401 = arith.addf %400, %399 : vector<2x128xf32>
    %402 = arith.divf %400, %401 : vector<2x128xf32>
    %403 = vector.extract_strided_slice %397 {offsets = [0, 64], sizes = [2, 32], strides = [1, 1]} : vector<2x128xf32> to vector<2x32xf32>
    %404 = math.tanh %403 : vector<2x32xf32>
    %405 = vector.extract_strided_slice %402 {offsets = [0, 0], sizes = [2, 32], strides = [1, 1]} : vector<2x128xf32> to vector<2x32xf32>
    %406 = vector.extract_strided_slice %402 {offsets = [0, 32], sizes = [2, 32], strides = [1, 1]} : vector<2x128xf32> to vector<2x32xf32>
    %407 = vector.extract_strided_slice %402 {offsets = [0, 96], sizes = [2, 32], strides = [1, 1]} : vector<2x128xf32> to vector<2x32xf32>
    %408 = arith.mulf %406, %368 : vector<2x32xf32>
    %409 = arith.mulf %405, %404 : vector<2x32xf32>
    %410 = arith.addf %408, %409 : vector<2x32xf32>
    %411 = math.tanh %410 : vector<2x32xf32>
    %412 = arith.mulf %407, %411 : vector<2x32xf32>
    %413 = arith.truncf %412 : vector<2x32xf32> to vector<2x32xbf16>
    %cst_66 = arith.constant dense<0.000000e+00> : vector<2x128xf32>
    %414 = tpu.matmul %413, %10, %cst_66 {dimension_numbers = #tpu.dot_dimension_numbers<[1], [0], [0], [1], [0, 0, 1, 1], [], []>} : vector<2x32xbf16>, vector<32x128xbf16>, vector<2x128xf32> -> vector<2x128xf32>
    %415 = arith.truncf %391 : vector<2x32xf32> to vector<2x32xbf16>
    %cst_67 = arith.constant dense<0.000000e+00> : vector<2x128xf32>
    %416 = tpu.matmul %415, %1, %cst_67 {dimension_numbers = #tpu.dot_dimension_numbers<[1], [0], [0], [1], [0, 0, 1, 1], [], []>} : vector<2x32xbf16>, vector<32x128xbf16>, vector<2x128xf32> -> vector<2x128xf32>
    %417 = arith.addf %414, %416 : vector<2x128xf32>
    %418 = arith.addf %417, %13 : vector<2x128xf32>
    %419 = arith.negf %418 : vector<2x128xf32>
    %420 = math.exp %419 : vector<2x128xf32>
    %cst_68 = arith.constant 1.000000e+00 : f32
    %421 = vector.broadcast %cst_68 : f32 to vector<2x128xf32>
    %422 = arith.addf %421, %420 : vector<2x128xf32>
    %423 = arith.divf %421, %422 : vector<2x128xf32>
    %424 = vector.extract_strided_slice %418 {offsets = [0, 64], sizes = [2, 32], strides = [1, 1]} : vector<2x128xf32> to vector<2x32xf32>
    %425 = math.tanh %424 : vector<2x32xf32>
    %426 = vector.extract_strided_slice %423 {offsets = [0, 0], sizes = [2, 32], strides = [1, 1]} : vector<2x128xf32> to vector<2x32xf32>
    %427 = vector.extract_strided_slice %423 {offsets = [0, 32], sizes = [2, 32], strides = [1, 1]} : vector<2x128xf32> to vector<2x32xf32>
    %428 = vector.extract_strided_slice %423 {offsets = [0, 96], sizes = [2, 32], strides = [1, 1]} : vector<2x128xf32> to vector<2x32xf32>
    %429 = arith.mulf %427, %389 : vector<2x32xf32>
    %430 = arith.mulf %426, %425 : vector<2x32xf32>
    %431 = arith.addf %429, %430 : vector<2x32xf32>
    %432 = math.tanh %431 : vector<2x32xf32>
    %433 = arith.mulf %428, %432 : vector<2x32xf32>
    %434 = arith.truncf %433 : vector<2x32xf32> to vector<2x32xbf16>
    %cst_69 = arith.constant dense<0.000000e+00> : vector<2x128xf32>
    %435 = tpu.matmul %434, %2, %cst_69 {dimension_numbers = #tpu.dot_dimension_numbers<[1], [0], [0], [1], [0, 0, 1, 1], [], []>} : vector<2x32xbf16>, vector<32x128xbf16>, vector<2x128xf32> -> vector<2x128xf32>
    %436 = arith.truncf %412 : vector<2x32xf32> to vector<2x32xbf16>
    %cst_70 = arith.constant dense<0.000000e+00> : vector<2x128xf32>
    %437 = tpu.matmul %436, %3, %cst_70 {dimension_numbers = #tpu.dot_dimension_numbers<[1], [0], [0], [1], [0, 0, 1, 1], [], []>} : vector<2x32xbf16>, vector<32x128xbf16>, vector<2x128xf32> -> vector<2x128xf32>
    %438 = arith.addf %435, %437 : vector<2x128xf32>
    %439 = arith.addf %438, %9 : vector<2x128xf32>
    %440 = arith.negf %439 : vector<2x128xf32>
    %441 = math.exp %440 : vector<2x128xf32>
    %cst_71 = arith.constant 1.000000e+00 : f32
    %442 = vector.broadcast %cst_71 : f32 to vector<2x128xf32>
    %443 = arith.addf %442, %441 : vector<2x128xf32>
    %444 = arith.divf %442, %443 : vector<2x128xf32>
    %445 = vector.extract_strided_slice %439 {offsets = [0, 64], sizes = [2, 32], strides = [1, 1]} : vector<2x128xf32> to vector<2x32xf32>
    %446 = math.tanh %445 : vector<2x32xf32>
    %447 = vector.extract_strided_slice %444 {offsets = [0, 0], sizes = [2, 32], strides = [1, 1]} : vector<2x128xf32> to vector<2x32xf32>
    %448 = vector.extract_strided_slice %444 {offsets = [0, 32], sizes = [2, 32], strides = [1, 1]} : vector<2x128xf32> to vector<2x32xf32>
    %449 = vector.extract_strided_slice %444 {offsets = [0, 96], sizes = [2, 32], strides = [1, 1]} : vector<2x128xf32> to vector<2x32xf32>
    %450 = arith.mulf %448, %410 : vector<2x32xf32>
    %451 = arith.mulf %447, %446 : vector<2x32xf32>
    %452 = arith.addf %450, %451 : vector<2x32xf32>
    %453 = math.tanh %452 : vector<2x32xf32>
    %454 = arith.mulf %449, %453 : vector<2x32xf32>
    %455 = arith.truncf %454 : vector<2x32xf32> to vector<2x32xbf16>
    %cst_72 = arith.constant dense<0.000000e+00> : vector<2x128xf32>
    %456 = tpu.matmul %455, %10, %cst_72 {dimension_numbers = #tpu.dot_dimension_numbers<[1], [0], [0], [1], [0, 0, 1, 1], [], []>} : vector<2x32xbf16>, vector<32x128xbf16>, vector<2x128xf32> -> vector<2x128xf32>
    %457 = arith.truncf %433 : vector<2x32xf32> to vector<2x32xbf16>
    %cst_73 = arith.constant dense<0.000000e+00> : vector<2x128xf32>
    %458 = tpu.matmul %457, %1, %cst_73 {dimension_numbers = #tpu.dot_dimension_numbers<[1], [0], [0], [1], [0, 0, 1, 1], [], []>} : vector<2x32xbf16>, vector<32x128xbf16>, vector<2x128xf32> -> vector<2x128xf32>
    %459 = arith.addf %456, %458 : vector<2x128xf32>
    %460 = arith.addf %459, %13 : vector<2x128xf32>
    %461 = arith.negf %460 : vector<2x128xf32>
    %462 = math.exp %461 : vector<2x128xf32>
    %cst_74 = arith.constant 1.000000e+00 : f32
    %463 = vector.broadcast %cst_74 : f32 to vector<2x128xf32>
    %464 = arith.addf %463, %462 : vector<2x128xf32>
    %465 = arith.divf %463, %464 : vector<2x128xf32>
    %466 = vector.extract_strided_slice %460 {offsets = [0, 64], sizes = [2, 32], strides = [1, 1]} : vector<2x128xf32> to vector<2x32xf32>
    %467 = math.tanh %466 : vector<2x32xf32>
    %468 = vector.extract_strided_slice %465 {offsets = [0, 0], sizes = [2, 32], strides = [1, 1]} : vector<2x128xf32> to vector<2x32xf32>
    %469 = vector.extract_strided_slice %465 {offsets = [0, 32], sizes = [2, 32], strides = [1, 1]} : vector<2x128xf32> to vector<2x32xf32>
    %470 = vector.extract_strided_slice %465 {offsets = [0, 96], sizes = [2, 32], strides = [1, 1]} : vector<2x128xf32> to vector<2x32xf32>
    %471 = arith.mulf %469, %431 : vector<2x32xf32>
    %472 = arith.mulf %468, %467 : vector<2x32xf32>
    %473 = arith.addf %471, %472 : vector<2x32xf32>
    %474 = math.tanh %473 : vector<2x32xf32>
    %475 = arith.mulf %470, %474 : vector<2x32xf32>
    %476 = arith.truncf %475 : vector<2x32xf32> to vector<2x32xbf16>
    %cst_75 = arith.constant dense<0.000000e+00> : vector<2x128xf32>
    %477 = tpu.matmul %476, %2, %cst_75 {dimension_numbers = #tpu.dot_dimension_numbers<[1], [0], [0], [1], [0, 0, 1, 1], [], []>} : vector<2x32xbf16>, vector<32x128xbf16>, vector<2x128xf32> -> vector<2x128xf32>
    %478 = arith.truncf %454 : vector<2x32xf32> to vector<2x32xbf16>
    %cst_76 = arith.constant dense<0.000000e+00> : vector<2x128xf32>
    %479 = tpu.matmul %478, %3, %cst_76 {dimension_numbers = #tpu.dot_dimension_numbers<[1], [0], [0], [1], [0, 0, 1, 1], [], []>} : vector<2x32xbf16>, vector<32x128xbf16>, vector<2x128xf32> -> vector<2x128xf32>
    %480 = arith.addf %477, %479 : vector<2x128xf32>
    %481 = arith.addf %480, %9 : vector<2x128xf32>
    %482 = arith.negf %481 : vector<2x128xf32>
    %483 = math.exp %482 : vector<2x128xf32>
    %cst_77 = arith.constant 1.000000e+00 : f32
    %484 = vector.broadcast %cst_77 : f32 to vector<2x128xf32>
    %485 = arith.addf %484, %483 : vector<2x128xf32>
    %486 = arith.divf %484, %485 : vector<2x128xf32>
    %487 = vector.extract_strided_slice %481 {offsets = [0, 64], sizes = [2, 32], strides = [1, 1]} : vector<2x128xf32> to vector<2x32xf32>
    %488 = math.tanh %487 : vector<2x32xf32>
    %489 = vector.extract_strided_slice %486 {offsets = [0, 0], sizes = [2, 32], strides = [1, 1]} : vector<2x128xf32> to vector<2x32xf32>
    %490 = vector.extract_strided_slice %486 {offsets = [0, 32], sizes = [2, 32], strides = [1, 1]} : vector<2x128xf32> to vector<2x32xf32>
    %491 = vector.extract_strided_slice %486 {offsets = [0, 96], sizes = [2, 32], strides = [1, 1]} : vector<2x128xf32> to vector<2x32xf32>
    %492 = arith.mulf %490, %452 : vector<2x32xf32>
    %493 = arith.mulf %489, %488 : vector<2x32xf32>
    %494 = arith.addf %492, %493 : vector<2x32xf32>
    %495 = math.tanh %494 : vector<2x32xf32>
    %496 = arith.mulf %491, %495 : vector<2x32xf32>
    %497 = arith.truncf %496 : vector<2x32xf32> to vector<2x32xbf16>
    %cst_78 = arith.constant dense<0.000000e+00> : vector<2x128xf32>
    %498 = tpu.matmul %497, %10, %cst_78 {dimension_numbers = #tpu.dot_dimension_numbers<[1], [0], [0], [1], [0, 0, 1, 1], [], []>} : vector<2x32xbf16>, vector<32x128xbf16>, vector<2x128xf32> -> vector<2x128xf32>
    %499 = arith.truncf %475 : vector<2x32xf32> to vector<2x32xbf16>
    %cst_79 = arith.constant dense<0.000000e+00> : vector<2x128xf32>
    %500 = tpu.matmul %499, %1, %cst_79 {dimension_numbers = #tpu.dot_dimension_numbers<[1], [0], [0], [1], [0, 0, 1, 1], [], []>} : vector<2x32xbf16>, vector<32x128xbf16>, vector<2x128xf32> -> vector<2x128xf32>
    %501 = arith.addf %498, %500 : vector<2x128xf32>
    %502 = arith.addf %501, %13 : vector<2x128xf32>
    %503 = arith.negf %502 : vector<2x128xf32>
    %504 = math.exp %503 : vector<2x128xf32>
    %cst_80 = arith.constant 1.000000e+00 : f32
    %505 = vector.broadcast %cst_80 : f32 to vector<2x128xf32>
    %506 = arith.addf %505, %504 : vector<2x128xf32>
    %507 = arith.divf %505, %506 : vector<2x128xf32>
    %508 = vector.extract_strided_slice %502 {offsets = [0, 64], sizes = [2, 32], strides = [1, 1]} : vector<2x128xf32> to vector<2x32xf32>
    %509 = math.tanh %508 : vector<2x32xf32>
    %510 = vector.extract_strided_slice %507 {offsets = [0, 0], sizes = [2, 32], strides = [1, 1]} : vector<2x128xf32> to vector<2x32xf32>
    %511 = vector.extract_strided_slice %507 {offsets = [0, 32], sizes = [2, 32], strides = [1, 1]} : vector<2x128xf32> to vector<2x32xf32>
    %512 = vector.extract_strided_slice %507 {offsets = [0, 96], sizes = [2, 32], strides = [1, 1]} : vector<2x128xf32> to vector<2x32xf32>
    %513 = arith.mulf %511, %473 : vector<2x32xf32>
    %514 = arith.mulf %510, %509 : vector<2x32xf32>
    %515 = arith.addf %513, %514 : vector<2x32xf32>
    %516 = math.tanh %515 : vector<2x32xf32>
    %517 = arith.mulf %512, %516 : vector<2x32xf32>
    %518 = arith.truncf %517 : vector<2x32xf32> to vector<2x32xbf16>
    %cst_81 = arith.constant dense<0.000000e+00> : vector<2x128xf32>
    %519 = tpu.matmul %518, %2, %cst_81 {dimension_numbers = #tpu.dot_dimension_numbers<[1], [0], [0], [1], [0, 0, 1, 1], [], []>} : vector<2x32xbf16>, vector<32x128xbf16>, vector<2x128xf32> -> vector<2x128xf32>
    %520 = arith.truncf %496 : vector<2x32xf32> to vector<2x32xbf16>
    %cst_82 = arith.constant dense<0.000000e+00> : vector<2x128xf32>
    %521 = tpu.matmul %520, %3, %cst_82 {dimension_numbers = #tpu.dot_dimension_numbers<[1], [0], [0], [1], [0, 0, 1, 1], [], []>} : vector<2x32xbf16>, vector<32x128xbf16>, vector<2x128xf32> -> vector<2x128xf32>
    %522 = arith.addf %519, %521 : vector<2x128xf32>
    %523 = arith.addf %522, %9 : vector<2x128xf32>
    %524 = arith.negf %523 : vector<2x128xf32>
    %525 = math.exp %524 : vector<2x128xf32>
    %cst_83 = arith.constant 1.000000e+00 : f32
    %526 = vector.broadcast %cst_83 : f32 to vector<2x128xf32>
    %527 = arith.addf %526, %525 : vector<2x128xf32>
    %528 = arith.divf %526, %527 : vector<2x128xf32>
    %529 = vector.extract_strided_slice %523 {offsets = [0, 64], sizes = [2, 32], strides = [1, 1]} : vector<2x128xf32> to vector<2x32xf32>
    %530 = math.tanh %529 : vector<2x32xf32>
    %531 = vector.extract_strided_slice %528 {offsets = [0, 0], sizes = [2, 32], strides = [1, 1]} : vector<2x128xf32> to vector<2x32xf32>
    %532 = vector.extract_strided_slice %528 {offsets = [0, 32], sizes = [2, 32], strides = [1, 1]} : vector<2x128xf32> to vector<2x32xf32>
    %533 = vector.extract_strided_slice %528 {offsets = [0, 96], sizes = [2, 32], strides = [1, 1]} : vector<2x128xf32> to vector<2x32xf32>
    %534 = arith.mulf %532, %494 : vector<2x32xf32>
    %535 = arith.mulf %531, %530 : vector<2x32xf32>
    %536 = arith.addf %534, %535 : vector<2x32xf32>
    %537 = math.tanh %536 : vector<2x32xf32>
    %538 = arith.mulf %533, %537 : vector<2x32xf32>
    %539 = tpu.concatenate %90, %130, %170, %210, %250, %290, %330, %370, %412, %454, %496, %538 in 1 : vector<2x32xf32>, vector<2x32xf32>, vector<2x32xf32>, vector<2x32xf32>, vector<2x32xf32>, vector<2x32xf32>, vector<2x32xf32>, vector<2x32xf32>, vector<2x32xf32>, vector<2x32xf32>, vector<2x32xf32>, vector<2x32xf32> -> vector<2x384xf32>
    %c0_84 = arith.constant 0 : index
    %c0_85 = arith.constant 0 : index
    %540 = vector.load %arg9[%c0_84, %c0_85] : memref<384x12xf32, #tpu.memory_space<vmem>>, vector<384x12xf32>
    %cst_86 = arith.constant dense<0.000000e+00> : vector<2x12xf32>
    %541 = tpu.matmul %539, %540, %cst_86 {dimension_numbers = #tpu.dot_dimension_numbers<[1], [0], [0], [1], [0, 0, 1, 1], [], []>} : vector<2x384xf32>, vector<384x12xf32>, vector<2x12xf32> -> vector<2x12xf32>
    %c0_87 = arith.constant 0 : index
    %c0_88 = arith.constant 0 : index
    %542 = vector.load %arg10[%c0_87, %c0_88] : memref<1x12xf32, #tpu.memory_space<vmem>>, vector<1x12xf32>
    %543 = vector.broadcast %542 : vector<1x12xf32> to vector<2x12xf32>
    %544 = arith.addf %541, %543 : vector<2x12xf32>
    %c0_89 = arith.constant 0 : index
    %c0_90 = arith.constant 0 : index
    %545 = vector.load %arg11[%c0_89, %c0_90] : memref<2x12xf32, #tpu.memory_space<vmem>>, vector<2x12xf32>
    tpu.vector_store %arg11[%c0_89, %c0_90], %544 {strides = array<i32>} : memref<2x12xf32, #tpu.memory_space<vmem>>, vector<2x12xf32>,
    return
  }
}

</mosaic_0001>

<llo_original>
// kernel: tpu_custom_call.1
$region0: #{tpu_custom_call.1}
  #allocation0 [shape = 'u32[]', space=smem, size = 0x4, offset = 0x4, fixed_abs, tag = 'smem constant byte address 0x4 - core index']
  #allocation1 [shape = 'u32[144,128]{1,0:T(1,128)}', space=vmem, size = 0x12000, scoped, tag = 'internal scratch']
  %s0 = inlined_call_operand.vmem [shape: f32[2,8], index: 0, kind: input, shape index: {}]
  %s1 = inlined_call_operand.vmem [shape: f32[1,128], index: 1, kind: input, shape index: {}]
  %s2 = inlined_call_operand.vmem [shape: bf16[32,128], index: 2, kind: input, shape index: {}]
  %s3 = inlined_call_operand.vmem [shape: bf16[32,128], index: 3, kind: input, shape index: {}]
  %s4 = inlined_call_operand.vmem [shape: bf16[32,128], index: 4, kind: input, shape index: {}]
  %s5 = inlined_call_operand.vmem [shape: bf16[32,128], index: 5, kind: input, shape index: {}]
  %s6 = inlined_call_operand.vmem [shape: f32[1,128], index: 6, kind: input, shape index: {}]
  %s7 = inlined_call_operand.vmem [shape: f32[1,128], index: 7, kind: input, shape index: {}]
  %s8 = inlined_call_operand.vmem [shape: f32[1,128], index: 8, kind: input, shape index: {}]
  %s9 = inlined_call_operand.vmem [shape: f32[384,12], index: 9, kind: input, shape index: {}]
  %s10 = inlined_call_operand.vmem [shape: f32[1,12], index: 10, kind: input, shape index: {}]
  %s11 = inlined_call_operand.hbm [shape: f32[2,12], index: 11, kind: output, shape index: {}]
  %s12 = sld [smem:[#allocation0]]
  $region54: #{tpu_custom_call.1} parent=0
    _
  %s14 = ssub.s32 1, %s12
  %s15 = scalar_select 0, %s14, %s12
  $region1: #{tpu_custom_call.1} parent=0
    #allocation2 [shape = 'u8[1024]{0}', space=vmem, size = 0x400, scoped, tag = 'output window, operand 0, single buffered']
    #allocation3 [shape = 's32[1]{0}', space=sflag, size = 0x4, scoped, tag = 'scoped memory for tpu_custom_call.1']
    %16 = vsyncpa [#allocation3], 0
    // Predicated region
    $region2: #{tpu_custom_call.1} parent=1 // pred_check
      _
    $region3: #{tpu_custom_call.1} parent=1 // pred_check_branch
      %18 = sbr.rel (0) target = $region5
    $region4: #{tpu_custom_call.1} parent=1 // pred_region
      _
    $region5: #{tpu_custom_call.1} parent=1 // pred_fallthru
      _
    // Predicated region
    $region6: #{tpu_custom_call.1} parent=1 // pred_check
      _
    $region7: #{tpu_custom_call.1} parent=1 // pred_check_branch
      %20 = sbr.rel (0) target = $region9
    $region8: #{tpu_custom_call.1} parent=1 // pred_region
      _
    $region9: #{tpu_custom_call.1} parent=1 // pred_fallthru
      _
    // Predicated region
    $region10: #{tpu_custom_call.1} parent=1 // pred_check
      _
    $region11: #{tpu_custom_call.1} parent=1 // pred_check_branch
      %22 = sbr.rel (0) target = $region13
    $region12: #{tpu_custom_call.1} parent=1 // pred_region
      _
    $region13: #{tpu_custom_call.1} parent=1 // pred_fallthru
      _
    // Predicated region
    $region14: #{tpu_custom_call.1} parent=1 // pred_check
      _
    $region15: #{tpu_custom_call.1} parent=1 // pred_check_branch
      %24 = sbr.rel (0) target = $region17
    $region16: #{tpu_custom_call.1} parent=1 // pred_region
      _
    $region17: #{tpu_custom_call.1} parent=1 // pred_fallthru
      _
    // Predicated region
    $region18: #{tpu_custom_call.1} parent=1 // pred_check
      _
    $region19: #{tpu_custom_call.1} parent=1 // pred_check_branch
      %26 = sbr.rel (0) target = $region21
    $region20: #{tpu_custom_call.1} parent=1 // pred_region
      _
    $region21: #{tpu_custom_call.1} parent=1 // pred_fallthru
      _
    // Predicated region
    $region22: #{tpu_custom_call.1} parent=1 // pred_check
      _
    $region23: #{tpu_custom_call.1} parent=1 // pred_check_branch
      %28 = sbr.rel (0) target = $region25
    $region24: #{tpu_custom_call.1} parent=1 // pred_region
      _
    $region25: #{tpu_custom_call.1} parent=1 // pred_fallthru
      _
    // Predicated region
    $region26: #{tpu_custom_call.1} parent=1 // pred_check
      _
    $region27: #{tpu_custom_call.1} parent=1 // pred_check_branch
      %30 = sbr.rel (0) target = $region29
    $region28: #{tpu_custom_call.1} parent=1 // pred_region
      _
    $region29: #{tpu_custom_call.1} parent=1 // pred_fallthru
      _
    // Predicated region
    $region30: #{tpu_custom_call.1} parent=1 // pred_check
      _
    $region31: #{tpu_custom_call.1} parent=1 // pred_check_branch
      %32 = sbr.rel (0) target = $region33
    $region32: #{tpu_custom_call.1} parent=1 // pred_region
      _
    $region33: #{tpu_custom_call.1} parent=1 // pred_fallthru
      _
    // Predicated region
    $region34: #{tpu_custom_call.1} parent=1 // pred_check
      _
    $region35: #{tpu_custom_call.1} parent=1 // pred_check_branch
      %34 = sbr.rel (0) target = $region37
    $region36: #{tpu_custom_call.1} parent=1 // pred_region
      _
    $region37: #{tpu_custom_call.1} parent=1 // pred_fallthru
      _
    // Predicated region
    $region38: #{tpu_custom_call.1} parent=1 // pred_check
      _
    $region39: #{tpu_custom_call.1} parent=1 // pred_check_branch
      %36 = sbr.rel (0) target = $region41
    $region40: #{tpu_custom_call.1} parent=1 // pred_region
      _
    $region41: #{tpu_custom_call.1} parent=1 // pred_fallthru
      _
    // Predicated region
    $region42: #{tpu_custom_call.1} parent=1 // pred_check
      _
    $region43: #{tpu_custom_call.1} parent=1 // pred_check_branch
      %38 = sbr.rel (0) target = $region45
    $region44: #{tpu_custom_call.1} parent=1 // pred_region
      _
    $region45: #{tpu_custom_call.1} parent=1 // pred_fallthru
      _
    %v40 = vld [vmem:[%s1] sm:$0x1]
    %v41 = vld [vmem:[%s2] sm:$0xf]
    %v42 = vld [vmem:[%s2 + $0x4] sm:$0xf]
    %v43 = vld [vmem:[%s2 + $0x8] sm:$0xf]
    %v44 = vld [vmem:[%s2 + $0xc] sm:$0xf]
    %v45 = vld [vmem:[%s3] sm:$0xf]
    %v46 = vld [vmem:[%s3 + $0x4] sm:$0xf]
    %v47 = vld [vmem:[%s3 + $0x8] sm:$0xf]
    %v48 = vld [vmem:[%s3 + $0xc] sm:$0xf]
    %v49 = vld [vmem:[%s4] sm:$0xf]
    %v50 = vld [vmem:[%s4 + $0x4] sm:$0xf]
    %v51 = vld [vmem:[%s4 + $0x8] sm:$0xf]
    %v52 = vld [vmem:[%s4 + $0xc] sm:$0xf]
    %v53 = vld [vmem:[%s6] sm:$0x1]
    %v55 = vlaneseq
    %v56 = vshrl.u32 %v55, 7
    %v57 = vsub.s32 0, %v56
    %v58 = vrot.slane %v53, %v57
    %v60 = vld [vmem:[%s7] sm:$0x1]
    %v62 = vlaneseq
    %v63 = vshrl.u32 %v62, 7
    %v64 = vsub.s32 0, %v63
    %v65 = vrot.slane %v60, %v64
    %v67 = vld [vmem:[%s5] sm:$0xf]
    %v68 = vld [vmem:[%s5 + $0x4] sm:$0xf]
    %v69 = vld [vmem:[%s5 + $0x8] sm:$0xf]
    %v70 = vld [vmem:[%s5 + $0xc] sm:$0xf]
    %v71 = vld [vmem:[%s8] sm:$0x1]
    %v73 = vlaneseq
    %v74 = vshrl.u32 %v73, 7
    %v75 = vsub.s32 0, %v74
    %v76 = vrot.slane %v71, %v75
    %v78 = vld [vmem:[%s0] sm:$0x3]
    %80 = vset.pattern.permute.xlu0 0
    %81 = vperm.xlu0 %80, %v78
    %v82 = vpop.permute.xlu0 %81
    %v85 = vlaneseq
    %v86 = vshrl.u32 %v85, 7
    %v87 = vsub.s32 0, %v86
    %v88 = vrot.slane %v40, %v87
    %v90 = vmul.f32 %v82, %v88
    %91 = vset.pattern.permute.xlu0 1
    %92 = vperm.xlu0 %91, %v78
    %v93 = vpop.permute.xlu0 %92
    %v95 = vmul.f32 %v93, %v88
    %96 = vset.pattern.permute.xlu0 2
    %97 = vperm.xlu0 %96, %v78
    %v98 = vpop.permute.xlu0 %97
    %v100 = vmul.f32 %v98, %v88
    %101 = vset.pattern.permute.xlu0 3
    %102 = vperm.xlu0 %101, %v78
    %v103 = vpop.permute.xlu0 %102
    %v105 = vmul.f32 %v103, %v88
    %106 = vset.pattern.permute.xlu0 4
    %107 = vperm.xlu0 %106, %v78
    %v108 = vpop.permute.xlu0 %107
    %v110 = vmul.f32 %v108, %v88
    %111 = vset.pattern.permute.xlu0 5
    %112 = vperm.xlu0 %111, %v78
    %v113 = vpop.permute.xlu0 %112
    %v115 = vmul.f32 %v113, %v88
    %116 = vset.pattern.permute.xlu0 6
    %117 = vperm.xlu0 %116, %v78
    %v118 = vpop.permute.xlu0 %117
    %v120 = vmul.f32 %v118, %v88
    %121 = vset.pattern.permute.xlu0 7
    %122 = vperm.xlu0 %121, %v78
    %v123 = vpop.permute.xlu0 %122
    %v125 = vmul.f32 %v123, %v88
    %v130 = vunpack.c.l.b16 %v41
    %v131 = vunpack.c.l.b16 %v42
    %v132 = vunpack.c.l.b16 %v43
    %v133 = vunpack.c.l.b16 %v44
    %v134 = vpack.c.b16 %v131, %v130
    %v135 = vpack.c.b16 %v133, %v132
    %vm138 = vcmask 261120
    %v140 = vsel %vm138, 0, 0
    %142 = vmatprep.subr.bf16.mxu0 0
    %143 = vmatpush1.bf16.msra.mxu0 %v134
    %144 = vmatprep.subr.bf16.mxu0 0
    %145 = vmatpush1.bf16.msra.mxu0 %v135
    %146 = vmatprep.subr.bf16.mxu0 0
    %147 = vmatpush1.bf16.msra.mxu0 0
    %148 = vmatprep.subr.bf16.mxu0 0
    %149 = vmatpush1.bf16.msra.mxu0 0
    %150 = vmatprep.subr.bf16.mxu0 0
    %151 = vmatpush1.bf16.msra.mxu0 0
    %152 = vmatprep.subr.bf16.mxu0 0
    %153 = vmatpush1.bf16.msra.mxu0 0
    %154 = vmatprep.subr.bf16.mxu0 0
    %155 = vmatpush1.bf16.msra.mxu0 0
    %156 = vmatprep.subr.bf16.mxu0 0
    %157 = vmatpush1.bf16.msra.mxu0 0
    %158 = vmatprep.subr.bf16.mxu0 0
    %159 = vmatpush1.bf16.msra.mxu0 0
    %160 = vmatprep.subr.bf16.mxu0 0
    %161 = vmatpush1.bf16.msra.mxu0 0
    %162 = vmatprep.subr.bf16.mxu0 0
    %163 = vmatpush1.bf16.msra.mxu0 0
    %164 = vmatprep.subr.bf16.mxu0 0
    %165 = vmatpush1.bf16.msra.mxu0 0
    %166 = vmatprep.subr.bf16.mxu0 0
    %167 = vmatpush1.bf16.msra.mxu0 0
    %168 = vmatprep.subr.bf16.mxu0 0
    %169 = vmatpush1.bf16.msra.mxu0 0
    %170 = vmatprep.subr.bf16.mxu0 0
    %171 = vmatpush1.bf16.msra.mxu0 0
    %172 = vmatprep.subr.bf16.mxu0 0
    %173 = vmatpush1.bf16.msra.mxu0 0
    %174 = vmatprep.mubr.bf16.mxu0 0
    %175 = vmatmul.mubr.bf16.gmra.mrb[0].mxu0 %v140
    %v176 = vpop.f32.mrb[0].mxu0
    %v177 = vadd.f32 0.0, %v176
    %v178 = vpop.f32.mrb[0].mxu0
    %v179 = vpop.f32.mrb[0].mxu0
    %v180 = vpop.f32.mrb[0].mxu0
    %181 = vdwg.mxu0
    %v182 = vadd.f32 %v90, %v177
    %v183 = vadd.f32 %v182, %v58
    %v184 = vxor.u32 %v183, 2147483648
    %v185 = vmul.f32 %v184, 1.442695
    %v186 = vpow.pop %v185
    %v187 = vadd.f32 %v186, 1.0
    %v188 = vrcp.pop %v187
    %v189 = vmul.f32 1.0, %v188
    %v190 = vtanh.pop %v183
    %v191 = vmul.f32 %v189, 0.0
    %193 = vrot.lane.b32.xlu0 %v190, 64
    %v194 = vpop.permute.xlu0 %193
    %v196 = vmul.f32 %v189, %v194
    %198 = vrot.lane.b32.xlu0 %v196, 32
    %v199 = vpop.permute.xlu0 %198
    %v201 = vadd.f32 %v191, %v199
    %v202 = vtanh.pop %v201
    %204 = vrot.lane.b32.xlu0 %v202, 64
    %v205 = vpop.permute.xlu0 %204
    %v207 = vmul.f32 %v189, %v205
    %v208 = vpack.c.bf16 %v207, %v207
    %v213 = vunpack.c.l.b16 %v49
    %v214 = vunpack.c.l.b16 %v50
    %v215 = vunpack.c.l.b16 %v51
    %v216 = vunpack.c.l.b16 %v52
    %v217 = vpack.c.b16 %v214, %v213
    %v218 = vpack.c.b16 %v216, %v215
    %221 = vmatprep.subr.bf16.mxu0 0
    %222 = vmatpush1.bf16.msra.mxu0 %v217
    %223 = vmatprep.subr.bf16.mxu0 0
    %224 = vmatpush1.bf16.msra.mxu0 %v218
    %225 = vmatprep.subr.bf16.mxu0 0
    %226 = vmatpush1.bf16.msra.mxu0 0
    %227 = vmatprep.subr.bf16.mxu0 0
    %228 = vmatpush1.bf16.msra.mxu0 0
    %229 = vmatprep.subr.bf16.mxu0 0
    %230 = vmatpush1.bf16.msra.mxu0 0
    %231 = vmatprep.subr.bf16.mxu0 0
    %232 = vmatpush1.bf16.msra.mxu0 0
    %233 = vmatprep.subr.bf16.mxu0 0
    %234 = vmatpush1.bf16.msra.mxu0 0
    %235 = vmatprep.subr.bf16.mxu0 0
    %236 = vmatpush1.bf16.msra.mxu0 0
    %237 = vmatprep.subr.bf16.mxu0 0
    %238 = vmatpush1.bf16.msra.mxu0 0
    %239 = vmatprep.subr.bf16.mxu0 0
    %240 = vmatpush1.bf16.msra.mxu0 0
    %241 = vmatprep.subr.bf16.mxu0 0
    %242 = vmatpush1.bf16.msra.mxu0 0
    %243 = vmatprep.subr.bf16.mxu0 0
    %244 = vmatpush1.bf16.msra.mxu0 0
    %245 = vmatprep.subr.bf16.mxu0 0
    %246 = vmatpush1.bf16.msra.mxu0 0
    %247 = vmatprep.subr.bf16.mxu0 0
    %248 = vmatpush1.bf16.msra.mxu0 0
    %249 = vmatprep.subr.bf16.mxu0 0
    %250 = vmatpush1.bf16.msra.mxu0 0
    %251 = vmatprep.subr.bf16.mxu0 0
    %252 = vmatpush1.bf16.msra.mxu0 0
    %253 = vmatprep.mubr.bf16.mxu0 0
    %254 = vmatmul.mubr.bf16.gmra.mrb[0].mxu0 %v140
    %v255 = vpop.f32.mrb[0].mxu0
    %v256 = vadd.f32 0.0, %v255
    %v257 = vpop.f32.mrb[0].mxu0
    %v258 = vpop.f32.mrb[0].mxu0
    %v259 = vpop.f32.mrb[0].mxu0
    %260 = vdwg.mxu0
    %262 = vrot.lane.b32.xlu0 %v208, 32
    %v263 = vpop.permute.xlu0 %262
    %v268 = vunpack.c.l.b16 %v45
    %v269 = vunpack.c.l.b16 %v46
    %v270 = vunpack.c.l.b16 %v47
    %v271 = vunpack.c.l.b16 %v48
    %v272 = vpack.c.b16 %v269, %v268
    %v273 = vpack.c.b16 %v271, %v270
    %v277 = vsel %vm138, %v263, 0
    %279 = vmatprep.subr.bf16.mxu0 0
    %280 = vmatpush1.bf16.msra.mxu0 %v272
    %281 = vmatprep.subr.bf16.mxu0 0
    %282 = vmatpush1.bf16.msra.mxu0 %v273
    %283 = vmatprep.subr.bf16.mxu0 0
    %284 = vmatpush1.bf16.msra.mxu0 0
    %285 = vmatprep.subr.bf16.mxu0 0
    %286 = vmatpush1.bf16.msra.mxu0 0
    %287 = vmatprep.subr.bf16.mxu0 0
    %288 = vmatpush1.bf16.msra.mxu0 0
    %289 = vmatprep.subr.bf16.mxu0 0
    %290 = vmatpush1.bf16.msra.mxu0 0
    %291 = vmatprep.subr.bf16.mxu0 0
    %292 = vmatpush1.bf16.msra.mxu0 0
    %293 = vmatprep.subr.bf16.mxu0 0
    %294 = vmatpush1.bf16.msra.mxu0 0
    %295 = vmatprep.subr.bf16.mxu0 0
    %296 = vmatpush1.bf16.msra.mxu0 0
    %297 = vmatprep.subr.bf16.mxu0 0
    %298 = vmatpush1.bf16.msra.mxu0 0
    %299 = vmatprep.subr.bf16.mxu0 0
    %300 = vmatpush1.bf16.msra.mxu0 0
    %301 = vmatprep.subr.bf16.mxu0 0
    %302 = vmatpush1.bf16.msra.mxu0 0
    %303 = vmatprep.subr.bf16.mxu0 0
    %304 = vmatpush1.bf16.msra.mxu0 0
    %305 = vmatprep.subr.bf16.mxu0 0
    %306 = vmatpush1.bf16.msra.mxu0 0
    %307 = vmatprep.subr.bf16.mxu0 0
    %308 = vmatpush1.bf16.msra.mxu0 0
    %309 = vmatprep.subr.bf16.mxu0 0
    %310 = vmatpush1.bf16.msra.mxu0 0
    %311 = vmatprep.mubr.bf16.mxu0 0
    %312 = vmatmul.mubr.bf16.gmra.mrb[0].mxu0 %v277
    %v313 = vpop.f32.mrb[0].mxu0
    %v314 = vadd.f32 %v256, %v313
    %v315 = vpop.f32.mrb[0].mxu0
    %v316 = vpop.f32.mrb[0].mxu0
    %v317 = vpop.f32.mrb[0].mxu0
    %318 = vdwg.mxu0
    %v319 = vadd.f32 %v314, %v65
    %v320 = vxor.u32 %v319, 2147483648
    %v321 = vmul.f32 %v320, 1.442695
    %v322 = vpow.pop %v321
    %v323 = vadd.f32 %v322, 1.0
    %v324 = vrcp.pop %v323
    %v325 = vmul.f32 1.0, %v324
    %v326 = vtanh.pop %v319
    %v327 = vmul.f32 %v325, 0.0
    %329 = vrot.lane.b32.xlu0 %v326, 64
    %v330 = vpop.permute.xlu0 %329
    %v332 = vmul.f32 %v325, %v330
    %334 = vrot.lane.b32.xlu0 %v332, 32
    %v335 = vpop.permute.xlu0 %334
    %v337 = vadd.f32 %v327, %v335
    %v338 = vtanh.pop %v337
    %340 = vrot.lane.b32.xlu0 %v338, 64
    %v341 = vpop.permute.xlu0 %340
    %v343 = vmul.f32 %v325, %v341
    %344 = vmatprep.subr.bf16.mxu0 0
    %345 = vmatpush1.bf16.msra.mxu0 %v134
    %346 = vmatprep.subr.bf16.mxu0 0
    %347 = vmatpush1.bf16.msra.mxu0 %v135
    %348 = vmatprep.subr.bf16.mxu0 0
    %349 = vmatpush1.bf16.msra.mxu0 0
    %350 = vmatprep.subr.bf16.mxu0 0
    %351 = vmatpush1.bf16.msra.mxu0 0
    %352 = vmatprep.subr.bf16.mxu0 0
    %353 = vmatpush1.bf16.msra.mxu0 0
    %354 = vmatprep.subr.bf16.mxu0 0
    %355 = vmatpush1.bf16.msra.mxu0 0
    %356 = vmatprep.subr.bf16.mxu0 0
    %357 = vmatpush1.bf16.msra.mxu0 0
    %358 = vmatprep.subr.bf16.mxu0 0
    %359 = vmatpush1.bf16.msra.mxu0 0
    %360 = vmatprep.subr.bf16.mxu0 0
    %361 = vmatpush1.bf16.msra.mxu0 0
    %362 = vmatprep.subr.bf16.mxu0 0
    %363 = vmatpush1.bf16.msra.mxu0 0
    %364 = vmatprep.subr.bf16.mxu0 0
    %365 = vmatpush1.bf16.msra.mxu0 0
    %366 = vmatprep.subr.bf16.mxu0 0
    %367 = vmatpush1.bf16.msra.mxu0 0
    %368 = vmatprep.subr.bf16.mxu0 0
    %369 = vmatpush1.bf16.msra.mxu0 0
    %370 = vmatprep.subr.bf16.mxu0 0
    %371 = vmatpush1.bf16.msra.mxu0 0
    %372 = vmatprep.subr.bf16.mxu0 0
    %373 = vmatpush1.bf16.msra.mxu0 0
    %374 = vmatprep.subr.bf16.mxu0 0
    %375 = vmatpush1.bf16.msra.mxu0 0
    %376 = vmatprep.mubr.bf16.mxu0 0
    %377 = vmatmul.mubr.bf16.gmra.mrb[0].mxu0 %v277
    %v378 = vpop.f32.mrb[0].mxu0
    %v379 = vadd.f32 0.0, %v378
    %v380 = vpop.f32.mrb[0].mxu0
    %v381 = vpop.f32.mrb[0].mxu0
    %v382 = vpop.f32.mrb[0].mxu0
    %383 = vdwg.mxu0
    %v384 = vadd.f32 %v95, %v379
    %v385 = vadd.f32 %v384, %v58
    %v386 = vxor.u32 %v385, 2147483648
    %v387 = vmul.f32 %v386, 1.442695
    %v388 = vpow.pop %v387
    %v389 = vadd.f32 %v388, 1.0
    %v390 = vrcp.pop %v389
    %v391 = vmul.f32 1.0, %v390
    %v392 = vtanh.pop %v385
    %v393 = vmul.f32 %v391, %v201
    %395 = vrot.lane.b32.xlu0 %v392, 64
    %v396 = vpop.permute.xlu0 %395
    %v398 = vmul.f32 %v391, %v396
    %400 = vrot.lane.b32.xlu0 %v398, 32
    %v401 = vpop.permute.xlu0 %400
    %v403 = vadd.f32 %v393, %v401
    %v404 = vtanh.pop %v403
    %406 = vrot.lane.b32.xlu0 %v404, 64
    %v407 = vpop.permute.xlu0 %406
    %v409 = vmul.f32 %v391, %v407
    %v410 = vpack.c.bf16 %v409, %v409
    %v411 = vpack.c.bf16 %v343, %v343
    %413 = vrot.lane.b32.xlu0 %v411, 32
    %v414 = vpop.permute.xlu0 %413
    %v416 = vsel %vm138, %v414, 0
    %418 = vmatprep.subr.bf16.mxu0 0
    %419 = vmatpush1.bf16.msra.mxu0 %v217
    %420 = vmatprep.subr.bf16.mxu0 0
    %421 = vmatpush1.bf16.msra.mxu0 %v218
    %422 = vmatprep.subr.bf16.mxu0 0
    %423 = vmatpush1.bf16.msra.mxu0 0
    %424 = vmatprep.subr.bf16.mxu0 0
    %425 = vmatpush1.bf16.msra.mxu0 0
    %426 = vmatprep.subr.bf16.mxu0 0
    %427 = vmatpush1.bf16.msra.mxu0 0
    %428 = vmatprep.subr.bf16.mxu0 0
    %429 = vmatpush1.bf16.msra.mxu0 0
    %430 = vmatprep.subr.bf16.mxu0 0
    %431 = vmatpush1.bf16.msra.mxu0 0
    %432 = vmatprep.subr.bf16.mxu0 0
    %433 = vmatpush1.bf16.msra.mxu0 0
    %434 = vmatprep.subr.bf16.mxu0 0
    %435 = vmatpush1.bf16.msra.mxu0 0
    %436 = vmatprep.subr.bf16.mxu0 0
    %437 = vmatpush1.bf16.msra.mxu0 0
    %438 = vmatprep.subr.bf16.mxu0 0
    %439 = vmatpush1.bf16.msra.mxu0 0
    %440 = vmatprep.subr.bf16.mxu0 0
    %441 = vmatpush1.bf16.msra.mxu0 0
    %442 = vmatprep.subr.bf16.mxu0 0
    %443 = vmatpush1.bf16.msra.mxu0 0
    %444 = vmatprep.subr.bf16.mxu0 0
    %445 = vmatpush1.bf16.msra.mxu0 0
    %446 = vmatprep.subr.bf16.mxu0 0
    %447 = vmatpush1.bf16.msra.mxu0 0
    %448 = vmatprep.subr.bf16.mxu0 0
    %449 = vmatpush1.bf16.msra.mxu0 0
    %450 = vmatprep.mubr.bf16.mxu0 0
    %451 = vmatmul.mubr.bf16.gmra.mrb[0].mxu0 %v416
    %v452 = vpop.f32.mrb[0].mxu0
    %v453 = vadd.f32 0.0, %v452
    %v454 = vpop.f32.mrb[0].mxu0
    %v455 = vpop.f32.mrb[0].mxu0
    %v456 = vpop.f32.mrb[0].mxu0
    %457 = vdwg.mxu0
    %459 = vrot.lane.b32.xlu0 %v410, 32
    %v460 = vpop.permute.xlu0 %459
    %v462 = vsel %vm138, %v460, 0
    %464 = vmatprep.subr.bf16.mxu0 0
    %465 = vmatpush1.bf16.msra.mxu0 %v272
    %466 = vmatprep.subr.bf16.mxu0 0
    %467 = vmatpush1.bf16.msra.mxu0 %v273
    %468 = vmatprep.subr.bf16.mxu0 0
    %469 = vmatpush1.bf16.msra.mxu0 0
    %470 = vmatprep.subr.bf16.mxu0 0
    %471 = vmatpush1.bf16.msra.mxu0 0
    %472 = vmatprep.subr.bf16.mxu0 0
    %473 = vmatpush1.bf16.msra.mxu0 0
    %474 = vmatprep.subr.bf16.mxu0 0
    %475 = vmatpush1.bf16.msra.mxu0 0
    %476 = vmatprep.subr.bf16.mxu0 0
    %477 = vmatpush1.bf16.msra.mxu0 0
    %478 = vmatprep.subr.bf16.mxu0 0
    %479 = vmatpush1.bf16.msra.mxu0 0
    %480 = vmatprep.subr.bf16.mxu0 0
    %481 = vmatpush1.bf16.msra.mxu0 0
    %482 = vmatprep.subr.bf16.mxu0 0
    %483 = vmatpush1.bf16.msra.mxu0 0
    %484 = vmatprep.subr.bf16.mxu0 0
    %485 = vmatpush1.bf16.msra.mxu0 0
    %486 = vmatprep.subr.bf16.mxu0 0
    %487 = vmatpush1.bf16.msra.mxu0 0
    %488 = vmatprep.subr.bf16.mxu0 0
    %489 = vmatpush1.bf16.msra.mxu0 0
    %490 = vmatprep.subr.bf16.mxu0 0
    %491 = vmatpush1.bf16.msra.mxu0 0
    %492 = vmatprep.subr.bf16.mxu0 0
    %493 = vmatpush1.bf16.msra.mxu0 0
    %494 = vmatprep.subr.bf16.mxu0 0
    %495 = vmatpush1.bf16.msra.mxu0 0
    %496 = vmatprep.mubr.bf16.mxu0 0
    %497 = vmatmul.mubr.bf16.gmra.mrb[0].mxu0 %v462
    %v498 = vpop.f32.mrb[0].mxu0
    %v499 = vadd.f32 %v453, %v498
    %v500 = vpop.f32.mrb[0].mxu0
    %v501 = vpop.f32.mrb[0].mxu0
    %v502 = vpop.f32.mrb[0].mxu0
    %503 = vdwg.mxu0
    %v504 = vadd.f32 %v499, %v65
    %v505 = vxor.u32 %v504, 2147483648
    %v506 = vmul.f32 %v505, 1.442695
    %v507 = vpow.pop %v506
    %v508 = vadd.f32 %v507, 1.0
    %v509 = vrcp.pop %v508
    %v510 = vmul.f32 1.0, %v509
    %v511 = vtanh.pop %v504
    %v512 = vmul.f32 %v510, %v337
    %514 = vrot.lane.b32.xlu0 %v511, 64
    %v515 = vpop.permute.xlu0 %514
    %v517 = vmul.f32 %v510, %v515
    %519 = vrot.lane.b32.xlu0 %v517, 32
    %v520 = vpop.permute.xlu0 %519
    %v522 = vadd.f32 %v512, %v520
    %v523 = vtanh.pop %v522
    %525 = vrot.lane.b32.xlu0 %v523, 64
    %v526 = vpop.permute.xlu0 %525
    %v528 = vmul.f32 %v510, %v526
    %529 = vmatprep.subr.bf16.mxu0 0
    %530 = vmatpush1.bf16.msra.mxu0 %v134
    %531 = vmatprep.subr.bf16.mxu0 0
    %532 = vmatpush1.bf16.msra.mxu0 %v135
    %533 = vmatprep.subr.bf16.mxu0 0
    %534 = vmatpush1.bf16.msra.mxu0 0
    %535 = vmatprep.subr.bf16.mxu0 0
    %536 = vmatpush1.bf16.msra.mxu0 0
    %537 = vmatprep.subr.bf16.mxu0 0
    %538 = vmatpush1.bf16.msra.mxu0 0
    %539 = vmatprep.subr.bf16.mxu0 0
    %540 = vmatpush1.bf16.msra.mxu0 0
    %541 = vmatprep.subr.bf16.mxu0 0
    %542 = vmatpush1.bf16.msra.mxu0 0
    %543 = vmatprep.subr.bf16.mxu0 0
    %544 = vmatpush1.bf16.msra.mxu0 0
    %545 = vmatprep.subr.bf16.mxu0 0
    %546 = vmatpush1.bf16.msra.mxu0 0
    %547 = vmatprep.subr.bf16.mxu0 0
    %548 = vmatpush1.bf16.msra.mxu0 0
    %549 = vmatprep.subr.bf16.mxu0 0
    %550 = vmatpush1.bf16.msra.mxu0 0
    %551 = vmatprep.subr.bf16.mxu0 0
    %552 = vmatpush1.bf16.msra.mxu0 0
    %553 = vmatprep.subr.bf16.mxu0 0
    %554 = vmatpush1.bf16.msra.mxu0 0
    %555 = vmatprep.subr.bf16.mxu0 0
    %556 = vmatpush1.bf16.msra.mxu0 0
    %557 = vmatprep.subr.bf16.mxu0 0
    %558 = vmatpush1.bf16.msra.mxu0 0
    %559 = vmatprep.subr.bf16.mxu0 0
    %560 = vmatpush1.bf16.msra.mxu0 0
    %561 = vmatprep.mubr.bf16.mxu0 0
    %562 = vmatmul.mubr.bf16.gmra.mrb[0].mxu0 %v462
    %v563 = vpop.f32.mrb[0].mxu0
    %v564 = vadd.f32 0.0, %v563
    %v565 = vpop.f32.mrb[0].mxu0
    %v566 = vpop.f32.mrb[0].mxu0
    %v567 = vpop.f32.mrb[0].mxu0
    %568 = vdwg.mxu0
    %v569 = vadd.f32 %v100, %v564
    %v570 = vadd.f32 %v569, %v58
    %v571 = vxor.u32 %v570, 2147483648
    %v572 = vmul.f32 %v571, 1.442695
    %v573 = vpow.pop %v572
    %v574 = vadd.f32 %v573, 1.0
    %v575 = vrcp.pop %v574
    %v576 = vmul.f32 1.0, %v575
    %v577 = vtanh.pop %v570
    %v578 = vmul.f32 %v576, %v403
    %580 = vrot.lane.b32.xlu0 %v577, 64
    %v581 = vpop.permute.xlu0 %580
    %v583 = vmul.f32 %v576, %v581
    %585 = vrot.lane.b32.xlu0 %v583, 32
    %v586 = vpop.permute.xlu0 %585
    %v588 = vadd.f32 %v578, %v586
    %v589 = vtanh.pop %v588
    %591 = vrot.lane.b32.xlu0 %v589, 64
    %v592 = vpop.permute.xlu0 %591
    %v594 = vmul.f32 %v576, %v592
    %v595 = vpack.c.bf16 %v594, %v594
    %v596 = vpack.c.bf16 %v528, %v528
    %598 = vrot.lane.b32.xlu0 %v596, 32
    %v599 = vpop.permute.xlu0 %598
    %v601 = vsel %vm138, %v599, 0
    %603 = vmatprep.subr.bf16.mxu0 0
    %604 = vmatpush1.bf16.msra.mxu0 %v217
    %605 = vmatprep.subr.bf16.mxu0 0
    %606 = vmatpush1.bf16.msra.mxu0 %v218
    %607 = vmatprep.subr.bf16.mxu0 0
    %608 = vmatpush1.bf16.msra.mxu0 0
    %609 = vmatprep.subr.bf16.mxu0 0
    %610 = vmatpush1.bf16.msra.mxu0 0
    %611 = vmatprep.subr.bf16.mxu0 0
    %612 = vmatpush1.bf16.msra.mxu0 0
    %613 = vmatprep.subr.bf16.mxu0 0
    %614 = vmatpush1.bf16.msra.mxu0 0
    %615 = vmatprep.subr.bf16.mxu0 0
    %616 = vmatpush1.bf16.msra.mxu0 0
    %617 = vmatprep.subr.bf16.mxu0 0
    %618 = vmatpush1.bf16.msra.mxu0 0
    %619 = vmatprep.subr.bf16.mxu0 0
    %620 = vmatpush1.bf16.msra.mxu0 0
    %621 = vmatprep.subr.bf16.mxu0 0
    %622 = vmatpush1.bf16.msra.mxu0 0
    %623 = vmatprep.subr.bf16.mxu0 0
    %624 = vmatpush1.bf16.msra.mxu0 0
    %625 = vmatprep.subr.bf16.mxu0 0
    %626 = vmatpush1.bf16.msra.mxu0 0
    %627 = vmatprep.subr.bf16.mxu0 0
    %628 = vmatpush1.bf16.msra.mxu0 0
    %629 = vmatprep.subr.bf16.mxu0 0
    %630 = vmatpush1.bf16.msra.mxu0 0
    %631 = vmatprep.subr.bf16.mxu0 0
    %632 = vmatpush1.bf16.msra.mxu0 0
    %633 = vmatprep.subr.bf16.mxu0 0
    %634 = vmatpush1.bf16.msra.mxu0 0
    %635 = vmatprep.mubr.bf16.mxu0 0
    %636 = vmatmul.mubr.bf16.gmra.mrb[0].mxu0 %v601
    %v637 = vpop.f32.mrb[0].mxu0
    %v638 = vadd.f32 0.0, %v637
    %v639 = vpop.f32.mrb[0].mxu0
    %v640 = vpop.f32.mrb[0].mxu0
    %v641 = vpop.f32.mrb[0].mxu0
    %642 = vdwg.mxu0
    %644 = vrot.lane.b32.xlu0 %v595, 32
    %v645 = vpop.permute.xlu0 %644
    %v647 = vsel %vm138, %v645, 0
    %649 = vmatprep.subr.bf16.mxu0 0
    %650 = vmatpush1.bf16.msra.mxu0 %v272
    %651 = vmatprep.subr.bf16.mxu0 0
    %652 = vmatpush1.bf16.msra.mxu0 %v273
    %653 = vmatprep.subr.bf16.mxu0 0
    %654 = vmatpush1.bf16.msra.mxu0 0
    %655 = vmatprep.subr.bf16.mxu0 0
    %656 = vmatpush1.bf16.msra.mxu0 0
    %657 = vmatprep.subr.bf16.mxu0 0
    %658 = vmatpush1.bf16.msra.mxu0 0
    %659 = vmatprep.subr.bf16.mxu0 0
    %660 = vmatpush1.bf16.msra.mxu0 0
    %661 = vmatprep.subr.bf16.mxu0 0
    %662 = vmatpush1.bf16.msra.mxu0 0
    %663 = vmatprep.subr.bf16.mxu0 0
    %664 = vmatpush1.bf16.msra.mxu0 0
    %665 = vmatprep.subr.bf16.mxu0 0
    %666 = vmatpush1.bf16.msra.mxu0 0
    %667 = vmatprep.subr.bf16.mxu0 0
    %668 = vmatpush1.bf16.msra.mxu0 0
    %669 = vmatprep.subr.bf16.mxu0 0
    %670 = vmatpush1.bf16.msra.mxu0 0
    %671 = vmatprep.subr.bf16.mxu0 0
    %672 = vmatpush1.bf16.msra.mxu0 0
    %673 = vmatprep.subr.bf16.mxu0 0
    %674 = vmatpush1.bf16.msra.mxu0 0
    %675 = vmatprep.subr.bf16.mxu0 0
    %676 = vmatpush1.bf16.msra.mxu0 0
    %677 = vmatprep.subr.bf16.mxu0 0
    %678 = vmatpush1.bf16.msra.mxu0 0
    %679 = vmatprep.subr.bf16.mxu0 0
    %680 = vmatpush1.bf16.msra.mxu0 0
    %681 = vmatprep.mubr.bf16.mxu0 0
    %682 = vmatmul.mubr.bf16.gmra.mrb[0].mxu0 %v647
    %v683 = vpop.f32.mrb[0].mxu0
    %v684 = vadd.f32 %v638, %v683
    %v685 = vpop.f32.mrb[0].mxu0
    %v686 = vpop.f32.mrb[0].mxu0
    %v687 = vpop.f32.mrb[0].mxu0
    %688 = vdwg.mxu0
    %v689 = vadd.f32 %v684, %v65
    %v690 = vxor.u32 %v689, 2147483648
    %v691 = vmul.f32 %v690, 1.442695
    %v692 = vpow.pop %v691
    %v693 = vadd.f32 %v692, 1.0
    %v694 = vrcp.pop %v693
    %v695 = vmul.f32 1.0, %v694
    %v696 = vtanh.pop %v689
    %v697 = vmul.f32 %v695, %v522
    %699 = vrot.lane.b32.xlu0 %v696, 64
    %v700 = vpop.permute.xlu0 %699
    %v702 = vmul.f32 %v695, %v700
    %704 = vrot.lane.b32.xlu0 %v702, 32
    %v705 = vpop.permute.xlu0 %704
    %v707 = vadd.f32 %v697, %v705
    %v708 = vtanh.pop %v707
    %710 = vrot.lane.b32.xlu0 %v708, 64
    %v711 = vpop.permute.xlu0 %710
    %v713 = vmul.f32 %v695, %v711
    %714 = vmatprep.subr.bf16.mxu0 0
    %715 = vmatpush1.bf16.msra.mxu0 %v134
    %716 = vmatprep.subr.bf16.mxu0 0
    %717 = vmatpush1.bf16.msra.mxu0 %v135
    %718 = vmatprep.subr.bf16.mxu0 0
    %719 = vmatpush1.bf16.msra.mxu0 0
    %720 = vmatprep.subr.bf16.mxu0 0
    %721 = vmatpush1.bf16.msra.mxu0 0
    %722 = vmatprep.subr.bf16.mxu0 0
    %723 = vmatpush1.bf16.msra.mxu0 0
    %724 = vmatprep.subr.bf16.mxu0 0
    %725 = vmatpush1.bf16.msra.mxu0 0
    %726 = vmatprep.subr.bf16.mxu0 0
    %727 = vmatpush1.bf16.msra.mxu0 0
    %728 = vmatprep.subr.bf16.mxu0 0
    %729 = vmatpush1.bf16.msra.mxu0 0
    %730 = vmatprep.subr.bf16.mxu0 0
    %731 = vmatpush1.bf16.msra.mxu0 0
    %732 = vmatprep.subr.bf16.mxu0 0
    %733 = vmatpush1.bf16.msra.mxu0 0
    %734 = vmatprep.subr.bf16.mxu0 0
    %735 = vmatpush1.bf16.msra.mxu0 0
    %736 = vmatprep.subr.bf16.mxu0 0
    %737 = vmatpush1.bf16.msra.mxu0 0
    %738 = vmatprep.subr.bf16.mxu0 0
    %739 = vmatpush1.bf16.msra.mxu0 0
    %740 = vmatprep.subr.bf16.mxu0 0
    %741 = vmatpush1.bf16.msra.mxu0 0
    %742 = vmatprep.subr.bf16.mxu0 0
    %743 = vmatpush1.bf16.msra.mxu0 0
    %744 = vmatprep.subr.bf16.mxu0 0
    %745 = vmatpush1.bf16.msra.mxu0 0
    %746 = vmatprep.mubr.bf16.mxu0 0
    %747 = vmatmul.mubr.bf16.gmra.mrb[0].mxu0 %v647
    %v748 = vpop.f32.mrb[0].mxu0
    %v749 = vadd.f32 0.0, %v748
    %v750 = vpop.f32.mrb[0].mxu0
    %v751 = vpop.f32.mrb[0].mxu0
    %v752 = vpop.f32.mrb[0].mxu0
    %753 = vdwg.mxu0
    %v754 = vadd.f32 %v105, %v749
    %v755 = vadd.f32 %v754, %v58
    %v756 = vxor.u32 %v755, 2147483648
    %v757 = vmul.f32 %v756, 1.442695
    %v758 = vpow.pop %v757
    %v759 = vadd.f32 %v758, 1.0
    %v760 = vrcp.pop %v759
    %v761 = vmul.f32 1.0, %v760
    %v762 = vtanh.pop %v755
    %v763 = vmul.f32 %v761, %v588
    %765 = vrot.lane.b32.xlu0 %v762, 64
    %v766 = vpop.permute.xlu0 %765
    %v768 = vmul.f32 %v761, %v766
    %770 = vrot.lane.b32.xlu0 %v768, 32
    %v771 = vpop.permute.xlu0 %770
    %v773 = vadd.f32 %v763, %v771
    %v774 = vtanh.pop %v773
    %776 = vrot.lane.b32.xlu0 %v774, 64
    %v777 = vpop.permute.xlu0 %776
    %v779 = vmul.f32 %v761, %v777
    %v780 = vpack.c.bf16 %v779, %v779
    %v781 = vpack.c.bf16 %v713, %v713
    %783 = vrot.lane.b32.xlu0 %v781, 32
    %v784 = vpop.permute.xlu0 %783
    %v786 = vsel %vm138, %v784, 0
    %788 = vmatprep.subr.bf16.mxu0 0
    %789 = vmatpush1.bf16.msra.mxu0 %v217
    %790 = vmatprep.subr.bf16.mxu0 0
    %791 = vmatpush1.bf16.msra.mxu0 %v218
    %792 = vmatprep.subr.bf16.mxu0 0
    %793 = vmatpush1.bf16.msra.mxu0 0
    %794 = vmatprep.subr.bf16.mxu0 0
    %795 = vmatpush1.bf16.msra.mxu0 0
    %796 = vmatprep.subr.bf16.mxu0 0
    %797 = vmatpush1.bf16.msra.mxu0 0
    %798 = vmatprep.subr.bf16.mxu0 0
    %799 = vmatpush1.bf16.msra.mxu0 0
    %800 = vmatprep.subr.bf16.mxu0 0
    %801 = vmatpush1.bf16.msra.mxu0 0
    %802 = vmatprep.subr.bf16.mxu0 0
    %803 = vmatpush1.bf16.msra.mxu0 0
    %804 = vmatprep.subr.bf16.mxu0 0
    %805 = vmatpush1.bf16.msra.mxu0 0
    %806 = vmatprep.subr.bf16.mxu0 0
    %807 = vmatpush1.bf16.msra.mxu0 0
    %808 = vmatprep.subr.bf16.mxu0 0
    %809 = vmatpush1.bf16.msra.mxu0 0
    %810 = vmatprep.subr.bf16.mxu0 0
    %811 = vmatpush1.bf16.msra.mxu0 0
    %812 = vmatprep.subr.bf16.mxu0 0
    %813 = vmatpush1.bf16.msra.mxu0 0
    %814 = vmatprep.subr.bf16.mxu0 0
    %815 = vmatpush1.bf16.msra.mxu0 0
    %816 = vmatprep.subr.bf16.mxu0 0
    %817 = vmatpush1.bf16.msra.mxu0 0
    %818 = vmatprep.subr.bf16.mxu0 0
    %819 = vmatpush1.bf16.msra.mxu0 0
    %820 = vmatprep.mubr.bf16.mxu0 0
    %821 = vmatmul.mubr.bf16.gmra.mrb[0].mxu0 %v786
    %v822 = vpop.f32.mrb[0].mxu0
    %v823 = vadd.f32 0.0, %v822
    %v824 = vpop.f32.mrb[0].mxu0
    %v825 = vpop.f32.mrb[0].mxu0
    %v826 = vpop.f32.mrb[0].mxu0
    %827 = vdwg.mxu0
    %829 = vrot.lane.b32.xlu0 %v780, 32
    %v830 = vpop.permute.xlu0 %829
    %v832 = vsel %vm138, %v830, 0
    %834 = vmatprep.subr.bf16.mxu0 0
    %835 = vmatpush1.bf16.msra.mxu0 %v272
    %836 = vmatprep.subr.bf16.mxu0 0
    %837 = vmatpush1.bf16.msra.mxu0 %v273
    %838 = vmatprep.subr.bf16.mxu0 0
    %839 = vmatpush1.bf16.msra.mxu0 0
    %840 = vmatprep.subr.bf16.mxu0 0
    %841 = vmatpush1.bf16.msra.mxu0 0
    %842 = vmatprep.subr.bf16.mxu0 0
    %843 = vmatpush1.bf16.msra.mxu0 0
    %844 = vmatprep.subr.bf16.mxu0 0
    %845 = vmatpush1.bf16.msra.mxu0 0
    %846 = vmatprep.subr.bf16.mxu0 0
    %847 = vmatpush1.bf16.msra.mxu0 0
    %848 = vmatprep.subr.bf16.mxu0 0
    %849 = vmatpush1.bf16.msra.mxu0 0
    %850 = vmatprep.subr.bf16.mxu0 0
    %851 = vmatpush1.bf16.msra.mxu0 0
    %852 = vmatprep.subr.bf16.mxu0 0
    %853 = vmatpush1.bf16.msra.mxu0 0
    %854 = vmatprep.subr.bf16.mxu0 0
    %855 = vmatpush1.bf16.msra.mxu0 0
    %856 = vmatprep.subr.bf16.mxu0 0
    %857 = vmatpush1.bf16.msra.mxu0 0
    %858 = vmatprep.subr.bf16.mxu0 0
    %859 = vmatpush1.bf16.msra.mxu0 0
    %860 = vmatprep.subr.bf16.mxu0 0
    %861 = vmatpush1.bf16.msra.mxu0 0
    %862 = vmatprep.subr.bf16.mxu0 0
    %863 = vmatpush1.bf16.msra.mxu0 0
    %864 = vmatprep.subr.bf16.mxu0 0
    %865 = vmatpush1.bf16.msra.mxu0 0
    %866 = vmatprep.mubr.bf16.mxu0 0
    %867 = vmatmul.mubr.bf16.gmra.mrb[0].mxu0 %v832
    %v868 = vpop.f32.mrb[0].mxu0
    %v869 = vadd.f32 %v823, %v868
    %v870 = vpop.f32.mrb[0].mxu0
    %v871 = vpop.f32.mrb[0].mxu0
    %v872 = vpop.f32.mrb[0].mxu0
    %873 = vdwg.mxu0
    %v874 = vadd.f32 %v869, %v65
    %v875 = vxor.u32 %v874, 2147483648
    %v876 = vmul.f32 %v875, 1.442695
    %v877 = vpow.pop %v876
    %v878 = vadd.f32 %v877, 1.0
    %v879 = vrcp.pop %v878
    %v880 = vmul.f32 1.0, %v879
    %v881 = vtanh.pop %v874
    %v882 = vmul.f32 %v880, %v707
    %884 = vrot.lane.b32.xlu0 %v881, 64
    %v885 = vpop.permute.xlu0 %884
    %v887 = vmul.f32 %v880, %v885
    %889 = vrot.lane.b32.xlu0 %v887, 32
    %v890 = vpop.permute.xlu0 %889
    %v892 = vadd.f32 %v882, %v890
    %v893 = vtanh.pop %v892
    %895 = vrot.lane.b32.xlu0 %v893, 64
    %v896 = vpop.permute.xlu0 %895
    %v898 = vmul.f32 %v880, %v896
    %899 = vmatprep.subr.bf16.mxu0 0
    %900 = vmatpush1.bf16.msra.mxu0 %v134
    %901 = vmatprep.subr.bf16.mxu0 0
    %902 = vmatpush1.bf16.msra.mxu0 %v135
    %903 = vmatprep.subr.bf16.mxu0 0
    %904 = vmatpush1.bf16.msra.mxu0 0
    %905 = vmatprep.subr.bf16.mxu0 0
    %906 = vmatpush1.bf16.msra.mxu0 0
    %907 = vmatprep.subr.bf16.mxu0 0
    %908 = vmatpush1.bf16.msra.mxu0 0
    %909 = vmatprep.subr.bf16.mxu0 0
    %910 = vmatpush1.bf16.msra.mxu0 0
    %911 = vmatprep.subr.bf16.mxu0 0
    %912 = vmatpush1.bf16.msra.mxu0 0
    %913 = vmatprep.subr.bf16.mxu0 0
    %914 = vmatpush1.bf16.msra.mxu0 0
    %915 = vmatprep.subr.bf16.mxu0 0
    %916 = vmatpush1.bf16.msra.mxu0 0
    %917 = vmatprep.subr.bf16.mxu0 0
    %918 = vmatpush1.bf16.msra.mxu0 0
    %919 = vmatprep.subr.bf16.mxu0 0
    %920 = vmatpush1.bf16.msra.mxu0 0
    %921 = vmatprep.subr.bf16.mxu0 0
    %922 = vmatpush1.bf16.msra.mxu0 0
    %923 = vmatprep.subr.bf16.mxu0 0
    %924 = vmatpush1.bf16.msra.mxu0 0
    %925 = vmatprep.subr.bf16.mxu0 0
    %926 = vmatpush1.bf16.msra.mxu0 0
    %927 = vmatprep.subr.bf16.mxu0 0
    %928 = vmatpush1.bf16.msra.mxu0 0
    %929 = vmatprep.subr.bf16.mxu0 0
    %930 = vmatpush1.bf16.msra.mxu0 0
    %931 = vmatprep.mubr.bf16.mxu0 0
    %932 = vmatmul.mubr.bf16.gmra.mrb[0].mxu0 %v832
    %v933 = vpop.f32.mrb[0].mxu0
    %v934 = vadd.f32 0.0, %v933
    %v935 = vpop.f32.mrb[0].mxu0
    %v936 = vpop.f32.mrb[0].mxu0
    %v937 = vpop.f32.mrb[0].mxu0
    %938 = vdwg.mxu0
    %v939 = vadd.f32 %v110, %v934
    %v940 = vadd.f32 %v939, %v58
    %v941 = vxor.u32 %v940, 2147483648
    %v942 = vmul.f32 %v941, 1.442695
    %v943 = vpow.pop %v942
    %v944 = vadd.f32 %v943, 1.0
    %v945 = vrcp.pop %v944
    %v946 = vmul.f32 1.0, %v945
    %v947 = vtanh.pop %v940
    %v948 = vmul.f32 %v946, %v773
    %950 = vrot.lane.b32.xlu0 %v947, 64
    %v951 = vpop.permute.xlu0 %950
    %v953 = vmul.f32 %v946, %v951
    %955 = vrot.lane.b32.xlu0 %v953, 32
    %v956 = vpop.permute.xlu0 %955
    %v958 = vadd.f32 %v948, %v956
    %v959 = vtanh.pop %v958
    %961 = vrot.lane.b32.xlu0 %v959, 64
    %v962 = vpop.permute.xlu0 %961
    %v964 = vmul.f32 %v946, %v962
    %v965 = vpack.c.bf16 %v964, %v964
    %v966 = vpack.c.bf16 %v898, %v898
    %968 = vrot.lane.b32.xlu0 %v966, 32
    %v969 = vpop.permute.xlu0 %968
    %v971 = vsel %vm138, %v969, 0
    %973 = vmatprep.subr.bf16.mxu0 0
    %974 = vmatpush1.bf16.msra.mxu0 %v217
    %975 = vmatprep.subr.bf16.mxu0 0
    %976 = vmatpush1.bf16.msra.mxu0 %v218
    %977 = vmatprep.subr.bf16.mxu0 0
    %978 = vmatpush1.bf16.msra.mxu0 0
    %979 = vmatprep.subr.bf16.mxu0 0
    %980 = vmatpush1.bf16.msra.mxu0 0
    %981 = vmatprep.subr.bf16.mxu0 0
    %982 = vmatpush1.bf16.msra.mxu0 0
    %983 = vmatprep.subr.bf16.mxu0 0
    %984 = vmatpush1.bf16.msra.mxu0 0
    %985 = vmatprep.subr.bf16.mxu0 0
    %986 = vmatpush1.bf16.msra.mxu0 0
    %987 = vmatprep.subr.bf16.mxu0 0
    %988 = vmatpush1.bf16.msra.mxu0 0
    %989 = vmatprep.subr.bf16.mxu0 0
    %990 = vmatpush1.bf16.msra.mxu0 0
    %991 = vmatprep.subr.bf16.mxu0 0
    %992 = vmatpush1.bf16.msra.mxu0 0
    %993 = vmatprep.subr.bf16.mxu0 0
    %994 = vmatpush1.bf16.msra.mxu0 0
    %995 = vmatprep.subr.bf16.mxu0 0
    %996 = vmatpush1.bf16.msra.mxu0 0
    %997 = vmatprep.subr.bf16.mxu0 0
    %998 = vmatpush1.bf16.msra.mxu0 0
    %999 = vmatprep.subr.bf16.mxu0 0
    %1000 = vmatpush1.bf16.msra.mxu0 0
    %1001 = vmatprep.subr.bf16.mxu0 0
    %1002 = vmatpush1.bf16.msra.mxu0 0
    %1003 = vmatprep.subr.bf16.mxu0 0
    %1004 = vmatpush1.bf16.msra.mxu0 0
    %1005 = vmatprep.mubr.bf16.mxu0 0
    %1006 = vmatmul.mubr.bf16.gmra.mrb[0].mxu0 %v971
    %v1007 = vpop.f32.mrb[0].mxu0
    %v1008 = vadd.f32 0.0, %v1007
    %v1009 = vpop.f32.mrb[0].mxu0
    %v1010 = vpop.f32.mrb[0].mxu0
    %v1011 = vpop.f32.mrb[0].mxu0
    %1012 = vdwg.mxu0
    %1014 = vrot.lane.b32.xlu0 %v965, 32
    %v1015 = vpop.permute.xlu0 %1014
    %v1017 = vsel %vm138, %v1015, 0
    %1019 = vmatprep.subr.bf16.mxu0 0
    %1020 = vmatpush1.bf16.msra.mxu0 %v272
    %1021 = vmatprep.subr.bf16.mxu0 0
    %1022 = vmatpush1.bf16.msra.mxu0 %v273
    %1023 = vmatprep.subr.bf16.mxu0 0
    %1024 = vmatpush1.bf16.msra.mxu0 0
    %1025 = vmatprep.subr.bf16.mxu0 0
    %1026 = vmatpush1.bf16.msra.mxu0 0
    %1027 = vmatprep.subr.bf16.mxu0 0
    %1028 = vmatpush1.bf16.msra.mxu0 0
    %1029 = vmatprep.subr.bf16.mxu0 0
    %1030 = vmatpush1.bf16.msra.mxu0 0
    %1031 = vmatprep.subr.bf16.mxu0 0
    %1032 = vmatpush1.bf16.msra.mxu0 0
    %1033 = vmatprep.subr.bf16.mxu0 0
    %1034 = vmatpush1.bf16.msra.mxu0 0
    %1035 = vmatprep.subr.bf16.mxu0 0
    %1036 = vmatpush1.bf16.msra.mxu0 0
    %1037 = vmatprep.subr.bf16.mxu0 0
    %1038 = vmatpush1.bf16.msra.mxu0 0
    %1039 = vmatprep.subr.bf16.mxu0 0
    %1040 = vmatpush1.bf16.msra.mxu0 0
    %1041 = vmatprep.subr.bf16.mxu0 0
    %1042 = vmatpush1.bf16.msra.mxu0 0
    %1043 = vmatprep.subr.bf16.mxu0 0
    %1044 = vmatpush1.bf16.msra.mxu0 0
    %1045 = vmatprep.subr.bf16.mxu0 0
    %1046 = vmatpush1.bf16.msra.mxu0 0
    %1047 = vmatprep.subr.bf16.mxu0 0
    %1048 = vmatpush1.bf16.msra.mxu0 0
    %1049 = vmatprep.subr.bf16.mxu0 0
    %1050 = vmatpush1.bf16.msra.mxu0 0
    %1051 = vmatprep.mubr.bf16.mxu0 0
    %1052 = vmatmul.mubr.bf16.gmra.mrb[0].mxu0 %v1017
    %v1053 = vpop.f32.mrb[0].mxu0
    %v1054 = vadd.f32 %v1008, %v1053
    %v1055 = vpop.f32.mrb[0].mxu0
    %v1056 = vpop.f32.mrb[0].mxu0
    %v1057 = vpop.f32.mrb[0].mxu0
    %1058 = vdwg.mxu0
    %v1059 = vadd.f32 %v1054, %v65
    %v1060 = vxor.u32 %v1059, 2147483648
    %v1061 = vmul.f32 %v1060, 1.442695
    %v1062 = vpow.pop %v1061
    %v1063 = vadd.f32 %v1062, 1.0
    %v1064 = vrcp.pop %v1063
    %v1065 = vmul.f32 1.0, %v1064
    %v1066 = vtanh.pop %v1059
    %v1067 = vmul.f32 %v1065, %v892
    %1069 = vrot.lane.b32.xlu0 %v1066, 64
    %v1070 = vpop.permute.xlu0 %1069
    %v1072 = vmul.f32 %v1065, %v1070
    %1074 = vrot.lane.b32.xlu0 %v1072, 32
    %v1075 = vpop.permute.xlu0 %1074
    %v1077 = vadd.f32 %v1067, %v1075
    %v1078 = vtanh.pop %v1077
    %1080 = vrot.lane.b32.xlu0 %v1078, 64
    %v1081 = vpop.permute.xlu0 %1080
    %v1083 = vmul.f32 %v1065, %v1081
    %1084 = vmatprep.subr.bf16.mxu0 0
    %1085 = vmatpush1.bf16.msra.mxu0 %v134
    %1086 = vmatprep.subr.bf16.mxu0 0
    %1087 = vmatpush1.bf16.msra.mxu0 %v135
    %1088 = vmatprep.subr.bf16.mxu0 0
    %1089 = vmatpush1.bf16.msra.mxu0 0
    %1090 = vmatprep.subr.bf16.mxu0 0
    %1091 = vmatpush1.bf16.msra.mxu0 0
    %1092 = vmatprep.subr.bf16.mxu0 0
    %1093 = vmatpush1.bf16.msra.mxu0 0
    %1094 = vmatprep.subr.bf16.mxu0 0
    %1095 = vmatpush1.bf16.msra.mxu0 0
    %1096 = vmatprep.subr.bf16.mxu0 0
    %1097 = vmatpush1.bf16.msra.mxu0 0
    %1098 = vmatprep.subr.bf16.mxu0 0
    %1099 = vmatpush1.bf16.msra.mxu0 0
    %1100 = vmatprep.subr.bf16.mxu0 0
    %1101 = vmatpush1.bf16.msra.mxu0 0
    %1102 = vmatprep.subr.bf16.mxu0 0
    %1103 = vmatpush1.bf16.msra.mxu0 0
    %1104 = vmatprep.subr.bf16.mxu0 0
    %1105 = vmatpush1.bf16.msra.mxu0 0
    %1106 = vmatprep.subr.bf16.mxu0 0
    %1107 = vmatpush1.bf16.msra.mxu0 0
    %1108 = vmatprep.subr.bf16.mxu0 0
    %1109 = vmatpush1.bf16.msra.mxu0 0
    %1110 = vmatprep.subr.bf16.mxu0 0
    %1111 = vmatpush1.bf16.msra.mxu0 0
    %1112 = vmatprep.subr.bf16.mxu0 0
    %1113 = vmatpush1.bf16.msra.mxu0 0
    %1114 = vmatprep.subr.bf16.mxu0 0
    %1115 = vmatpush1.bf16.msra.mxu0 0
    %1116 = vmatprep.mubr.bf16.mxu0 0
    %1117 = vmatmul.mubr.bf16.gmra.mrb[0].mxu0 %v1017
    %v1118 = vpop.f32.mrb[0].mxu0
    %v1119 = vadd.f32 0.0, %v1118
    %v1120 = vpop.f32.mrb[0].mxu0
    %v1121 = vpop.f32.mrb[0].mxu0
    %v1122 = vpop.f32.mrb[0].mxu0
    %1123 = vdwg.mxu0
    %v1124 = vadd.f32 %v115, %v1119
    %v1125 = vadd.f32 %v1124, %v58
    %v1126 = vxor.u32 %v1125, 2147483648
    %v1127 = vmul.f32 %v1126, 1.442695
    %v1128 = vpow.pop %v1127
    %v1129 = vadd.f32 %v1128, 1.0
    %v1130 = vrcp.pop %v1129
    %v1131 = vmul.f32 1.0, %v1130
    %v1132 = vtanh.pop %v1125
    %v1133 = vmul.f32 %v1131, %v958
    %1135 = vrot.lane.b32.xlu0 %v1132, 64
    %v1136 = vpop.permute.xlu0 %1135
    %v1138 = vmul.f32 %v1131, %v1136
    %1140 = vrot.lane.b32.xlu0 %v1138, 32
    %v1141 = vpop.permute.xlu0 %1140
    %v1143 = vadd.f32 %v1133, %v1141
    %v1144 = vtanh.pop %v1143
    %1146 = vrot.lane.b32.xlu0 %v1144, 64
    %v1147 = vpop.permute.xlu0 %1146
    %v1149 = vmul.f32 %v1131, %v1147
    %v1150 = vpack.c.bf16 %v1149, %v1149
    %v1151 = vpack.c.bf16 %v1083, %v1083
    %1153 = vrot.lane.b32.xlu0 %v1151, 32
    %v1154 = vpop.permute.xlu0 %1153
    %v1156 = vsel %vm138, %v1154, 0
    %1158 = vmatprep.subr.bf16.mxu0 0
    %1159 = vmatpush1.bf16.msra.mxu0 %v217
    %1160 = vmatprep.subr.bf16.mxu0 0
    %1161 = vmatpush1.bf16.msra.mxu0 %v218
    %1162 = vmatprep.subr.bf16.mxu0 0
    %1163 = vmatpush1.bf16.msra.mxu0 0
    %1164 = vmatprep.subr.bf16.mxu0 0
    %1165 = vmatpush1.bf16.msra.mxu0 0
    %1166 = vmatprep.subr.bf16.mxu0 0
    %1167 = vmatpush1.bf16.msra.mxu0 0
    %1168 = vmatprep.subr.bf16.mxu0 0
    %1169 = vmatpush1.bf16.msra.mxu0 0
    %1170 = vmatprep.subr.bf16.mxu0 0
    %1171 = vmatpush1.bf16.msra.mxu0 0
    %1172 = vmatprep.subr.bf16.mxu0 0
    %1173 = vmatpush1.bf16.msra.mxu0 0
    %1174 = vmatprep.subr.bf16.mxu0 0
    %1175 = vmatpush1.bf16.msra.mxu0 0
    %1176 = vmatprep.subr.bf16.mxu0 0
    %1177 = vmatpush1.bf16.msra.mxu0 0
    %1178 = vmatprep.subr.bf16.mxu0 0
    %1179 = vmatpush1.bf16.msra.mxu0 0
    %1180 = vmatprep.subr.bf16.mxu0 0
    %1181 = vmatpush1.bf16.msra.mxu0 0
    %1182 = vmatprep.subr.bf16.mxu0 0
    %1183 = vmatpush1.bf16.msra.mxu0 0
    %1184 = vmatprep.subr.bf16.mxu0 0
    %1185 = vmatpush1.bf16.msra.mxu0 0
    %1186 = vmatprep.subr.bf16.mxu0 0
    %1187 = vmatpush1.bf16.msra.mxu0 0
    %1188 = vmatprep.subr.bf16.mxu0 0
    %1189 = vmatpush1.bf16.msra.mxu0 0
    %1190 = vmatprep.mubr.bf16.mxu0 0
    %1191 = vmatmul.mubr.bf16.gmra.mrb[0].mxu0 %v1156
    %v1192 = vpop.f32.mrb[0].mxu0
    %v1193 = vadd.f32 0.0, %v1192
    %v1194 = vpop.f32.mrb[0].mxu0
    %v1195 = vpop.f32.mrb[0].mxu0
    %v1196 = vpop.f32.mrb[0].mxu0
    %1197 = vdwg.mxu0
    %1199 = vrot.lane.b32.xlu0 %v1150, 32
    %v1200 = vpop.permute.xlu0 %1199
    %v1202 = vsel %vm138, %v1200, 0
    %1204 = vmatprep.subr.bf16.mxu0 0
    %1205 = vmatpush1.bf16.msra.mxu0 %v272
    %1206 = vmatprep.subr.bf16.mxu0 0
    %1207 = vmatpush1.bf16.msra.mxu0 %v273
    %1208 = vmatprep.subr.bf16.mxu0 0
    %1209 = vmatpush1.bf16.msra.mxu0 0
    %1210 = vmatprep.subr.bf16.mxu0 0
    %1211 = vmatpush1.bf16.msra.mxu0 0
    %1212 = vmatprep.subr.bf16.mxu0 0
    %1213 = vmatpush1.bf16.msra.mxu0 0
    %1214 = vmatprep.subr.bf16.mxu0 0
    %1215 = vmatpush1.bf16.msra.mxu0 0
    %1216 = vmatprep.subr.bf16.mxu0 0
    %1217 = vmatpush1.bf16.msra.mxu0 0
    %1218 = vmatprep.subr.bf16.mxu0 0
    %1219 = vmatpush1.bf16.msra.mxu0 0
    %1220 = vmatprep.subr.bf16.mxu0 0
    %1221 = vmatpush1.bf16.msra.mxu0 0
    %1222 = vmatprep.subr.bf16.mxu0 0
    %1223 = vmatpush1.bf16.msra.mxu0 0
    %1224 = vmatprep.subr.bf16.mxu0 0
    %1225 = vmatpush1.bf16.msra.mxu0 0
    %1226 = vmatprep.subr.bf16.mxu0 0
    %1227 = vmatpush1.bf16.msra.mxu0 0
    %1228 = vmatprep.subr.bf16.mxu0 0
    %1229 = vmatpush1.bf16.msra.mxu0 0
    %1230 = vmatprep.subr.bf16.mxu0 0
    %1231 = vmatpush1.bf16.msra.mxu0 0
    %1232 = vmatprep.subr.bf16.mxu0 0
    %1233 = vmatpush1.bf16.msra.mxu0 0
    %1234 = vmatprep.subr.bf16.mxu0 0
    %1235 = vmatpush1.bf16.msra.mxu0 0
    %1236 = vmatprep.mubr.bf16.mxu0 0
    %1237 = vmatmul.mubr.bf16.gmra.mrb[0].mxu0 %v1202
    %v1238 = vpop.f32.mrb[0].mxu0
    %v1239 = vadd.f32 %v1193, %v1238
    %v1240 = vpop.f32.mrb[0].mxu0
    %v1241 = vpop.f32.mrb[0].mxu0
    %v1242 = vpop.f32.mrb[0].mxu0
    %1243 = vdwg.mxu0
    %v1244 = vadd.f32 %v1239, %v65
    %v1245 = vxor.u32 %v1244, 2147483648
    %v1246 = vmul.f32 %v1245, 1.442695
    %v1247 = vpow.pop %v1246
    %v1248 = vadd.f32 %v1247, 1.0
    %v1249 = vrcp.pop %v1248
    %v1250 = vmul.f32 1.0, %v1249
    %v1251 = vtanh.pop %v1244
    %v1252 = vmul.f32 %v1250, %v1077
    %1254 = vrot.lane.b32.xlu0 %v1251, 64
    %v1255 = vpop.permute.xlu0 %1254
    %v1257 = vmul.f32 %v1250, %v1255
    %1259 = vrot.lane.b32.xlu0 %v1257, 32
    %v1260 = vpop.permute.xlu0 %1259
    %v1262 = vadd.f32 %v1252, %v1260
    %v1263 = vtanh.pop %v1262
    %1265 = vrot.lane.b32.xlu0 %v1263, 64
    %v1266 = vpop.permute.xlu0 %1265
    %v1268 = vmul.f32 %v1250, %v1266
    %1269 = vmatprep.subr.bf16.mxu0 0
    %1270 = vmatpush1.bf16.msra.mxu0 %v134
    %1271 = vmatprep.subr.bf16.mxu0 0
    %1272 = vmatpush1.bf16.msra.mxu0 %v135
    %1273 = vmatprep.subr.bf16.mxu0 0
    %1274 = vmatpush1.bf16.msra.mxu0 0
    %1275 = vmatprep.subr.bf16.mxu0 0
    %1276 = vmatpush1.bf16.msra.mxu0 0
    %1277 = vmatprep.subr.bf16.mxu0 0
    %1278 = vmatpush1.bf16.msra.mxu0 0
    %1279 = vmatprep.subr.bf16.mxu0 0
    %1280 = vmatpush1.bf16.msra.mxu0 0
    %1281 = vmatprep.subr.bf16.mxu0 0
    %1282 = vmatpush1.bf16.msra.mxu0 0
    %1283 = vmatprep.subr.bf16.mxu0 0
    %1284 = vmatpush1.bf16.msra.mxu0 0
    %1285 = vmatprep.subr.bf16.mxu0 0
    %1286 = vmatpush1.bf16.msra.mxu0 0
    %1287 = vmatprep.subr.bf16.mxu0 0
    %1288 = vmatpush1.bf16.msra.mxu0 0
    %1289 = vmatprep.subr.bf16.mxu0 0
    %1290 = vmatpush1.bf16.msra.mxu0 0
    %1291 = vmatprep.subr.bf16.mxu0 0
    %1292 = vmatpush1.bf16.msra.mxu0 0
    %1293 = vmatprep.subr.bf16.mxu0 0
    %1294 = vmatpush1.bf16.msra.mxu0 0
    %1295 = vmatprep.subr.bf16.mxu0 0
    %1296 = vmatpush1.bf16.msra.mxu0 0
    %1297 = vmatprep.subr.bf16.mxu0 0
    %1298 = vmatpush1.bf16.msra.mxu0 0
    %1299 = vmatprep.subr.bf16.mxu0 0
    %1300 = vmatpush1.bf16.msra.mxu0 0
    %1301 = vmatprep.mubr.bf16.mxu0 0
    %1302 = vmatmul.mubr.bf16.gmra.mrb[0].mxu0 %v1202
    %v1303 = vpop.f32.mrb[0].mxu0
    %v1304 = vadd.f32 0.0, %v1303
    %v1305 = vpop.f32.mrb[0].mxu0
    %v1306 = vpop.f32.mrb[0].mxu0
    %v1307 = vpop.f32.mrb[0].mxu0
    %1308 = vdwg.mxu0
    %v1309 = vadd.f32 %v120, %v1304
    %v1310 = vadd.f32 %v1309, %v58
    %v1311 = vxor.u32 %v1310, 2147483648
    %v1312 = vmul.f32 %v1311, 1.442695
    %v1313 = vpow.pop %v1312
    %v1314 = vadd.f32 %v1313, 1.0
    %v1315 = vrcp.pop %v1314
    %v1316 = vmul.f32 1.0, %v1315
    %v1317 = vtanh.pop %v1310
    %v1318 = vmul.f32 %v1316, %v1143
    %1320 = vrot.lane.b32.xlu0 %v1317, 64
    %v1321 = vpop.permute.xlu0 %1320
    %v1323 = vmul.f32 %v1316, %v1321
    %1325 = vrot.lane.b32.xlu0 %v1323, 32
    %v1326 = vpop.permute.xlu0 %1325
    %v1328 = vadd.f32 %v1318, %v1326
    %v1329 = vtanh.pop %v1328
    %1331 = vrot.lane.b32.xlu0 %v1329, 64
    %v1332 = vpop.permute.xlu0 %1331
    %v1334 = vmul.f32 %v1316, %v1332
    %v1335 = vpack.c.bf16 %v1334, %v1334
    %v1336 = vpack.c.bf16 %v1268, %v1268
    %1338 = vrot.lane.b32.xlu0 %v1336, 32
    %v1339 = vpop.permute.xlu0 %1338
    %v1341 = vsel %vm138, %v1339, 0
    %1343 = vmatprep.subr.bf16.mxu0 0
    %1344 = vmatpush1.bf16.msra.mxu0 %v217
    %1345 = vmatprep.subr.bf16.mxu0 0
    %1346 = vmatpush1.bf16.msra.mxu0 %v218
    %1347 = vmatprep.subr.bf16.mxu0 0
    %1348 = vmatpush1.bf16.msra.mxu0 0
    %1349 = vmatprep.subr.bf16.mxu0 0
    %1350 = vmatpush1.bf16.msra.mxu0 0
    %1351 = vmatprep.subr.bf16.mxu0 0
    %1352 = vmatpush1.bf16.msra.mxu0 0
    %1353 = vmatprep.subr.bf16.mxu0 0
    %1354 = vmatpush1.bf16.msra.mxu0 0
    %1355 = vmatprep.subr.bf16.mxu0 0
    %1356 = vmatpush1.bf16.msra.mxu0 0
    %1357 = vmatprep.subr.bf16.mxu0 0
    %1358 = vmatpush1.bf16.msra.mxu0 0
    %1359 = vmatprep.subr.bf16.mxu0 0
    %1360 = vmatpush1.bf16.msra.mxu0 0
    %1361 = vmatprep.subr.bf16.mxu0 0
    %1362 = vmatpush1.bf16.msra.mxu0 0
    %1363 = vmatprep.subr.bf16.mxu0 0
    %1364 = vmatpush1.bf16.msra.mxu0 0
    %1365 = vmatprep.subr.bf16.mxu0 0
    %1366 = vmatpush1.bf16.msra.mxu0 0
    %1367 = vmatprep.subr.bf16.mxu0 0
    %1368 = vmatpush1.bf16.msra.mxu0 0
    %1369 = vmatprep.subr.bf16.mxu0 0
    %1370 = vmatpush1.bf16.msra.mxu0 0
    %1371 = vmatprep.subr.bf16.mxu0 0
    %1372 = vmatpush1.bf16.msra.mxu0 0
    %1373 = vmatprep.subr.bf16.mxu0 0
    %1374 = vmatpush1.bf16.msra.mxu0 0
    %1375 = vmatprep.mubr.bf16.mxu0 0
    %1376 = vmatmul.mubr.bf16.gmra.mrb[0].mxu0 %v1341
    %v1377 = vpop.f32.mrb[0].mxu0
    %v1378 = vadd.f32 0.0, %v1377
    %v1379 = vpop.f32.mrb[0].mxu0
    %v1380 = vpop.f32.mrb[0].mxu0
    %v1381 = vpop.f32.mrb[0].mxu0
    %1382 = vdwg.mxu0
    %1384 = vrot.lane.b32.xlu0 %v1335, 32
    %v1385 = vpop.permute.xlu0 %1384
    %v1387 = vsel %vm138, %v1385, 0
    %1389 = vmatprep.subr.bf16.mxu0 0
    %1390 = vmatpush1.bf16.msra.mxu0 %v272
    %1391 = vmatprep.subr.bf16.mxu0 0
    %1392 = vmatpush1.bf16.msra.mxu0 %v273
    %1393 = vmatprep.subr.bf16.mxu0 0
    %1394 = vmatpush1.bf16.msra.mxu0 0
    %1395 = vmatprep.subr.bf16.mxu0 0
    %1396 = vmatpush1.bf16.msra.mxu0 0
    %1397 = vmatprep.subr.bf16.mxu0 0
    %1398 = vmatpush1.bf16.msra.mxu0 0
    %1399 = vmatprep.subr.bf16.mxu0 0
    %1400 = vmatpush1.bf16.msra.mxu0 0
    %1401 = vmatprep.subr.bf16.mxu0 0
    %1402 = vmatpush1.bf16.msra.mxu0 0
    %1403 = vmatprep.subr.bf16.mxu0 0
    %1404 = vmatpush1.bf16.msra.mxu0 0
    %1405 = vmatprep.subr.bf16.mxu0 0
    %1406 = vmatpush1.bf16.msra.mxu0 0
    %1407 = vmatprep.subr.bf16.mxu0 0
    %1408 = vmatpush1.bf16.msra.mxu0 0
    %1409 = vmatprep.subr.bf16.mxu0 0
    %1410 = vmatpush1.bf16.msra.mxu0 0
    %1411 = vmatprep.subr.bf16.mxu0 0
    %1412 = vmatpush1.bf16.msra.mxu0 0
    %1413 = vmatprep.subr.bf16.mxu0 0
    %1414 = vmatpush1.bf16.msra.mxu0 0
    %1415 = vmatprep.subr.bf16.mxu0 0
    %1416 = vmatpush1.bf16.msra.mxu0 0
    %1417 = vmatprep.subr.bf16.mxu0 0
    %1418 = vmatpush1.bf16.msra.mxu0 0
    %1419 = vmatprep.subr.bf16.mxu0 0
    %1420 = vmatpush1.bf16.msra.mxu0 0
    %1421 = vmatprep.mubr.bf16.mxu0 0
    %1422 = vmatmul.mubr.bf16.gmra.mrb[0].mxu0 %v1387
    %v1423 = vpop.f32.mrb[0].mxu0
    %v1424 = vadd.f32 %v1378, %v1423
    %v1425 = vpop.f32.mrb[0].mxu0
    %v1426 = vpop.f32.mrb[0].mxu0
    %v1427 = vpop.f32.mrb[0].mxu0
    %1428 = vdwg.mxu0
    %v1429 = vadd.f32 %v1424, %v65
    %v1430 = vxor.u32 %v1429, 2147483648
    %v1431 = vmul.f32 %v1430, 1.442695
    %v1432 = vpow.pop %v1431
    %v1433 = vadd.f32 %v1432, 1.0
    %v1434 = vrcp.pop %v1433
    %v1435 = vmul.f32 1.0, %v1434
    %v1436 = vtanh.pop %v1429
    %v1437 = vmul.f32 %v1435, %v1262
    %1439 = vrot.lane.b32.xlu0 %v1436, 64
    %v1440 = vpop.permute.xlu0 %1439
    %v1442 = vmul.f32 %v1435, %v1440
    %1444 = vrot.lane.b32.xlu0 %v1442, 32
    %v1445 = vpop.permute.xlu0 %1444
    %v1447 = vadd.f32 %v1437, %v1445
    %v1448 = vtanh.pop %v1447
    %1450 = vrot.lane.b32.xlu0 %v1448, 64
    %v1451 = vpop.permute.xlu0 %1450
    %v1453 = vmul.f32 %v1435, %v1451
    %1454 = vmatprep.subr.bf16.mxu0 0
    %1455 = vmatpush1.bf16.msra.mxu0 %v134
    %1456 = vmatprep.subr.bf16.mxu0 0
    %1457 = vmatpush1.bf16.msra.mxu0 %v135
    %1458 = vmatprep.subr.bf16.mxu0 0
    %1459 = vmatpush1.bf16.msra.mxu0 0
    %1460 = vmatprep.subr.bf16.mxu0 0
    %1461 = vmatpush1.bf16.msra.mxu0 0
    %1462 = vmatprep.subr.bf16.mxu0 0
    %1463 = vmatpush1.bf16.msra.mxu0 0
    %1464 = vmatprep.subr.bf16.mxu0 0
    %1465 = vmatpush1.bf16.msra.mxu0 0
    %1466 = vmatprep.subr.bf16.mxu0 0
    %1467 = vmatpush1.bf16.msra.mxu0 0
    %1468 = vmatprep.subr.bf16.mxu0 0
    %1469 = vmatpush1.bf16.msra.mxu0 0
    %1470 = vmatprep.subr.bf16.mxu0 0
    %1471 = vmatpush1.bf16.msra.mxu0 0
    %1472 = vmatprep.subr.bf16.mxu0 0
    %1473 = vmatpush1.bf16.msra.mxu0 0
    %1474 = vmatprep.subr.bf16.mxu0 0
    %1475 = vmatpush1.bf16.msra.mxu0 0
    %1476 = vmatprep.subr.bf16.mxu0 0
    %1477 = vmatpush1.bf16.msra.mxu0 0
    %1478 = vmatprep.subr.bf16.mxu0 0
    %1479 = vmatpush1.bf16.msra.mxu0 0
    %1480 = vmatprep.subr.bf16.mxu0 0
    %1481 = vmatpush1.bf16.msra.mxu0 0
    %1482 = vmatprep.subr.bf16.mxu0 0
    %1483 = vmatpush1.bf16.msra.mxu0 0
    %1484 = vmatprep.subr.bf16.mxu0 0
    %1485 = vmatpush1.bf16.msra.mxu0 0
    %1486 = vmatprep.mubr.bf16.mxu0 0
    %1487 = vmatmul.mubr.bf16.gmra.mrb[0].mxu0 %v1387
    %v1488 = vpop.f32.mrb[0].mxu0
    %v1489 = vadd.f32 0.0, %v1488
    %v1490 = vpop.f32.mrb[0].mxu0
    %v1491 = vpop.f32.mrb[0].mxu0
    %v1492 = vpop.f32.mrb[0].mxu0
    %1493 = vdwg.mxu0
    %v1494 = vadd.f32 %v125, %v1489
    %v1495 = vadd.f32 %v1494, %v58
    %v1496 = vxor.u32 %v1495, 2147483648
    %v1497 = vmul.f32 %v1496, 1.442695
    %v1498 = vpow.pop %v1497
    %v1499 = vadd.f32 %v1498, 1.0
    %v1500 = vrcp.pop %v1499
    %v1501 = vmul.f32 1.0, %v1500
    %v1502 = vtanh.pop %v1495
    %v1503 = vmul.f32 %v1501, %v1328
    %1505 = vrot.lane.b32.xlu0 %v1502, 64
    %v1506 = vpop.permute.xlu0 %1505
    %v1508 = vmul.f32 %v1501, %v1506
    %1510 = vrot.lane.b32.xlu0 %v1508, 32
    %v1511 = vpop.permute.xlu0 %1510
    %v1513 = vadd.f32 %v1503, %v1511
    %v1514 = vtanh.pop %v1513
    %1516 = vrot.lane.b32.xlu0 %v1514, 64
    %v1517 = vpop.permute.xlu0 %1516
    %v1519 = vmul.f32 %v1501, %v1517
    %v1520 = vpack.c.bf16 %v1519, %v1519
    %v1521 = vpack.c.bf16 %v1453, %v1453
    %1523 = vrot.lane.b32.xlu0 %v1521, 32
    %v1524 = vpop.permute.xlu0 %1523
    %v1526 = vsel %vm138, %v1524, 0
    %1528 = vmatprep.subr.bf16.mxu0 0
    %1529 = vmatpush1.bf16.msra.mxu0 %v217
    %1530 = vmatprep.subr.bf16.mxu0 0
    %1531 = vmatpush1.bf16.msra.mxu0 %v218
    %1532 = vmatprep.subr.bf16.mxu0 0
    %1533 = vmatpush1.bf16.msra.mxu0 0
    %1534 = vmatprep.subr.bf16.mxu0 0
    %1535 = vmatpush1.bf16.msra.mxu0 0
    %1536 = vmatprep.subr.bf16.mxu0 0
    %1537 = vmatpush1.bf16.msra.mxu0 0
    %1538 = vmatprep.subr.bf16.mxu0 0
    %1539 = vmatpush1.bf16.msra.mxu0 0
    %1540 = vmatprep.subr.bf16.mxu0 0
    %1541 = vmatpush1.bf16.msra.mxu0 0
    %1542 = vmatprep.subr.bf16.mxu0 0
    %1543 = vmatpush1.bf16.msra.mxu0 0
    %1544 = vmatprep.subr.bf16.mxu0 0
    %1545 = vmatpush1.bf16.msra.mxu0 0
    %1546 = vmatprep.subr.bf16.mxu0 0
    %1547 = vmatpush1.bf16.msra.mxu0 0
    %1548 = vmatprep.subr.bf16.mxu0 0
    %1549 = vmatpush1.bf16.msra.mxu0 0
    %1550 = vmatprep.subr.bf16.mxu0 0
    %1551 = vmatpush1.bf16.msra.mxu0 0
    %1552 = vmatprep.subr.bf16.mxu0 0
    %1553 = vmatpush1.bf16.msra.mxu0 0
    %1554 = vmatprep.subr.bf16.mxu0 0
    %1555 = vmatpush1.bf16.msra.mxu0 0
    %1556 = vmatprep.subr.bf16.mxu0 0
    %1557 = vmatpush1.bf16.msra.mxu0 0
    %1558 = vmatprep.subr.bf16.mxu0 0
    %1559 = vmatpush1.bf16.msra.mxu0 0
    %1560 = vmatprep.mubr.bf16.mxu0 0
    %1561 = vmatmul.mubr.bf16.gmra.mrb[0].mxu0 %v1526
    %v1562 = vpop.f32.mrb[0].mxu0
    %v1563 = vadd.f32 0.0, %v1562
    %v1564 = vpop.f32.mrb[0].mxu0
    %v1565 = vpop.f32.mrb[0].mxu0
    %v1566 = vpop.f32.mrb[0].mxu0
    %1567 = vdwg.mxu0
    %1569 = vrot.lane.b32.xlu0 %v1520, 32
    %v1570 = vpop.permute.xlu0 %1569
    %v1572 = vsel %vm138, %v1570, 0
    %1574 = vmatprep.subr.bf16.mxu0 0
    %1575 = vmatpush1.bf16.msra.mxu0 %v272
    %1576 = vmatprep.subr.bf16.mxu0 0
    %1577 = vmatpush1.bf16.msra.mxu0 %v273
    %1578 = vmatprep.subr.bf16.mxu0 0
    %1579 = vmatpush1.bf16.msra.mxu0 0
    %1580 = vmatprep.subr.bf16.mxu0 0
    %1581 = vmatpush1.bf16.msra.mxu0 0
    %1582 = vmatprep.subr.bf16.mxu0 0
    %1583 = vmatpush1.bf16.msra.mxu0 0
    %1584 = vmatprep.subr.bf16.mxu0 0
    %1585 = vmatpush1.bf16.msra.mxu0 0
    %1586 = vmatprep.subr.bf16.mxu0 0
    %1587 = vmatpush1.bf16.msra.mxu0 0
    %1588 = vmatprep.subr.bf16.mxu0 0
    %1589 = vmatpush1.bf16.msra.mxu0 0
    %1590 = vmatprep.subr.bf16.mxu0 0
    %1591 = vmatpush1.bf16.msra.mxu0 0
    %1592 = vmatprep.subr.bf16.mxu0 0
    %1593 = vmatpush1.bf16.msra.mxu0 0
    %1594 = vmatprep.subr.bf16.mxu0 0
    %1595 = vmatpush1.bf16.msra.mxu0 0
    %1596 = vmatprep.subr.bf16.mxu0 0
    %1597 = vmatpush1.bf16.msra.mxu0 0
    %1598 = vmatprep.subr.bf16.mxu0 0
    %1599 = vmatpush1.bf16.msra.mxu0 0
    %1600 = vmatprep.subr.bf16.mxu0 0
    %1601 = vmatpush1.bf16.msra.mxu0 0
    %1602 = vmatprep.subr.bf16.mxu0 0
    %1603 = vmatpush1.bf16.msra.mxu0 0
    %1604 = vmatprep.subr.bf16.mxu0 0
    %1605 = vmatpush1.bf16.msra.mxu0 0
    %1606 = vmatprep.mubr.bf16.mxu0 0
    %1607 = vmatmul.mubr.bf16.gmra.mrb[0].mxu0 %v1572
    %v1608 = vpop.f32.mrb[0].mxu0
    %v1609 = vadd.f32 %v1563, %v1608
    %v1610 = vpop.f32.mrb[0].mxu0
    %v1611 = vpop.f32.mrb[0].mxu0
    %v1612 = vpop.f32.mrb[0].mxu0
    %1613 = vdwg.mxu0
    %v1614 = vadd.f32 %v1609, %v65
    %v1615 = vxor.u32 %v1614, 2147483648
    %v1616 = vmul.f32 %v1615, 1.442695
    %v1617 = vpow.pop %v1616
    %v1618 = vadd.f32 %v1617, 1.0
    %v1619 = vrcp.pop %v1618
    %v1620 = vmul.f32 1.0, %v1619
    %v1621 = vtanh.pop %v1614
    %v1622 = vmul.f32 %v1620, %v1447
    %1624 = vrot.lane.b32.xlu0 %v1621, 64
    %v1625 = vpop.permute.xlu0 %1624
    %v1627 = vmul.f32 %v1620, %v1625
    %1629 = vrot.lane.b32.xlu0 %v1627, 32
    %v1630 = vpop.permute.xlu0 %1629
    %v1632 = vadd.f32 %v1622, %v1630
    %v1633 = vtanh.pop %v1632
    %1635 = vrot.lane.b32.xlu0 %v1633, 64
    %v1636 = vpop.permute.xlu0 %1635
    %v1638 = vmul.f32 %v1620, %v1636
    %v1639 = vpack.c.bf16 %v1638, %v1638
    %1640 = vmatprep.subr.bf16.mxu0 0
    %1641 = vmatpush1.bf16.msra.mxu0 %v134
    %1642 = vmatprep.subr.bf16.mxu0 0
    %1643 = vmatpush1.bf16.msra.mxu0 %v135
    %1644 = vmatprep.subr.bf16.mxu0 0
    %1645 = vmatpush1.bf16.msra.mxu0 0
    %1646 = vmatprep.subr.bf16.mxu0 0
    %1647 = vmatpush1.bf16.msra.mxu0 0
    %1648 = vmatprep.subr.bf16.mxu0 0
    %1649 = vmatpush1.bf16.msra.mxu0 0
    %1650 = vmatprep.subr.bf16.mxu0 0
    %1651 = vmatpush1.bf16.msra.mxu0 0
    %1652 = vmatprep.subr.bf16.mxu0 0
    %1653 = vmatpush1.bf16.msra.mxu0 0
    %1654 = vmatprep.subr.bf16.mxu0 0
    %1655 = vmatpush1.bf16.msra.mxu0 0
    %1656 = vmatprep.subr.bf16.mxu0 0
    %1657 = vmatpush1.bf16.msra.mxu0 0
    %1658 = vmatprep.subr.bf16.mxu0 0
    %1659 = vmatpush1.bf16.msra.mxu0 0
    %1660 = vmatprep.subr.bf16.mxu0 0
    %1661 = vmatpush1.bf16.msra.mxu0 0
    %1662 = vmatprep.subr.bf16.mxu0 0
    %1663 = vmatpush1.bf16.msra.mxu0 0
    %1664 = vmatprep.subr.bf16.mxu0 0
    %1665 = vmatpush1.bf16.msra.mxu0 0
    %1666 = vmatprep.subr.bf16.mxu0 0
    %1667 = vmatpush1.bf16.msra.mxu0 0
    %1668 = vmatprep.subr.bf16.mxu0 0
    %1669 = vmatpush1.bf16.msra.mxu0 0
    %1670 = vmatprep.subr.bf16.mxu0 0
    %1671 = vmatpush1.bf16.msra.mxu0 0
    %1672 = vmatprep.mubr.bf16.mxu0 0
    %1673 = vmatmul.mubr.bf16.gmra.mrb[0].mxu0 %v1572
    %v1674 = vpop.f32.mrb[0].mxu0
    %v1675 = vadd.f32 0.0, %v1674
    %v1676 = vpop.f32.mrb[0].mxu0
    %v1677 = vpop.f32.mrb[0].mxu0
    %v1678 = vpop.f32.mrb[0].mxu0
    %1679 = vdwg.mxu0
    %1681 = vrot.lane.b32.xlu0 %v1639, 32
    %v1682 = vpop.permute.xlu0 %1681
    %v1687 = vunpack.c.l.b16 %v67
    %v1688 = vunpack.c.l.b16 %v68
    %v1689 = vunpack.c.l.b16 %v69
    %v1690 = vunpack.c.l.b16 %v70
    %v1691 = vpack.c.b16 %v1688, %v1687
    %v1692 = vpack.c.b16 %v1690, %v1689
    %v1696 = vsel %vm138, %v1682, 0
    %1698 = vmatprep.subr.bf16.mxu0 0
    %1699 = vmatpush1.bf16.msra.mxu0 %v1691
    %1700 = vmatprep.subr.bf16.mxu0 0
    %1701 = vmatpush1.bf16.msra.mxu0 %v1692
    %1702 = vmatprep.subr.bf16.mxu0 0
    %1703 = vmatpush1.bf16.msra.mxu0 0
    %1704 = vmatprep.subr.bf16.mxu0 0
    %1705 = vmatpush1.bf16.msra.mxu0 0
    %1706 = vmatprep.subr.bf16.mxu0 0
    %1707 = vmatpush1.bf16.msra.mxu0 0
    %1708 = vmatprep.subr.bf16.mxu0 0
    %1709 = vmatpush1.bf16.msra.mxu0 0
    %1710 = vmatprep.subr.bf16.mxu0 0
    %1711 = vmatpush1.bf16.msra.mxu0 0
    %1712 = vmatprep.subr.bf16.mxu0 0
    %1713 = vmatpush1.bf16.msra.mxu0 0
    %1714 = vmatprep.subr.bf16.mxu0 0
    %1715 = vmatpush1.bf16.msra.mxu0 0
    %1716 = vmatprep.subr.bf16.mxu0 0
    %1717 = vmatpush1.bf16.msra.mxu0 0
    %1718 = vmatprep.subr.bf16.mxu0 0
    %1719 = vmatpush1.bf16.msra.mxu0 0
    %1720 = vmatprep.subr.bf16.mxu0 0
    %1721 = vmatpush1.bf16.msra.mxu0 0
    %1722 = vmatprep.subr.bf16.mxu0 0
    %1723 = vmatpush1.bf16.msra.mxu0 0
    %1724 = vmatprep.subr.bf16.mxu0 0
    %1725 = vmatpush1.bf16.msra.mxu0 0
    %1726 = vmatprep.subr.bf16.mxu0 0
    %1727 = vmatpush1.bf16.msra.mxu0 0
    %1728 = vmatprep.subr.bf16.mxu0 0
    %1729 = vmatpush1.bf16.msra.mxu0 0
    %1730 = vmatprep.mubr.bf16.mxu0 0
    %1731 = vmatmul.mubr.bf16.gmra.mrb[0].mxu0 %v1696
    %v1732 = vpop.f32.mrb[0].mxu0
    %v1733 = vadd.f32 %v1675, %v1732
    %v1734 = vpop.f32.mrb[0].mxu0
    %v1735 = vpop.f32.mrb[0].mxu0
    %v1736 = vpop.f32.mrb[0].mxu0
    %1737 = vdwg.mxu0
    %v1738 = vadd.f32 %v1733, %v76
    %v1739 = vxor.u32 %v1738, 2147483648
    %v1740 = vmul.f32 %v1739, 1.442695
    %v1741 = vpow.pop %v1740
    %v1742 = vadd.f32 %v1741, 1.0
    %v1743 = vrcp.pop %v1742
    %v1744 = vmul.f32 1.0, %v1743
    %v1745 = vtanh.pop %v1738
    %v1746 = vmul.f32 %v1744, %v1513
    %1748 = vrot.lane.b32.xlu0 %v1745, 64
    %v1749 = vpop.permute.xlu0 %1748
    %v1751 = vmul.f32 %v1744, %v1749
    %1753 = vrot.lane.b32.xlu0 %v1751, 32
    %v1754 = vpop.permute.xlu0 %1753
    %v1756 = vadd.f32 %v1746, %v1754
    %v1757 = vtanh.pop %v1756
    %1759 = vrot.lane.b32.xlu0 %v1757, 64
    %v1760 = vpop.permute.xlu0 %1759
    %v1762 = vmul.f32 %v1744, %v1760
    %v1763 = vpack.c.bf16 %v1762, %v1762
    %1764 = vmatprep.subr.bf16.mxu0 0
    %1765 = vmatpush1.bf16.msra.mxu0 %v217
    %1766 = vmatprep.subr.bf16.mxu0 0
    %1767 = vmatpush1.bf16.msra.mxu0 %v218
    %1768 = vmatprep.subr.bf16.mxu0 0
    %1769 = vmatpush1.bf16.msra.mxu0 0
    %1770 = vmatprep.subr.bf16.mxu0 0
    %1771 = vmatpush1.bf16.msra.mxu0 0
    %1772 = vmatprep.subr.bf16.mxu0 0
    %1773 = vmatpush1.bf16.msra.mxu0 0
    %1774 = vmatprep.subr.bf16.mxu0 0
    %1775 = vmatpush1.bf16.msra.mxu0 0
    %1776 = vmatprep.subr.bf16.mxu0 0
    %1777 = vmatpush1.bf16.msra.mxu0 0
    %1778 = vmatprep.subr.bf16.mxu0 0
    %1779 = vmatpush1.bf16.msra.mxu0 0
    %1780 = vmatprep.subr.bf16.mxu0 0
    %1781 = vmatpush1.bf16.msra.mxu0 0
    %1782 = vmatprep.subr.bf16.mxu0 0
    %1783 = vmatpush1.bf16.msra.mxu0 0
    %1784 = vmatprep.subr.bf16.mxu0 0
    %1785 = vmatpush1.bf16.msra.mxu0 0
    %1786 = vmatprep.subr.bf16.mxu0 0
    %1787 = vmatpush1.bf16.msra.mxu0 0
    %1788 = vmatprep.subr.bf16.mxu0 0
    %1789 = vmatpush1.bf16.msra.mxu0 0
    %1790 = vmatprep.subr.bf16.mxu0 0
    %1791 = vmatpush1.bf16.msra.mxu0 0
    %1792 = vmatprep.subr.bf16.mxu0 0
    %1793 = vmatpush1.bf16.msra.mxu0 0
    %1794 = vmatprep.subr.bf16.mxu0 0
    %1795 = vmatpush1.bf16.msra.mxu0 0
    %1796 = vmatprep.mubr.bf16.mxu0 0
    %1797 = vmatmul.mubr.bf16.gmra.mrb[0].mxu0 %v1696
    %v1798 = vpop.f32.mrb[0].mxu0
    %v1799 = vadd.f32 0.0, %v1798
    %v1800 = vpop.f32.mrb[0].mxu0
    %v1801 = vpop.f32.mrb[0].mxu0
    %v1802 = vpop.f32.mrb[0].mxu0
    %1803 = vdwg.mxu0
    %1805 = vrot.lane.b32.xlu0 %v1763, 32
    %v1806 = vpop.permute.xlu0 %1805
    %v1808 = vsel %vm138, %v1806, 0
    %1810 = vmatprep.subr.bf16.mxu0 0
    %1811 = vmatpush1.bf16.msra.mxu0 %v272
    %1812 = vmatprep.subr.bf16.mxu0 0
    %1813 = vmatpush1.bf16.msra.mxu0 %v273
    %1814 = vmatprep.subr.bf16.mxu0 0
    %1815 = vmatpush1.bf16.msra.mxu0 0
    %1816 = vmatprep.subr.bf16.mxu0 0
    %1817 = vmatpush1.bf16.msra.mxu0 0
    %1818 = vmatprep.subr.bf16.mxu0 0
    %1819 = vmatpush1.bf16.msra.mxu0 0
    %1820 = vmatprep.subr.bf16.mxu0 0
    %1821 = vmatpush1.bf16.msra.mxu0 0
    %1822 = vmatprep.subr.bf16.mxu0 0
    %1823 = vmatpush1.bf16.msra.mxu0 0
    %1824 = vmatprep.subr.bf16.mxu0 0
    %1825 = vmatpush1.bf16.msra.mxu0 0
    %1826 = vmatprep.subr.bf16.mxu0 0
    %1827 = vmatpush1.bf16.msra.mxu0 0
    %1828 = vmatprep.subr.bf16.mxu0 0
    %1829 = vmatpush1.bf16.msra.mxu0 0
    %1830 = vmatprep.subr.bf16.mxu0 0
    %1831 = vmatpush1.bf16.msra.mxu0 0
    %1832 = vmatprep.subr.bf16.mxu0 0
    %1833 = vmatpush1.bf16.msra.mxu0 0
    %1834 = vmatprep.subr.bf16.mxu0 0
    %1835 = vmatpush1.bf16.msra.mxu0 0
    %1836 = vmatprep.subr.bf16.mxu0 0
    %1837 = vmatpush1.bf16.msra.mxu0 0
    %1838 = vmatprep.subr.bf16.mxu0 0
    %1839 = vmatpush1.bf16.msra.mxu0 0
    %1840 = vmatprep.subr.bf16.mxu0 0
    %1841 = vmatpush1.bf16.msra.mxu0 0
    %1842 = vmatprep.mubr.bf16.mxu0 0
    %1843 = vmatmul.mubr.bf16.gmra.mrb[0].mxu0 %v1808
    %v1844 = vpop.f32.mrb[0].mxu0
    %v1845 = vadd.f32 %v1799, %v1844
    %v1846 = vpop.f32.mrb[0].mxu0
    %v1847 = vpop.f32.mrb[0].mxu0
    %v1848 = vpop.f32.mrb[0].mxu0
    %1849 = vdwg.mxu0
    %v1850 = vadd.f32 %v1845, %v65
    %v1851 = vxor.u32 %v1850, 2147483648
    %v1852 = vmul.f32 %v1851, 1.442695
    %v1853 = vpow.pop %v1852
    %v1854 = vadd.f32 %v1853, 1.0
    %v1855 = vrcp.pop %v1854
    %v1856 = vmul.f32 1.0, %v1855
    %v1857 = vtanh.pop %v1850
    %v1858 = vmul.f32 %v1856, %v1632
    %1860 = vrot.lane.b32.xlu0 %v1857, 64
    %v1861 = vpop.permute.xlu0 %1860
    %v1863 = vmul.f32 %v1856, %v1861
    %1865 = vrot.lane.b32.xlu0 %v1863, 32
    %v1866 = vpop.permute.xlu0 %1865
    %v1868 = vadd.f32 %v1858, %v1866
    %v1869 = vtanh.pop %v1868
    %1871 = vrot.lane.b32.xlu0 %v1869, 64
    %v1872 = vpop.permute.xlu0 %1871
    %v1874 = vmul.f32 %v1856, %v1872
    %v1875 = vpack.c.bf16 %v1874, %v1874
    %1876 = vmatprep.subr.bf16.mxu0 0
    %1877 = vmatpush1.bf16.msra.mxu0 %v134
    %1878 = vmatprep.subr.bf16.mxu0 0
    %1879 = vmatpush1.bf16.msra.mxu0 %v135
    %1880 = vmatprep.subr.bf16.mxu0 0
    %1881 = vmatpush1.bf16.msra.mxu0 0
    %1882 = vmatprep.subr.bf16.mxu0 0
    %1883 = vmatpush1.bf16.msra.mxu0 0
    %1884 = vmatprep.subr.bf16.mxu0 0
    %1885 = vmatpush1.bf16.msra.mxu0 0
    %1886 = vmatprep.subr.bf16.mxu0 0
    %1887 = vmatpush1.bf16.msra.mxu0 0
    %1888 = vmatprep.subr.bf16.mxu0 0
    %1889 = vmatpush1.bf16.msra.mxu0 0
    %1890 = vmatprep.subr.bf16.mxu0 0
    %1891 = vmatpush1.bf16.msra.mxu0 0
    %1892 = vmatprep.subr.bf16.mxu0 0
    %1893 = vmatpush1.bf16.msra.mxu0 0
    %1894 = vmatprep.subr.bf16.mxu0 0
    %1895 = vmatpush1.bf16.msra.mxu0 0
    %1896 = vmatprep.subr.bf16.mxu0 0
    %1897 = vmatpush1.bf16.msra.mxu0 0
    %1898 = vmatprep.subr.bf16.mxu0 0
    %1899 = vmatpush1.bf16.msra.mxu0 0
    %1900 = vmatprep.subr.bf16.mxu0 0
    %1901 = vmatpush1.bf16.msra.mxu0 0
    %1902 = vmatprep.subr.bf16.mxu0 0
    %1903 = vmatpush1.bf16.msra.mxu0 0
    %1904 = vmatprep.subr.bf16.mxu0 0
    %1905 = vmatpush1.bf16.msra.mxu0 0
    %1906 = vmatprep.subr.bf16.mxu0 0
    %1907 = vmatpush1.bf16.msra.mxu0 0
    %1908 = vmatprep.mubr.bf16.mxu0 0
    %1909 = vmatmul.mubr.bf16.gmra.mrb[0].mxu0 %v1808
    %v1910 = vpop.f32.mrb[0].mxu0
    %v1911 = vadd.f32 0.0, %v1910
    %v1912 = vpop.f32.mrb[0].mxu0
    %v1913 = vpop.f32.mrb[0].mxu0
    %v1914 = vpop.f32.mrb[0].mxu0
    %1915 = vdwg.mxu0
    %1917 = vrot.lane.b32.xlu0 %v1875, 32
    %v1918 = vpop.permute.xlu0 %1917
    %v1920 = vsel %vm138, %v1918, 0
    %1922 = vmatprep.subr.bf16.mxu0 0
    %1923 = vmatpush1.bf16.msra.mxu0 %v1691
    %1924 = vmatprep.subr.bf16.mxu0 0
    %1925 = vmatpush1.bf16.msra.mxu0 %v1692
    %1926 = vmatprep.subr.bf16.mxu0 0
    %1927 = vmatpush1.bf16.msra.mxu0 0
    %1928 = vmatprep.subr.bf16.mxu0 0
    %1929 = vmatpush1.bf16.msra.mxu0 0
    %1930 = vmatprep.subr.bf16.mxu0 0
    %1931 = vmatpush1.bf16.msra.mxu0 0
    %1932 = vmatprep.subr.bf16.mxu0 0
    %1933 = vmatpush1.bf16.msra.mxu0 0
    %1934 = vmatprep.subr.bf16.mxu0 0
    %1935 = vmatpush1.bf16.msra.mxu0 0
    %1936 = vmatprep.subr.bf16.mxu0 0
    %1937 = vmatpush1.bf16.msra.mxu0 0
    %1938 = vmatprep.subr.bf16.mxu0 0
    %1939 = vmatpush1.bf16.msra.mxu0 0
    %1940 = vmatprep.subr.bf16.mxu0 0
    %1941 = vmatpush1.bf16.msra.mxu0 0
    %1942 = vmatprep.subr.bf16.mxu0 0
    %1943 = vmatpush1.bf16.msra.mxu0 0
    %1944 = vmatprep.subr.bf16.mxu0 0
    %1945 = vmatpush1.bf16.msra.mxu0 0
    %1946 = vmatprep.subr.bf16.mxu0 0
    %1947 = vmatpush1.bf16.msra.mxu0 0
    %1948 = vmatprep.subr.bf16.mxu0 0
    %1949 = vmatpush1.bf16.msra.mxu0 0
    %1950 = vmatprep.subr.bf16.mxu0 0
    %1951 = vmatpush1.bf16.msra.mxu0 0
    %1952 = vmatprep.subr.bf16.mxu0 0
    %1953 = vmatpush1.bf16.msra.mxu0 0
    %1954 = vmatprep.mubr.bf16.mxu0 0
    %1955 = vmatmul.mubr.bf16.gmra.mrb[0].mxu0 %v1920
    %v1956 = vpop.f32.mrb[0].mxu0
    %v1957 = vadd.f32 %v1911, %v1956
    %v1958 = vpop.f32.mrb[0].mxu0
    %v1959 = vpop.f32.mrb[0].mxu0
    %v1960 = vpop.f32.mrb[0].mxu0
    %1961 = vdwg.mxu0
    %v1962 = vadd.f32 %v1957, %v76
    %v1963 = vxor.u32 %v1962, 2147483648
    %v1964 = vmul.f32 %v1963, 1.442695
    %v1965 = vpow.pop %v1964
    %v1966 = vadd.f32 %v1965, 1.0
    %v1967 = vrcp.pop %v1966
    %v1968 = vmul.f32 1.0, %v1967
    %v1969 = vtanh.pop %v1962
    %v1970 = vmul.f32 %v1968, %v1756
    %1972 = vrot.lane.b32.xlu0 %v1969, 64
    %v1973 = vpop.permute.xlu0 %1972
    %v1975 = vmul.f32 %v1968, %v1973
    %1977 = vrot.lane.b32.xlu0 %v1975, 32
    %v1978 = vpop.permute.xlu0 %1977
    %v1980 = vadd.f32 %v1970, %v1978
    %v1981 = vtanh.pop %v1980
    %1983 = vrot.lane.b32.xlu0 %v1981, 64
    %v1984 = vpop.permute.xlu0 %1983
    %v1986 = vmul.f32 %v1968, %v1984
    %v1987 = vpack.c.bf16 %v1986, %v1986
    %1988 = vmatprep.subr.bf16.mxu0 0
    %1989 = vmatpush1.bf16.msra.mxu0 %v217
    %1990 = vmatprep.subr.bf16.mxu0 0
    %1991 = vmatpush1.bf16.msra.mxu0 %v218
    %1992 = vmatprep.subr.bf16.mxu0 0
    %1993 = vmatpush1.bf16.msra.mxu0 0
    %1994 = vmatprep.subr.bf16.mxu0 0
    %1995 = vmatpush1.bf16.msra.mxu0 0
    %1996 = vmatprep.subr.bf16.mxu0 0
    %1997 = vmatpush1.bf16.msra.mxu0 0
    %1998 = vmatprep.subr.bf16.mxu0 0
    %1999 = vmatpush1.bf16.msra.mxu0 0
    %2000 = vmatprep.subr.bf16.mxu0 0
    %2001 = vmatpush1.bf16.msra.mxu0 0
    %2002 = vmatprep.subr.bf16.mxu0 0
    %2003 = vmatpush1.bf16.msra.mxu0 0
    %2004 = vmatprep.subr.bf16.mxu0 0
    %2005 = vmatpush1.bf16.msra.mxu0 0
    %2006 = vmatprep.subr.bf16.mxu0 0
    %2007 = vmatpush1.bf16.msra.mxu0 0
    %2008 = vmatprep.subr.bf16.mxu0 0
    %2009 = vmatpush1.bf16.msra.mxu0 0
    %2010 = vmatprep.subr.bf16.mxu0 0
    %2011 = vmatpush1.bf16.msra.mxu0 0
    %2012 = vmatprep.subr.bf16.mxu0 0
    %2013 = vmatpush1.bf16.msra.mxu0 0
    %2014 = vmatprep.subr.bf16.mxu0 0
    %2015 = vmatpush1.bf16.msra.mxu0 0
    %2016 = vmatprep.subr.bf16.mxu0 0
    %2017 = vmatpush1.bf16.msra.mxu0 0
    %2018 = vmatprep.subr.bf16.mxu0 0
    %2019 = vmatpush1.bf16.msra.mxu0 0
    %2020 = vmatprep.mubr.bf16.mxu0 0
    %2021 = vmatmul.mubr.bf16.gmra.mrb[0].mxu0 %v1920
    %v2022 = vpop.f32.mrb[0].mxu0
    %v2023 = vadd.f32 0.0, %v2022
    %v2024 = vpop.f32.mrb[0].mxu0
    %v2025 = vpop.f32.mrb[0].mxu0
    %v2026 = vpop.f32.mrb[0].mxu0
    %2027 = vdwg.mxu0
    %2029 = vrot.lane.b32.xlu0 %v1987, 32
    %v2030 = vpop.permute.xlu0 %2029
    %v2032 = vsel %vm138, %v2030, 0
    %2034 = vmatprep.subr.bf16.mxu0 0
    %2035 = vmatpush1.bf16.msra.mxu0 %v272
    %2036 = vmatprep.subr.bf16.mxu0 0
    %2037 = vmatpush1.bf16.msra.mxu0 %v273
    %2038 = vmatprep.subr.bf16.mxu0 0
    %2039 = vmatpush1.bf16.msra.mxu0 0
    %2040 = vmatprep.subr.bf16.mxu0 0
    %2041 = vmatpush1.bf16.msra.mxu0 0
    %2042 = vmatprep.subr.bf16.mxu0 0
    %2043 = vmatpush1.bf16.msra.mxu0 0
    %2044 = vmatprep.subr.bf16.mxu0 0
    %2045 = vmatpush1.bf16.msra.mxu0 0
    %2046 = vmatprep.subr.bf16.mxu0 0
    %2047 = vmatpush1.bf16.msra.mxu0 0
    %2048 = vmatprep.subr.bf16.mxu0 0
    %2049 = vmatpush1.bf16.msra.mxu0 0
    %2050 = vmatprep.subr.bf16.mxu0 0
    %2051 = vmatpush1.bf16.msra.mxu0 0
    %2052 = vmatprep.subr.bf16.mxu0 0
    %2053 = vmatpush1.bf16.msra.mxu0 0
    %2054 = vmatprep.subr.bf16.mxu0 0
    %2055 = vmatpush1.bf16.msra.mxu0 0
    %2056 = vmatprep.subr.bf16.mxu0 0
    %2057 = vmatpush1.bf16.msra.mxu0 0
    %2058 = vmatprep.subr.bf16.mxu0 0
    %2059 = vmatpush1.bf16.msra.mxu0 0
    %2060 = vmatprep.subr.bf16.mxu0 0
    %2061 = vmatpush1.bf16.msra.mxu0 0
    %2062 = vmatprep.subr.bf16.mxu0 0
    %2063 = vmatpush1.bf16.msra.mxu0 0
    %2064 = vmatprep.subr.bf16.mxu0 0
    %2065 = vmatpush1.bf16.msra.mxu0 0
    %2066 = vmatprep.mubr.bf16.mxu0 0
    %2067 = vmatmul.mubr.bf16.gmra.mrb[0].mxu0 %v2032
    %v2068 = vpop.f32.mrb[0].mxu0
    %v2069 = vadd.f32 %v2023, %v2068
    %v2070 = vpop.f32.mrb[0].mxu0
    %v2071 = vpop.f32.mrb[0].mxu0
    %v2072 = vpop.f32.mrb[0].mxu0
    %2073 = vdwg.mxu0
    %v2074 = vadd.f32 %v2069, %v65
    %v2075 = vxor.u32 %v2074, 2147483648
    %v2076 = vmul.f32 %v2075, 1.442695
    %v2077 = vpow.pop %v2076
    %v2078 = vadd.f32 %v2077, 1.0
    %v2079 = vrcp.pop %v2078
    %v2080 = vmul.f32 1.0, %v2079
    %v2081 = vtanh.pop %v2074
    %v2082 = vmul.f32 %v2080, %v1868
    %2084 = vrot.lane.b32.xlu0 %v2081, 64
    %v2085 = vpop.permute.xlu0 %2084
    %v2087 = vmul.f32 %v2080, %v2085
    %2089 = vrot.lane.b32.xlu0 %v2087, 32
    %v2090 = vpop.permute.xlu0 %2089
    %v2092 = vadd.f32 %v2082, %v2090
    %v2093 = vtanh.pop %v2092
    %2095 = vrot.lane.b32.xlu0 %v2093, 64
    %v2096 = vpop.permute.xlu0 %2095
    %v2098 = vmul.f32 %v2080, %v2096
    %v2099 = vpack.c.bf16 %v2098, %v2098
    %2100 = vmatprep.subr.bf16.mxu0 0
    %2101 = vmatpush1.bf16.msra.mxu0 %v134
    %2102 = vmatprep.subr.bf16.mxu0 0
    %2103 = vmatpush1.bf16.msra.mxu0 %v135
    %2104 = vmatprep.subr.bf16.mxu0 0
    %2105 = vmatpush1.bf16.msra.mxu0 0
    %2106 = vmatprep.subr.bf16.mxu0 0
    %2107 = vmatpush1.bf16.msra.mxu0 0
    %2108 = vmatprep.subr.bf16.mxu0 0
    %2109 = vmatpush1.bf16.msra.mxu0 0
    %2110 = vmatprep.subr.bf16.mxu0 0
    %2111 = vmatpush1.bf16.msra.mxu0 0
    %2112 = vmatprep.subr.bf16.mxu0 0
    %2113 = vmatpush1.bf16.msra.mxu0 0
    %2114 = vmatprep.subr.bf16.mxu0 0
    %2115 = vmatpush1.bf16.msra.mxu0 0
    %2116 = vmatprep.subr.bf16.mxu0 0
    %2117 = vmatpush1.bf16.msra.mxu0 0
    %2118 = vmatprep.subr.bf16.mxu0 0
    %2119 = vmatpush1.bf16.msra.mxu0 0
    %2120 = vmatprep.subr.bf16.mxu0 0
    %2121 = vmatpush1.bf16.msra.mxu0 0
    %2122 = vmatprep.subr.bf16.mxu0 0
    %2123 = vmatpush1.bf16.msra.mxu0 0
    %2124 = vmatprep.subr.bf16.mxu0 0
    %2125 = vmatpush1.bf16.msra.mxu0 0
    %2126 = vmatprep.subr.bf16.mxu0 0
    %2127 = vmatpush1.bf16.msra.mxu0 0
    %2128 = vmatprep.subr.bf16.mxu0 0
    %2129 = vmatpush1.bf16.msra.mxu0 0
    %2130 = vmatprep.subr.bf16.mxu0 0
    %2131 = vmatpush1.bf16.msra.mxu0 0
    %2132 = vmatprep.mubr.bf16.mxu0 0
    %2133 = vmatmul.mubr.bf16.gmra.mrb[0].mxu0 %v2032
    %v2134 = vpop.f32.mrb[0].mxu0
    %v2135 = vadd.f32 0.0, %v2134
    %v2136 = vpop.f32.mrb[0].mxu0
    %v2137 = vpop.f32.mrb[0].mxu0
    %v2138 = vpop.f32.mrb[0].mxu0
    %2139 = vdwg.mxu0
    %2141 = vrot.lane.b32.xlu0 %v2099, 32
    %v2142 = vpop.permute.xlu0 %2141
    %v2144 = vsel %vm138, %v2142, 0
    %2146 = vmatprep.subr.bf16.mxu0 0
    %2147 = vmatpush1.bf16.msra.mxu0 %v1691
    %2148 = vmatprep.subr.bf16.mxu0 0
    %2149 = vmatpush1.bf16.msra.mxu0 %v1692
    %2150 = vmatprep.subr.bf16.mxu0 0
    %2151 = vmatpush1.bf16.msra.mxu0 0
    %2152 = vmatprep.subr.bf16.mxu0 0
    %2153 = vmatpush1.bf16.msra.mxu0 0
    %2154 = vmatprep.subr.bf16.mxu0 0
    %2155 = vmatpush1.bf16.msra.mxu0 0
    %2156 = vmatprep.subr.bf16.mxu0 0
    %2157 = vmatpush1.bf16.msra.mxu0 0
    %2158 = vmatprep.subr.bf16.mxu0 0
    %2159 = vmatpush1.bf16.msra.mxu0 0
    %2160 = vmatprep.subr.bf16.mxu0 0
    %2161 = vmatpush1.bf16.msra.mxu0 0
    %2162 = vmatprep.subr.bf16.mxu0 0
    %2163 = vmatpush1.bf16.msra.mxu0 0
    %2164 = vmatprep.subr.bf16.mxu0 0
    %2165 = vmatpush1.bf16.msra.mxu0 0
    %2166 = vmatprep.subr.bf16.mxu0 0
    %2167 = vmatpush1.bf16.msra.mxu0 0
    %2168 = vmatprep.subr.bf16.mxu0 0
    %2169 = vmatpush1.bf16.msra.mxu0 0
    %2170 = vmatprep.subr.bf16.mxu0 0
    %2171 = vmatpush1.bf16.msra.mxu0 0
    %2172 = vmatprep.subr.bf16.mxu0 0
    %2173 = vmatpush1.bf16.msra.mxu0 0
    %2174 = vmatprep.subr.bf16.mxu0 0
    %2175 = vmatpush1.bf16.msra.mxu0 0
    %2176 = vmatprep.subr.bf16.mxu0 0
    %2177 = vmatpush1.bf16.msra.mxu0 0
    %2178 = vmatprep.mubr.bf16.mxu0 0
    %2179 = vmatmul.mubr.bf16.gmra.mrb[0].mxu0 %v2144
    %v2180 = vpop.f32.mrb[0].mxu0
    %v2181 = vadd.f32 %v2135, %v2180
    %v2182 = vpop.f32.mrb[0].mxu0
    %v2183 = vpop.f32.mrb[0].mxu0
    %v2184 = vpop.f32.mrb[0].mxu0
    %2185 = vdwg.mxu0
    %v2186 = vadd.f32 %v2181, %v76
    %v2187 = vxor.u32 %v2186, 2147483648
    %v2188 = vmul.f32 %v2187, 1.442695
    %v2189 = vpow.pop %v2188
    %v2190 = vadd.f32 %v2189, 1.0
    %v2191 = vrcp.pop %v2190
    %v2192 = vmul.f32 1.0, %v2191
    %v2193 = vtanh.pop %v2186
    %v2194 = vmul.f32 %v2192, %v1980
    %2196 = vrot.lane.b32.xlu0 %v2193, 64
    %v2197 = vpop.permute.xlu0 %2196
    %v2199 = vmul.f32 %v2192, %v2197
    %2201 = vrot.lane.b32.xlu0 %v2199, 32
    %v2202 = vpop.permute.xlu0 %2201
    %v2204 = vadd.f32 %v2194, %v2202
    %v2205 = vtanh.pop %v2204
    %2207 = vrot.lane.b32.xlu0 %v2205, 64
    %v2208 = vpop.permute.xlu0 %2207
    %v2210 = vmul.f32 %v2192, %v2208
    %v2211 = vpack.c.bf16 %v2210, %v2210
    %2212 = vmatprep.subr.bf16.mxu0 0
    %2213 = vmatpush1.bf16.msra.mxu0 %v217
    %2214 = vmatprep.subr.bf16.mxu0 0
    %2215 = vmatpush1.bf16.msra.mxu0 %v218
    %2216 = vmatprep.subr.bf16.mxu0 0
    %2217 = vmatpush1.bf16.msra.mxu0 0
    %2218 = vmatprep.subr.bf16.mxu0 0
    %2219 = vmatpush1.bf16.msra.mxu0 0
    %2220 = vmatprep.subr.bf16.mxu0 0
    %2221 = vmatpush1.bf16.msra.mxu0 0
    %2222 = vmatprep.subr.bf16.mxu0 0
    %2223 = vmatpush1.bf16.msra.mxu0 0
    %2224 = vmatprep.subr.bf16.mxu0 0
    %2225 = vmatpush1.bf16.msra.mxu0 0
    %2226 = vmatprep.subr.bf16.mxu0 0
    %2227 = vmatpush1.bf16.msra.mxu0 0
    %2228 = vmatprep.subr.bf16.mxu0 0
    %2229 = vmatpush1.bf16.msra.mxu0 0
    %2230 = vmatprep.subr.bf16.mxu0 0
    %2231 = vmatpush1.bf16.msra.mxu0 0
    %2232 = vmatprep.subr.bf16.mxu0 0
    %2233 = vmatpush1.bf16.msra.mxu0 0
    %2234 = vmatprep.subr.bf16.mxu0 0
    %2235 = vmatpush1.bf16.msra.mxu0 0
    %2236 = vmatprep.subr.bf16.mxu0 0
    %2237 = vmatpush1.bf16.msra.mxu0 0
    %2238 = vmatprep.subr.bf16.mxu0 0
    %2239 = vmatpush1.bf16.msra.mxu0 0
    %2240 = vmatprep.subr.bf16.mxu0 0
    %2241 = vmatpush1.bf16.msra.mxu0 0
    %2242 = vmatprep.subr.bf16.mxu0 0
    %2243 = vmatpush1.bf16.msra.mxu0 0
    %2244 = vmatprep.mubr.bf16.mxu0 0
    %2245 = vmatmul.mubr.bf16.gmra.mrb[0].mxu0 %v2144
    %v2246 = vpop.f32.mrb[0].mxu0
    %v2247 = vadd.f32 0.0, %v2246
    %v2248 = vpop.f32.mrb[0].mxu0
    %v2249 = vpop.f32.mrb[0].mxu0
    %v2250 = vpop.f32.mrb[0].mxu0
    %2251 = vdwg.mxu0
    %2253 = vrot.lane.b32.xlu0 %v2211, 32
    %v2254 = vpop.permute.xlu0 %2253
    %v2256 = vsel %vm138, %v2254, 0
    %2258 = vmatprep.subr.bf16.mxu0 0
    %2259 = vmatpush1.bf16.msra.mxu0 %v272
    %2260 = vmatprep.subr.bf16.mxu0 0
    %2261 = vmatpush1.bf16.msra.mxu0 %v273
    %2262 = vmatprep.subr.bf16.mxu0 0
    %2263 = vmatpush1.bf16.msra.mxu0 0
    %2264 = vmatprep.subr.bf16.mxu0 0
    %2265 = vmatpush1.bf16.msra.mxu0 0
    %2266 = vmatprep.subr.bf16.mxu0 0
    %2267 = vmatpush1.bf16.msra.mxu0 0
    %2268 = vmatprep.subr.bf16.mxu0 0
    %2269 = vmatpush1.bf16.msra.mxu0 0
    %2270 = vmatprep.subr.bf16.mxu0 0
    %2271 = vmatpush1.bf16.msra.mxu0 0
    %2272 = vmatprep.subr.bf16.mxu0 0
    %2273 = vmatpush1.bf16.msra.mxu0 0
    %2274 = vmatprep.subr.bf16.mxu0 0
    %2275 = vmatpush1.bf16.msra.mxu0 0
    %2276 = vmatprep.subr.bf16.mxu0 0
    %2277 = vmatpush1.bf16.msra.mxu0 0
    %2278 = vmatprep.subr.bf16.mxu0 0
    %2279 = vmatpush1.bf16.msra.mxu0 0
    %2280 = vmatprep.subr.bf16.mxu0 0
    %2281 = vmatpush1.bf16.msra.mxu0 0
    %2282 = vmatprep.subr.bf16.mxu0 0
    %2283 = vmatpush1.bf16.msra.mxu0 0
    %2284 = vmatprep.subr.bf16.mxu0 0
    %2285 = vmatpush1.bf16.msra.mxu0 0
    %2286 = vmatprep.subr.bf16.mxu0 0
    %2287 = vmatpush1.bf16.msra.mxu0 0
    %2288 = vmatprep.subr.bf16.mxu0 0
    %2289 = vmatpush1.bf16.msra.mxu0 0
    %2290 = vmatprep.mubr.bf16.mxu0 0
    %2291 = vmatmul.mubr.bf16.gmra.mrb[0].mxu0 %v2256
    %v2292 = vpop.f32.mrb[0].mxu0
    %v2293 = vadd.f32 %v2247, %v2292
    %v2294 = vpop.f32.mrb[0].mxu0
    %v2295 = vpop.f32.mrb[0].mxu0
    %v2296 = vpop.f32.mrb[0].mxu0
    %2297 = vdwg.mxu0
    %v2298 = vadd.f32 %v2293, %v65
    %v2299 = vxor.u32 %v2298, 2147483648
    %v2300 = vmul.f32 %v2299, 1.442695
    %v2301 = vpow.pop %v2300
    %v2302 = vadd.f32 %v2301, 1.0
    %v2303 = vrcp.pop %v2302
    %v2304 = vmul.f32 1.0, %v2303
    %v2305 = vtanh.pop %v2298
    %v2306 = vmul.f32 %v2304, %v2092
    %2308 = vrot.lane.b32.xlu0 %v2305, 64
    %v2309 = vpop.permute.xlu0 %2308
    %v2311 = vmul.f32 %v2304, %v2309
    %2313 = vrot.lane.b32.xlu0 %v2311, 32
    %v2314 = vpop.permute.xlu0 %2313
    %v2316 = vadd.f32 %v2306, %v2314
    %v2317 = vtanh.pop %v2316
    %2319 = vrot.lane.b32.xlu0 %v2317, 64
    %v2320 = vpop.permute.xlu0 %2319
    %v2322 = vmul.f32 %v2304, %v2320
    %v2323 = vpack.c.bf16 %v2322, %v2322
    %2324 = vmatprep.subr.bf16.mxu0 0
    %2325 = vmatpush1.bf16.msra.mxu0 %v134
    %2326 = vmatprep.subr.bf16.mxu0 0
    %2327 = vmatpush1.bf16.msra.mxu0 %v135
    %2328 = vmatprep.subr.bf16.mxu0 0
    %2329 = vmatpush1.bf16.msra.mxu0 0
    %2330 = vmatprep.subr.bf16.mxu0 0
    %2331 = vmatpush1.bf16.msra.mxu0 0
    %2332 = vmatprep.subr.bf16.mxu0 0
    %2333 = vmatpush1.bf16.msra.mxu0 0
    %2334 = vmatprep.subr.bf16.mxu0 0
    %2335 = vmatpush1.bf16.msra.mxu0 0
    %2336 = vmatprep.subr.bf16.mxu0 0
    %2337 = vmatpush1.bf16.msra.mxu0 0
    %2338 = vmatprep.subr.bf16.mxu0 0
    %2339 = vmatpush1.bf16.msra.mxu0 0
    %2340 = vmatprep.subr.bf16.mxu0 0
    %2341 = vmatpush1.bf16.msra.mxu0 0
    %2342 = vmatprep.subr.bf16.mxu0 0
    %2343 = vmatpush1.bf16.msra.mxu0 0
    %2344 = vmatprep.subr.bf16.mxu0 0
    %2345 = vmatpush1.bf16.msra.mxu0 0
    %2346 = vmatprep.subr.bf16.mxu0 0
    %2347 = vmatpush1.bf16.msra.mxu0 0
    %2348 = vmatprep.subr.bf16.mxu0 0
    %2349 = vmatpush1.bf16.msra.mxu0 0
    %2350 = vmatprep.subr.bf16.mxu0 0
    %2351 = vmatpush1.bf16.msra.mxu0 0
    %2352 = vmatprep.subr.bf16.mxu0 0
    %2353 = vmatpush1.bf16.msra.mxu0 0
    %2354 = vmatprep.subr.bf16.mxu0 0
    %2355 = vmatpush1.bf16.msra.mxu0 0
    %2356 = vmatprep.mubr.bf16.mxu0 0
    %2357 = vmatmul.mubr.bf16.gmra.mrb[0].mxu0 %v2256
    %v2358 = vpop.f32.mrb[0].mxu0
    %v2359 = vadd.f32 0.0, %v2358
    %v2360 = vpop.f32.mrb[0].mxu0
    %v2361 = vpop.f32.mrb[0].mxu0
    %v2362 = vpop.f32.mrb[0].mxu0
    %2363 = vdwg.mxu0
    %2365 = vrot.lane.b32.xlu0 %v2323, 32
    %v2366 = vpop.permute.xlu0 %2365
    %v2368 = vsel %vm138, %v2366, 0
    %2370 = vmatprep.subr.bf16.mxu0 0
    %2371 = vmatpush1.bf16.msra.mxu0 %v1691
    %2372 = vmatprep.subr.bf16.mxu0 0
    %2373 = vmatpush1.bf16.msra.mxu0 %v1692
    %2374 = vmatprep.subr.bf16.mxu0 0
    %2375 = vmatpush1.bf16.msra.mxu0 0
    %2376 = vmatprep.subr.bf16.mxu0 0
    %2377 = vmatpush1.bf16.msra.mxu0 0
    %2378 = vmatprep.subr.bf16.mxu0 0
    %2379 = vmatpush1.bf16.msra.mxu0 0
    %2380 = vmatprep.subr.bf16.mxu0 0
    %2381 = vmatpush1.bf16.msra.mxu0 0
    %2382 = vmatprep.subr.bf16.mxu0 0
    %2383 = vmatpush1.bf16.msra.mxu0 0
    %2384 = vmatprep.subr.bf16.mxu0 0
    %2385 = vmatpush1.bf16.msra.mxu0 0
    %2386 = vmatprep.subr.bf16.mxu0 0
    %2387 = vmatpush1.bf16.msra.mxu0 0
    %2388 = vmatprep.subr.bf16.mxu0 0
    %2389 = vmatpush1.bf16.msra.mxu0 0
    %2390 = vmatprep.subr.bf16.mxu0 0
    %2391 = vmatpush1.bf16.msra.mxu0 0
    %2392 = vmatprep.subr.bf16.mxu0 0
    %2393 = vmatpush1.bf16.msra.mxu0 0
    %2394 = vmatprep.subr.bf16.mxu0 0
    %2395 = vmatpush1.bf16.msra.mxu0 0
    %2396 = vmatprep.subr.bf16.mxu0 0
    %2397 = vmatpush1.bf16.msra.mxu0 0
    %2398 = vmatprep.subr.bf16.mxu0 0
    %2399 = vmatpush1.bf16.msra.mxu0 0
    %2400 = vmatprep.subr.bf16.mxu0 0
    %2401 = vmatpush1.bf16.msra.mxu0 0
    %2402 = vmatprep.mubr.bf16.mxu0 0
    %2403 = vmatmul.mubr.bf16.gmra.mrb[0].mxu0 %v2368
    %v2404 = vpop.f32.mrb[0].mxu0
    %v2405 = vadd.f32 %v2359, %v2404
    %v2406 = vpop.f32.mrb[0].mxu0
    %v2407 = vpop.f32.mrb[0].mxu0
    %v2408 = vpop.f32.mrb[0].mxu0
    %2409 = vdwg.mxu0
    %v2410 = vadd.f32 %v2405, %v76
    %v2411 = vxor.u32 %v2410, 2147483648
    %v2412 = vmul.f32 %v2411, 1.442695
    %v2413 = vpow.pop %v2412
    %v2414 = vadd.f32 %v2413, 1.0
    %v2415 = vrcp.pop %v2414
    %v2416 = vmul.f32 1.0, %v2415
    %v2417 = vtanh.pop %v2410
    %v2418 = vmul.f32 %v2416, %v2204
    %2420 = vrot.lane.b32.xlu0 %v2417, 64
    %v2421 = vpop.permute.xlu0 %2420
    %v2423 = vmul.f32 %v2416, %v2421
    %2425 = vrot.lane.b32.xlu0 %v2423, 32
    %v2426 = vpop.permute.xlu0 %2425
    %v2428 = vadd.f32 %v2418, %v2426
    %v2429 = vtanh.pop %v2428
    %2431 = vrot.lane.b32.xlu0 %v2429, 64
    %v2432 = vpop.permute.xlu0 %2431
    %v2434 = vmul.f32 %v2416, %v2432
    %v2435 = vpack.c.bf16 %v2434, %v2434
    %2436 = vmatprep.subr.bf16.mxu0 0
    %2437 = vmatpush1.bf16.msra.mxu0 %v217
    %2438 = vmatprep.subr.bf16.mxu0 0
    %2439 = vmatpush1.bf16.msra.mxu0 %v218
    %2440 = vmatprep.subr.bf16.mxu0 0
    %2441 = vmatpush1.bf16.msra.mxu0 0
    %2442 = vmatprep.subr.bf16.mxu0 0
    %2443 = vmatpush1.bf16.msra.mxu0 0
    %2444 = vmatprep.subr.bf16.mxu0 0
    %2445 = vmatpush1.bf16.msra.mxu0 0
    %2446 = vmatprep.subr.bf16.mxu0 0
    %2447 = vmatpush1.bf16.msra.mxu0 0
    %2448 = vmatprep.subr.bf16.mxu0 0
    %2449 = vmatpush1.bf16.msra.mxu0 0
    %2450 = vmatprep.subr.bf16.mxu0 0
    %2451 = vmatpush1.bf16.msra.mxu0 0
    %2452 = vmatprep.subr.bf16.mxu0 0
    %2453 = vmatpush1.bf16.msra.mxu0 0
    %2454 = vmatprep.subr.bf16.mxu0 0
    %2455 = vmatpush1.bf16.msra.mxu0 0
    %2456 = vmatprep.subr.bf16.mxu0 0
    %2457 = vmatpush1.bf16.msra.mxu0 0
    %2458 = vmatprep.subr.bf16.mxu0 0
    %2459 = vmatpush1.bf16.msra.mxu0 0
    %2460 = vmatprep.subr.bf16.mxu0 0
    %2461 = vmatpush1.bf16.msra.mxu0 0
    %2462 = vmatprep.subr.bf16.mxu0 0
    %2463 = vmatpush1.bf16.msra.mxu0 0
    %2464 = vmatprep.subr.bf16.mxu0 0
    %2465 = vmatpush1.bf16.msra.mxu0 0
    %2466 = vmatprep.subr.bf16.mxu0 0
    %2467 = vmatpush1.bf16.msra.mxu0 0
    %2468 = vmatprep.mubr.bf16.mxu0 0
    %2469 = vmatmul.mubr.bf16.gmra.mrb[0].mxu0 %v2368
    %v2470 = vpop.f32.mrb[0].mxu0
    %v2471 = vadd.f32 0.0, %v2470
    %v2472 = vpop.f32.mrb[0].mxu0
    %v2473 = vpop.f32.mrb[0].mxu0
    %v2474 = vpop.f32.mrb[0].mxu0
    %2475 = vdwg.mxu0
    %2477 = vrot.lane.b32.xlu0 %v2435, 32
    %v2478 = vpop.permute.xlu0 %2477
    %v2480 = vsel %vm138, %v2478, 0
    %2482 = vmatprep.subr.bf16.mxu0 0
    %2483 = vmatpush1.bf16.msra.mxu0 %v272
    %2484 = vmatprep.subr.bf16.mxu0 0
    %2485 = vmatpush1.bf16.msra.mxu0 %v273
    %2486 = vmatprep.subr.bf16.mxu0 0
    %2487 = vmatpush1.bf16.msra.mxu0 0
    %2488 = vmatprep.subr.bf16.mxu0 0
    %2489 = vmatpush1.bf16.msra.mxu0 0
    %2490 = vmatprep.subr.bf16.mxu0 0
    %2491 = vmatpush1.bf16.msra.mxu0 0
    %2492 = vmatprep.subr.bf16.mxu0 0
    %2493 = vmatpush1.bf16.msra.mxu0 0
    %2494 = vmatprep.subr.bf16.mxu0 0
    %2495 = vmatpush1.bf16.msra.mxu0 0
    %2496 = vmatprep.subr.bf16.mxu0 0
    %2497 = vmatpush1.bf16.msra.mxu0 0
    %2498 = vmatprep.subr.bf16.mxu0 0
    %2499 = vmatpush1.bf16.msra.mxu0 0
    %2500 = vmatprep.subr.bf16.mxu0 0
    %2501 = vmatpush1.bf16.msra.mxu0 0
    %2502 = vmatprep.subr.bf16.mxu0 0
    %2503 = vmatpush1.bf16.msra.mxu0 0
    %2504 = vmatprep.subr.bf16.mxu0 0
    %2505 = vmatpush1.bf16.msra.mxu0 0
    %2506 = vmatprep.subr.bf16.mxu0 0
    %2507 = vmatpush1.bf16.msra.mxu0 0
    %2508 = vmatprep.subr.bf16.mxu0 0
    %2509 = vmatpush1.bf16.msra.mxu0 0
    %2510 = vmatprep.subr.bf16.mxu0 0
    %2511 = vmatpush1.bf16.msra.mxu0 0
    %2512 = vmatprep.subr.bf16.mxu0 0
    %2513 = vmatpush1.bf16.msra.mxu0 0
    %2514 = vmatprep.mubr.bf16.mxu0 0
    %2515 = vmatmul.mubr.bf16.gmra.mrb[0].mxu0 %v2480
    %v2516 = vpop.f32.mrb[0].mxu0
    %v2517 = vadd.f32 %v2471, %v2516
    %v2518 = vpop.f32.mrb[0].mxu0
    %v2519 = vpop.f32.mrb[0].mxu0
    %v2520 = vpop.f32.mrb[0].mxu0
    %2521 = vdwg.mxu0
    %v2522 = vadd.f32 %v2517, %v65
    %v2523 = vxor.u32 %v2522, 2147483648
    %v2524 = vmul.f32 %v2523, 1.442695
    %v2525 = vpow.pop %v2524
    %v2526 = vadd.f32 %v2525, 1.0
    %v2527 = vrcp.pop %v2526
    %v2528 = vmul.f32 1.0, %v2527
    %v2529 = vtanh.pop %v2522
    %v2530 = vmul.f32 %v2528, %v2316
    %2532 = vrot.lane.b32.xlu0 %v2529, 64
    %v2533 = vpop.permute.xlu0 %2532
    %v2535 = vmul.f32 %v2528, %v2533
    %2537 = vrot.lane.b32.xlu0 %v2535, 32
    %v2538 = vpop.permute.xlu0 %2537
    %v2540 = vadd.f32 %v2530, %v2538
    %v2541 = vtanh.pop %v2540
    %2543 = vrot.lane.b32.xlu0 %v2541, 64
    %v2544 = vpop.permute.xlu0 %2543
    %v2546 = vmul.f32 %v2528, %v2544
    %2548 = vrot.lane.b32.xlu0 %v343, 32
    %v2549 = vpop.permute.xlu0 %2548
    %2552 = vrot.lane.b32.xlu0 %v528, 64
    %v2553 = vpop.permute.xlu0 %2552
    %2556 = vrot.lane.b32.xlu0 %v713, 96
    %v2557 = vpop.permute.xlu0 %2556
    %2560 = vrot.lane.b32.xlu0 %v1083, 32
    %v2561 = vpop.permute.xlu0 %2560
    %2564 = vrot.lane.b32.xlu0 %v1268, 64
    %v2565 = vpop.permute.xlu0 %2564
    %2568 = vrot.lane.b32.xlu0 %v1453, 96
    %v2569 = vpop.permute.xlu0 %2568
    %2572 = vrot.lane.b32.xlu0 %v1874, 32
    %v2573 = vpop.permute.xlu0 %2572
    %2576 = vrot.lane.b32.xlu0 %v2098, 64
    %v2577 = vpop.permute.xlu0 %2576
    %2580 = vrot.lane.b32.xlu0 %v2322, 96
    %v2581 = vpop.permute.xlu0 %2580
    %v2583 = vsel %vm138, %v2549, %v2553
    %vm2584 = vcmask 523264
    %v2585 = vsel %vm2584, %v2583, %v2557
    %vm2586 = vcmask 785408
    %v2587 = vsel %vm2586, %v2585, %v898
    %v2588 = vsel %vm138, %v2561, %v2565
    %v2589 = vsel %vm2584, %v2588, %v2569
    %v2590 = vsel %vm2586, %v2589, %v1638
    %v2591 = vsel %vm138, %v2573, %v2577
    %v2592 = vsel %vm2584, %v2591, %v2581
    %v2593 = vsel %vm2586, %v2592, %v2546
    %v2594 = vld [vmem:[%s9] sm:$0xff]
    %v2595 = vld [vmem:[%s9 + $0x8] sm:$0xff]
    %v2596 = vld [vmem:[%s9 + $0x10] sm:$0xff]
    %v2597 = vld [vmem:[%s9 + $0x18] sm:$0xff]
    %v2598 = vld [vmem:[%s9 + $0x20] sm:$0xff]
    %v2599 = vld [vmem:[%s9 + $0x28] sm:$0xff]
    %v2600 = vld [vmem:[%s9 + $0x30] sm:$0xff]
    %v2601 = vld [vmem:[%s9 + $0x38] sm:$0xff]
    %v2602 = vld [vmem:[%s9 + $0x40] sm:$0xff]
    %v2603 = vld [vmem:[%s9 + $0x48] sm:$0xff]
    %v2604 = vld [vmem:[%s9 + $0x50] sm:$0xff]
    %v2605 = vld [vmem:[%s9 + $0x58] sm:$0xff]
    %v2606 = vld [vmem:[%s9 + $0x60] sm:$0xff]
    %v2607 = vld [vmem:[%s9 + $0x68] sm:$0xff]
    %v2608 = vld [vmem:[%s9 + $0x70] sm:$0xff]
    %v2609 = vld [vmem:[%s9 + $0x78] sm:$0xff]
    %v2610 = vld [vmem:[%s9 + $0x80] sm:$0xff]
    %v2611 = vld [vmem:[%s9 + $0x88] sm:$0xff]
    %v2612 = vld [vmem:[%s9 + $0x90] sm:$0xff]
    %v2613 = vld [vmem:[%s9 + $0x98] sm:$0xff]
    %v2614 = vld [vmem:[%s9 + $0xa0] sm:$0xff]
    %v2615 = vld [vmem:[%s9 + $0xa8] sm:$0xff]
    %v2616 = vld [vmem:[%s9 + $0xb0] sm:$0xff]
    %v2617 = vld [vmem:[%s9 + $0xb8] sm:$0xff]
    %v2618 = vld [vmem:[%s9 + $0xc0] sm:$0xff]
    %v2619 = vld [vmem:[%s9 + $0xc8] sm:$0xff]
    %v2620 = vld [vmem:[%s9 + $0xd0] sm:$0xff]
    %v2621 = vld [vmem:[%s9 + $0xd8] sm:$0xff]
    %v2622 = vld [vmem:[%s9 + $0xe0] sm:$0xff]
    %v2623 = vld [vmem:[%s9 + $0xe8] sm:$0xff]
    %v2624 = vld [vmem:[%s9 + $0xf0] sm:$0xff]
    %v2625 = vld [vmem:[%s9 + $0xf8] sm:$0xff]
    %v2626 = vld [vmem:[%s9 + $0x100] sm:$0xff]
    %v2627 = vld [vmem:[%s9 + $0x108] sm:$0xff]
    %v2628 = vld [vmem:[%s9 + $0x110] sm:$0xff]
    %v2629 = vld [vmem:[%s9 + $0x118] sm:$0xff]
    %v2630 = vld [vmem:[%s9 + $0x120] sm:$0xff]
    %v2631 = vld [vmem:[%s9 + $0x128] sm:$0xff]
    %v2632 = vld [vmem:[%s9 + $0x130] sm:$0xff]
    %v2633 = vld [vmem:[%s9 + $0x138] sm:$0xff]
    %v2634 = vld [vmem:[%s9 + $0x140] sm:$0xff]
    %v2635 = vld [vmem:[%s9 + $0x148] sm:$0xff]
    %v2636 = vld [vmem:[%s9 + $0x150] sm:$0xff]
    %v2637 = vld [vmem:[%s9 + $0x158] sm:$0xff]
    %v2638 = vld [vmem:[%s9 + $0x160] sm:$0xff]
    %v2639 = vld [vmem:[%s9 + $0x168] sm:$0xff]
    %v2640 = vld [vmem:[%s9 + $0x170] sm:$0xff]
    %v2641 = vld [vmem:[%s9 + $0x178] sm:$0xff]
    %v2642 = vld [vmem:[%s10] sm:$0x1]
    %v2644 = vlaneseq
    %v2645 = vshrl.u32 %v2644, 7
    %v2646 = vsub.s32 0, %v2645
    %v2647 = vrot.slane %v2642, %v2646
    %2649 = vmatprep.subr.mxu0 0.0
    %2650 = vmatpush1.msra.mxu0 %v2594
    %2651 = vmatprep.subr.mxu0 0.0
    %2652 = vmatpush1.msra.mxu0 %v2595
    %2653 = vmatprep.subr.mxu0 0.0
    %2654 = vmatpush1.msra.mxu0 %v2596
    %2655 = vmatprep.subr.mxu0 0.0
    %2656 = vmatpush1.msra.mxu0 %v2597
    %2657 = vmatprep.subr.mxu0 0.0
    %2658 = vmatpush1.msra.mxu0 %v2598
    %2659 = vmatprep.subr.mxu0 0.0
    %2660 = vmatpush1.msra.mxu0 %v2599
    %2661 = vmatprep.subr.mxu0 0.0
    %2662 = vmatpush1.msra.mxu0 %v2600
    %2663 = vmatprep.subr.mxu0 0.0
    %2664 = vmatpush1.msra.mxu0 %v2601
    %2665 = vmatprep.subr.mxu0 0.0
    %2666 = vmatpush1.msra.mxu0 %v2602
    %2667 = vmatprep.subr.mxu0 0.0
    %2668 = vmatpush1.msra.mxu0 %v2603
    %2669 = vmatprep.subr.mxu0 0.0
    %2670 = vmatpush1.msra.mxu0 %v2604
    %2671 = vmatprep.subr.mxu0 0.0
    %2672 = vmatpush1.msra.mxu0 %v2605
    %2673 = vmatprep.subr.mxu0 0.0
    %2674 = vmatpush1.msra.mxu0 %v2606
    %2675 = vmatprep.subr.mxu0 0.0
    %2676 = vmatpush1.msra.mxu0 %v2607
    %2677 = vmatprep.subr.mxu0 0.0
    %2678 = vmatpush1.msra.mxu0 %v2608
    %2679 = vmatprep.subr.mxu0 0.0
    %2680 = vmatpush1.msra.mxu0 %v2609
    %2681 = vmatprep.subr.mxu0 0.0
    %2682 = vmatpush1.msra.mxu0 %v2610
    %2683 = vmatprep.subr.mxu0 0.0
    %2684 = vmatpush1.msra.mxu0 %v2611
    %2685 = vmatprep.subr.mxu0 0.0
    %2686 = vmatpush1.msra.mxu0 %v2612
    %2687 = vmatprep.subr.mxu0 0.0
    %2688 = vmatpush1.msra.mxu0 %v2613
    %2689 = vmatprep.subr.mxu0 0.0
    %2690 = vmatpush1.msra.mxu0 %v2614
    %2691 = vmatprep.subr.mxu0 0.0
    %2692 = vmatpush1.msra.mxu0 %v2615
    %2693 = vmatprep.subr.mxu0 0.0
    %2694 = vmatpush1.msra.mxu0 %v2616
    %2695 = vmatprep.subr.mxu0 0.0
    %2696 = vmatpush1.msra.mxu0 %v2617
    %2697 = vmatprep.subr.mxu0 0.0
    %2698 = vmatpush1.msra.mxu0 %v2618
    %2699 = vmatprep.subr.mxu0 0.0
    %2700 = vmatpush1.msra.mxu0 %v2619
    %2701 = vmatprep.subr.mxu0 0.0
    %2702 = vmatpush1.msra.mxu0 %v2620
    %2703 = vmatprep.subr.mxu0 0.0
    %2704 = vmatpush1.msra.mxu0 %v2621
    %2705 = vmatprep.subr.mxu0 0.0
    %2706 = vmatpush1.msra.mxu0 %v2622
    %2707 = vmatprep.subr.mxu0 0.0
    %2708 = vmatpush1.msra.mxu0 %v2623
    %2709 = vmatprep.subr.mxu0 0.0
    %2710 = vmatpush1.msra.mxu0 %v2624
    %2711 = vmatprep.subr.mxu0 0.0
    %2712 = vmatpush1.msra.mxu0 %v2625
    %2713 = vmatprep.mubr.f32.mxu0 %v2590
    %2714 = vmatmul.mubr.f32.gmra.mrb[0].mxu0 %v2587
    %v2715 = vpop.f32.mrb[0].mxu0
    %v2716 = vadd.f32 %v2647, %v2715
    %v2717 = vpop.f32.mrb[0].mxu0
    %2718 = vdwg.mxu0
    %2719 = vmatprep.subr.mxu0 0.0
    %2720 = vmatpush1.msra.mxu0 %v2626
    %2721 = vmatprep.subr.mxu0 0.0
    %2722 = vmatpush1.msra.mxu0 %v2627
    %2723 = vmatprep.subr.mxu0 0.0
    %2724 = vmatpush1.msra.mxu0 %v2628
    %2725 = vmatprep.subr.mxu0 0.0
    %2726 = vmatpush1.msra.mxu0 %v2629
    %2727 = vmatprep.subr.mxu0 0.0
    %2728 = vmatpush1.msra.mxu0 %v2630
    %2729 = vmatprep.subr.mxu0 0.0
    %2730 = vmatpush1.msra.mxu0 %v2631
    %2731 = vmatprep.subr.mxu0 0.0
    %2732 = vmatpush1.msra.mxu0 %v2632
    %2733 = vmatprep.subr.mxu0 0.0
    %2734 = vmatpush1.msra.mxu0 %v2633
    %2735 = vmatprep.subr.mxu0 0.0
    %2736 = vmatpush1.msra.mxu0 %v2634
    %2737 = vmatprep.subr.mxu0 0.0
    %2738 = vmatpush1.msra.mxu0 %v2635
    %2739 = vmatprep.subr.mxu0 0.0
    %2740 = vmatpush1.msra.mxu0 %v2636
    %2741 = vmatprep.subr.mxu0 0.0
    %2742 = vmatpush1.msra.mxu0 %v2637
    %2743 = vmatprep.subr.mxu0 0.0
    %2744 = vmatpush1.msra.mxu0 %v2638
    %2745 = vmatprep.subr.mxu0 0.0
    %2746 = vmatpush1.msra.mxu0 %v2639
    %2747 = vmatprep.subr.mxu0 0.0
    %2748 = vmatpush1.msra.mxu0 %v2640
    %2749 = vmatprep.subr.mxu0 0.0
    %2750 = vmatpush1.msra.mxu0 %v2641
    %2751 = vmatprep.subr.mxu0 0.0
    %2752 = vmatpush1.msra.mxu0 0.0
    %2753 = vmatprep.subr.mxu0 0.0
    %2754 = vmatpush1.msra.mxu0 0.0
    %2755 = vmatprep.subr.mxu0 0.0
    %2756 = vmatpush1.msra.mxu0 0.0
    %2757 = vmatprep.subr.mxu0 0.0
    %2758 = vmatpush1.msra.mxu0 0.0
    %2759 = vmatprep.subr.mxu0 0.0
    %2760 = vmatpush1.msra.mxu0 0.0
    %2761 = vmatprep.subr.mxu0 0.0
    %2762 = vmatpush1.msra.mxu0 0.0
    %2763 = vmatprep.subr.mxu0 0.0
    %2764 = vmatpush1.msra.mxu0 0.0
    %2765 = vmatprep.subr.mxu0 0.0
    %2766 = vmatpush1.msra.mxu0 0.0
    %2767 = vmatprep.subr.mxu0 0.0
    %2768 = vmatpush1.msra.mxu0 0.0
    %2769 = vmatprep.subr.mxu0 0.0
    %2770 = vmatpush1.msra.mxu0 0.0
    %2771 = vmatprep.subr.mxu0 0.0
    %2772 = vmatpush1.msra.mxu0 0.0
    %2773 = vmatprep.subr.mxu0 0.0
    %2774 = vmatpush1.msra.mxu0 0.0
    %2775 = vmatprep.subr.mxu0 0.0
    %2776 = vmatpush1.msra.mxu0 0.0
    %2777 = vmatprep.subr.mxu0 0.0
    %2778 = vmatpush1.msra.mxu0 0.0
    %2779 = vmatprep.subr.mxu0 0.0
    %2780 = vmatpush1.msra.mxu0 0.0
    %2781 = vmatprep.subr.mxu0 0.0
    %2782 = vmatpush1.msra.mxu0 0.0
    %2783 = vmatprep.mubr.f32.mxu0 0.0
    %2784 = vmatmul.mubr.f32.gmra.mrb[0].mxu0 %v2593
    %v2785 = vpop.f32.mrb[0].mxu0
    %v2786 = vadd.f32 %v2716, %v2785
    %v2787 = vpop.f32.mrb[0].mxu0
    %2788 = vdwg.mxu0
    %vm2789 = vcmask 91136
    %2790 = vst.msk [vmem:[#allocation2] sm:$0x3] %vm2789, %v2786
    // Predicated region
    $region46: #{tpu_custom_call.1} parent=1 // pred_check
      _
    $region47: #{tpu_custom_call.1} parent=1 // pred_check_branch
      %2792 = sbr.rel (0) target = $region49
    $region48: #{tpu_custom_call.1} parent=1 // pred_region
      %s2794 = ssub.s32 32, 32
      %2795 = vsyncadd [#allocation3], %s2794
      %s2797 = sshll.u32 [#allocation2], 4
      %s2798 = int_to_ptr.vmem [resolvable:$true] %s2797
      %2800 = dma.vmem_to_hbm [thread:$0]  %s2798, 32, %s11, [#allocation3]
    $region49: #{tpu_custom_call.1} parent=1 // pred_fallthru
      _
    // Predicated region
    $region50: #{tpu_custom_call.1} parent=1 // pred_check
      _
    $region51: #{tpu_custom_call.1} parent=1 // pred_check_branch
      %2802 = sbr.rel (0) target = $region53
    $region52: #{tpu_custom_call.1} parent=1 // pred_region
      %2803 = dma.done [#allocation3], 32
    $region53: #{tpu_custom_call.1} parent=1 // pred_fallthru
      _
    %2804 = vsyncpa [#allocation3], 1

</llo_original>
